<compile_context>
chip_gen: v6e
topology: v6e:2x2x1
jax: 0.10.0
libtpu: 0.0.40
codegen_flags: <defaults>
</compile_context>

<pallas_src>
import math
import jax
import jax.numpy as jnp
from jax.experimental import pallas as pl
from jax.experimental.pallas import tpu as pltpu

# ---------------- model hyper-parameters (small, roberta-like) -------------
HIDDEN = 32        # hidden_size
NUM_HEADS = 2
HEAD_DIM = HIDDEN // NUM_HEADS
FFN = 64           # intermediate size
NUM_LAYERS = 2
VOCAB = 100
MAX_POS = 64
LN_EPS = 1e-5
NUM_CLASSES = 2
OUT_PAD = 128      # lane-dense fused output: cols [0:H)=enc, [H:H+2)=logits

# ---------------- packing / tiling constants --------------------------------
BBLK = 8                       # batch tile: 8 sublanes -> full (8,128) stores
WROWS = max(HIDDEN, FFN)       # 64 rows in the per-layer weight slab
WCOLS = 256                    # 96+32+64+32 = 224 cols, padded to 2*128 lanes
C_QKV = 0                      # wqkv  at cols [  0: 96)
C_WO = 3 * HIDDEN              # wo    at cols [ 96:128)
C_W1 = 4 * HIDDEN              # w1    at cols [128:192)
C_W2 = 4 * HIDDEN + FFN        # w2    at cols [192:224)
MISC_ROWS = 40                 # wout rows [0:32), bout row 32, emb LN rows 33/34


# ---------------- small helpers ---------------------------------------------
def _layer_norm(x, gamma, beta):
    mu = jnp.mean(x, axis=-1, keepdims=True)
    var = jnp.mean((x - mu) ** 2, axis=-1, keepdims=True)
    return (x - mu) * jax.lax.rsqrt(var + LN_EPS) * gamma + beta


# ---------------- fused Pallas kernel ----------------------------------------
def fused_encoder_kernel(x_ref, mask_ref, wslab_ref, bslab_ref, misc_ref, o_ref):
    """One (BBLK, S, H) batch tile per grid step, everything resident in VMEM:
       embedding LayerNorm -> NUM_LAYERS post-LN encoder layers ->
       CLS slice -> fused lane-dense (enc | logits) output projection."""
    f32 = jnp.float32
    bf16 = jnp.bfloat16
    Bb, S, H = x_ref.shape
    M = Bb * S
    scale = 1.0 / math.sqrt(HEAD_DIM)

    # embedding LayerNorm on the flattened (M, H) slab
    eg = misc_ref[HIDDEN + 1:HIDDEN + 2, 0:HIDDEN]            # (1, H)
    eb = misc_ref[HIDDEN + 2:HIDDEN + 3, 0:HIDDEN]            # (1, H)
    x = _layer_norm(x_ref[...].reshape(M, H), eg, eb)         # (M, H) f32

    # additive attention mask (lane-dense (Bb,128) load) -> (Bb, 1, S)
    mask3 = mask_ref[:, 0:S][:, None, :]

    for l in range(NUM_LAYERS):                               # static unroll (2)
        # per-layer bias / LN slab, sliced once per layer (hoisted broadcasts)
        bl = bslab_ref[l]                                     # (8, 128) f32
        bqkv = bl[0:1, 0:3 * H]
        bo = bl[1:2, 0:H]
        b1 = bl[2:3, 0:FFN]
        b2 = bl[3:4, 0:H]
        g1, be1 = bl[4:5, 0:H], bl[5:6, 0:H]
        g2, be2 = bl[6:7, 0:H], bl[7:8, 0:H]

        # ---- self-attention: fused QKV projection on the (M, H) slab --------
        wqkv = wslab_ref[l, 0:H, C_QKV:C_QKV + 3 * H]         # (H, 3H) bf16
        qkv = jnp.dot(x.astype(bf16), wqkv,
                      preferred_element_type=f32) + bqkv      # (M, 3H) f32
        q3 = qkv[:, 0:H].reshape(Bb, S, H)
        k3 = qkv[:, H:2 * H].reshape(Bb, S, H)
        v3 = qkv[:, 2 * H:3 * H].reshape(Bb, S, H)

        # heads: batched-over-batch einsums on column views; context feeds the
        # output projection through row-blocks of Wo (no stack / no concat).
        attn = bo                                             # (1, H) -> broadcasts
        for h in range(NUM_HEADS):
            sl = slice(h * HEAD_DIM, (h + 1) * HEAD_DIM)
            qh = q3[:, :, sl].astype(bf16)                    # (Bb, S, hd)
            kh = k3[:, :, sl].astype(bf16)
            vh = v3[:, :, sl].astype(bf16)
            s = jnp.einsum('bqd,bkd->bqk', qh, kh,
                           preferred_element_type=f32) * scale   # (Bb, S, S)
            s = s + mask3
            s = s - jnp.max(s, axis=-1, keepdims=True)
            p = jnp.exp(s)
            # NOTE: approx reciprocal (EUP) -- fine for inference.
            p = p * pl.reciprocal(jnp.sum(p, axis=-1, keepdims=True), approx=True)
            ctx = jnp.einsum('bqk,bkd->bqd', p.astype(bf16), vh,
                             preferred_element_type=f32)      # (Bb, S, hd)
            wo_h = wslab_ref[l, h * HEAD_DIM:(h + 1) * HEAD_DIM,
                             C_WO:C_WO + H]                   # (hd, H) bf16
            attn = attn + jnp.dot(ctx.reshape(M, HEAD_DIM).astype(bf16), wo_h,
                                  preferred_element_type=f32)  # (M, H)

        h1 = _layer_norm(x + attn, g1, be1)                   # f32

        # ---- feed-forward ----------------------------------------------------
        w1 = wslab_ref[l, 0:H, C_W1:C_W1 + FFN]               # (H, FFN) bf16
        w2 = wslab_ref[l, 0:FFN, C_W2:C_W2 + H]               # (FFN, H) bf16
        ff = jnp.dot(h1.astype(bf16), w1, preferred_element_type=f32) + b1
        # TODO(synk): HF RoBERTa uses exact (erf) GELU; tanh approximation here.
        ff = jax.nn.gelu(ff, approximate=True)
        ff = jnp.dot(ff.astype(bf16), w2, preferred_element_type=f32) + b2
        x = _layer_norm(h1 + ff, g2, be2)

    # CLS rows -> fused lane-dense output: [enc | logits | zero-pad] (Bb, 128).
    # wout holds an f32 identity block (enc passes through exactly) and fc.
    enc = x.reshape(Bb, S, H)[:, 0, :]                        # (Bb, H) f32
    wout = misc_ref[0:HIDDEN, :]                              # (H, 128) f32
    bout = misc_ref[HIDDEN:HIDDEN + 1, :]                     # (1, 128) f32
    o_ref[...] = jnp.dot(enc, wout, preferred_element_type=jnp.float32) + bout


# ---------------- parameter init (deterministic) ----------------------------
def init_params(key):
    keys = iter(jax.random.split(key, 64))

    def nrm(shape, scale=0.02):
        return (scale * jax.random.normal(next(keys), shape)).astype(jnp.float32)

    params = {
        'word_emb': nrm((VOCAB, HIDDEN)),
        'pos_emb': nrm((MAX_POS, HIDDEN)),
        'type_emb': nrm((1, HIDDEN)),
        'emb_ln_g': jnp.ones((1, HIDDEN), jnp.float32),
        'emb_ln_b': jnp.zeros((1, HIDDEN), jnp.float32),
        'fc_w': nrm((HIDDEN, NUM_CLASSES)),
        'fc_b': jnp.zeros((1, NUM_CLASSES), jnp.float32),
        'layers': [],
    }
    for _ in range(NUM_LAYERS):
        params['layers'].append({
            'wq': nrm((HIDDEN, HIDDEN)), 'bq': jnp.zeros((1, HIDDEN), jnp.float32),
            'wk': nrm((HIDDEN, HIDDEN)), 'bk': jnp.zeros((1, HIDDEN), jnp.float32),
            'wv': nrm((HIDDEN, HIDDEN)), 'bv': jnp.zeros((1, HIDDEN), jnp.float32),
            'wo': nrm((HIDDEN, HIDDEN)), 'bo': jnp.zeros((1, HIDDEN), jnp.float32),
            'g1': jnp.ones((1, HIDDEN), jnp.float32),
            'be1': jnp.zeros((1, HIDDEN), jnp.float32),
            'w1': nrm((HIDDEN, FFN)), 'b1': jnp.zeros((1, FFN), jnp.float32),
            'w2': nrm((FFN, HIDDEN)), 'b2': jnp.zeros((1, HIDDEN), jnp.float32),
            'g2': jnp.ones((1, HIDDEN), jnp.float32),
            'be2': jnp.zeros((1, HIDDEN), jnp.float32),
        })
    return params


def pack_params(p):
    """Pack all per-layer weights into 3 lane-dense slabs so the fused kernel
    takes a handful of large aligned DMAs instead of a dozen tiny ones."""
    H = HIDDEN
    wslab = jnp.zeros((NUM_LAYERS, WROWS, WCOLS), jnp.float32)
    bslab = jnp.zeros((NUM_LAYERS, 8, 128), jnp.float32)
    for l, lp in enumerate(p['layers']):
        wqkv = jnp.concatenate([lp['wq'], lp['wk'], lp['wv']], axis=1)   # (H, 3H)
        bqkv = jnp.concatenate([lp['bq'], lp['bk'], lp['bv']], axis=1)   # (1, 3H)
        wslab = (wslab
                 .at[l, 0:H, C_QKV:C_QKV + 3 * H].set(wqkv)
                 .at[l, 0:H, C_WO:C_WO + H].set(lp['wo'])
                 .at[l, 0:H, C_W1:C_W1 + FFN].set(lp['w1'])
                 .at[l, 0:FFN, C_W2:C_W2 + H].set(lp['w2']))
        bslab = (bslab
                 .at[l, 0:1, 0:3 * H].set(bqkv)
                 .at[l, 1:2, 0:H].set(lp['bo'])
                 .at[l, 2:3, 0:FFN].set(lp['b1'])
                 .at[l, 3:4, 0:H].set(lp['b2'])
                 .at[l, 4:5, 0:H].set(lp['g1'])
                 .at[l, 5:6, 0:H].set(lp['be1'])
                 .at[l, 6:7, 0:H].set(lp['g2'])
                 .at[l, 7:8, 0:H].set(lp['be2']))

    # Output projection: identity block passes `enc` through exactly (f32),
    # fc weights fill the next NUM_CLASSES lanes, rest zero -> lane-dense store.
    wout = (jnp.zeros((H, OUT_PAD), jnp.float32)
            .at[:, :H].set(jnp.eye(H, dtype=jnp.float32))
            .at[:, H:H + NUM_CLASSES].set(p['fc_w']))
    bout = (jnp.zeros((1, OUT_PAD), jnp.float32)
            .at[:, H:H + NUM_CLASSES].set(p['fc_b']))
    misc = (jnp.zeros((MISC_ROWS, 128), jnp.float32)
            .at[0:H, :].set(wout)
            .at[H:H + 1, :].set(bout)
            .at[H + 1:H + 2, 0:H].set(p['emb_ln_g'])
            .at[H + 2:H + 3, 0:H].set(p['emb_ln_b']))

    return {
        'word_emb': p['word_emb'], 'pos_emb': p['pos_emb'], 'type_emb': p['type_emb'],
        'wslab': wslab.astype(jnp.bfloat16),   # bf16 MXU operands, halves DMA bytes
        'bslab': bslab,                        # biases / LN params stay f32
        'misc': misc,                          # f32: exact enc pass-through
    }


def _cost_estimate(b_pad, s):
    tok = b_pad * s
    mm = 2 * tok * NUM_LAYERS * (HIDDEN * 3 * HIDDEN + HIDDEN * HIDDEN
                                 + HIDDEN * FFN + FFN * HIDDEN)
    attn = 2 * b_pad * NUM_LAYERS * NUM_HEADS * s * s * HEAD_DIM * 2
    out = 2 * b_pad * HIDDEN * OUT_PAD
    trans = NUM_LAYERS * b_pad * (NUM_HEADS * s * s + s * FFN)
    bytes_acc = (tok * HIDDEN * 4 + b_pad * 128 * 4
                 + NUM_LAYERS * WROWS * WCOLS * 2
                 + NUM_LAYERS * 8 * 128 * 4
                 + MISC_ROWS * 128 * 4
                 + b_pad * OUT_PAD * 4)
    return pl.CostEstimate(flops=mm + attn + out, transcendentals=trans,
                           bytes_accessed=bytes_acc)


# ---------------- forward (≙ Encoder.forward(..., inference=True)) ----------
def encoder_forward(pp, input_ids, attention_mask):
    B, S = input_ids.shape
    B_pad = ((B + BBLK - 1) // BBLK) * BBLK          # sublane-aligned batch tile

    # --- embeddings (gather is glue; everything else runs in ONE Pallas call)
    tok = jnp.take(pp['word_emb'], input_ids, axis=0)                # (B, S, H)
    pos = pp['pos_emb'][:S][None]                                    # (1, S, H)
    typ = pp['type_emb'][None]                                       # (1, 1, H)
    x_emb = (tok + pos + typ).astype(jnp.float32)
    if B_pad != B:
        x_emb = jnp.pad(x_emb, ((0, B_pad - B), (0, 0), (0, 0)))

    # additive attention mask in a lane-dense (B_pad, 128) slab (0 keep / -1e9)
    mask_add = (1.0 - attention_mask.astype(jnp.float32)) * -1e9     # (B, S)
    mask_slab = jnp.zeros((B_pad, 128), jnp.float32).at[:B, :S].set(mask_add)

    wslab, bslab, misc = pp['wslab'], pp['bslab'], pp['misc']

    out = pl.pallas_call(
        fused_encoder_kernel,
        out_shape=jax.ShapeDtypeStruct((B_pad, OUT_PAD), jnp.float32),
        grid=(B_pad // BBLK,),
        in_specs=[
            pl.BlockSpec((BBLK, S, HIDDEN), lambda b: (b, 0, 0)),
            pl.BlockSpec((BBLK, 128), lambda b: (b, 0)),
            pl.BlockSpec(wslab.shape, lambda b: (0, 0, 0)),   # resident weights
            pl.BlockSpec(bslab.shape, lambda b: (0, 0, 0)),
            pl.BlockSpec(misc.shape, lambda b: (0, 0)),
        ],
        out_specs=pl.BlockSpec((BBLK, OUT_PAD), lambda b: (b, 0)),
        compiler_params=pltpu.CompilerParams(
            dimension_semantics=("parallel",)),               # both TCs on v7x
        cost_estimate=_cost_estimate(B_pad, S),
    )(x_emb, mask_slab, wslab, bslab, misc)

    enc = out[:B, :HIDDEN]                                    # (B, H)
    logits = out[:B, HIDDEN:HIDDEN + NUM_CLASSES]             # (B, 2)
    return logits, enc


# TODO(synk): the HuggingFace tokenizer (text -> input_ids/attention_mask) and
#             pretrained roberta-base weight loading have no Pallas equivalent;
#             token ids are synthesized and weights randomly initialized below.

# ---------------- main -------------------------------------------------------
if __name__ == "__main__":
    B, S = 2, 8
    key = jax.random.PRNGKey(0)
    k_params, k_ids = jax.random.split(key)

    params = init_params(k_params)
    packed = pack_params(params)

    input_ids = jax.random.randint(k_ids, (B, S), 0, VOCAB, dtype=jnp.int32)
    # batch element 1 has two padding positions at the end
    attention_mask = jnp.array(
        [[1, 1, 1, 1, 1, 1, 1, 1],
         [1, 1, 1, 1, 1, 1, 0, 0]], dtype=jnp.float32)

    fwd = jax.jit(encoder_forward)
    logits, enc = fwd(packed, input_ids, attention_mask)
    jax.block_until_ready((logits, enc))

    assert logits.shape == (B, NUM_CLASSES) and enc.shape == (B, HIDDEN)
    assert bool(jnp.all(jnp.isfinite(logits))) and bool(jnp.all(jnp.isfinite(enc)))
    print("KERNEL_OK")
</pallas_src>

<mosaic_0001>
module attributes {stable_mosaic.version = 11 : i64} {
  func.func @fused_encoder_kernel(%arg0: i32, %arg1: memref<8x8x32xf32, #tpu.memory_space<vmem>>, %arg2: memref<8x128xf32, #tpu.memory_space<vmem>>, %arg3: memref<2x64x256xbf16, #tpu.memory_space<vmem>>, %arg4: memref<2x8x128xf32, #tpu.memory_space<vmem>>, %arg5: memref<40x128xf32, #tpu.memory_space<vmem>>, %arg6: memref<8x128xf32, #tpu.memory_space<vmem>>) attributes {dimension_semantics = [#tpu.dimension_semantics<parallel>], iteration_bounds = array<i64: 1>, scalar_prefetch = 0 : i64, scratch_operands = 0 : i64, tpu.core_type = #tpu.core_type<tc>, window_params = [{transform_indices = @transform_0, window_bounds = array<i64: 8, 8, 32>}, {transform_indices = @transform_1, window_bounds = array<i64: 8, 128>}, {pipeline_mode = #tpu.pipeline_mode<synchronous>, transform_indices = @transform_2, window_bounds = array<i64: 2, 64, 256>}, {pipeline_mode = #tpu.pipeline_mode<synchronous>, transform_indices = @transform_3, window_bounds = array<i64: 2, 8, 128>}, {pipeline_mode = #tpu.pipeline_mode<synchronous>, transform_indices = @transform_4, window_bounds = array<i64: 40, 128>}, {transform_indices = @transform_5, window_bounds = array<i64: 8, 128>}]} {
    %c33 = arith.constant 33 : index
    %c0 = arith.constant 0 : index
    %0 = vector.load %arg5[%c33, %c0] : memref<40x128xf32, #tpu.memory_space<vmem>>, vector<1x32xf32>
    %c34 = arith.constant 34 : index
    %c0_0 = arith.constant 0 : index
    %1 = vector.load %arg5[%c34, %c0_0] : memref<40x128xf32, #tpu.memory_space<vmem>>, vector<1x32xf32>
    %c0_1 = arith.constant 0 : index
    %c0_2 = arith.constant 0 : index
    %c0_3 = arith.constant 0 : index
    %2 = vector.load %arg1[%c0_1, %c0_2, %c0_3] : memref<8x8x32xf32, #tpu.memory_space<vmem>>, vector<8x8x32xf32>
    %3 = vector.shape_cast %2 : vector<8x8x32xf32> to vector<64x32xf32>
    %cst = arith.constant dense<0.000000e+00> : vector<64xf32>
    %4 = vector.multi_reduction <add>, %3, %cst [1] : vector<64x32xf32> to vector<64xf32>
    %5 = vector.shape_cast %4 : vector<64xf32> to vector<64x1xf32>
    %cst_4 = arith.constant 3.200000e+01 : f32
    %6 = vector.broadcast %cst_4 : f32 to vector<64x1xf32>
    %7 = arith.divf %5, %6 : vector<64x1xf32>
    %8 = vector.broadcast %7 : vector<64x1xf32> to vector<64x32xf32>
    %9 = arith.subf %3, %8 : vector<64x32xf32>
    %10 = arith.mulf %9, %9 : vector<64x32xf32>
    %cst_5 = arith.constant dense<0.000000e+00> : vector<64xf32>
    %11 = vector.multi_reduction <add>, %10, %cst_5 [1] : vector<64x32xf32> to vector<64xf32>
    %12 = vector.shape_cast %11 : vector<64xf32> to vector<64x1xf32>
    %cst_6 = arith.constant 3.200000e+01 : f32
    %13 = vector.broadcast %cst_6 : f32 to vector<64x1xf32>
    %14 = arith.divf %12, %13 : vector<64x1xf32>
    %15 = vector.broadcast %7 : vector<64x1xf32> to vector<64x32xf32>
    %16 = arith.subf %3, %15 : vector<64x32xf32>
    %cst_7 = arith.constant 9.99999974E-6 : f32
    %17 = vector.broadcast %cst_7 : f32 to vector<64x1xf32>
    %18 = arith.addf %14, %17 : vector<64x1xf32>
    %19 = math.rsqrt %18 : vector<64x1xf32>
    %20 = vector.broadcast %19 : vector<64x1xf32> to vector<64x32xf32>
    %21 = arith.mulf %16, %20 : vector<64x32xf32>
    %22 = vector.broadcast %0 : vector<1x32xf32> to vector<64x32xf32>
    %23 = arith.mulf %21, %22 : vector<64x32xf32>
    %24 = vector.broadcast %1 : vector<1x32xf32> to vector<64x32xf32>
    %25 = arith.addf %23, %24 : vector<64x32xf32>
    %c0_8 = arith.constant 0 : index
    %c0_9 = arith.constant 0 : index
    %26 = vector.load %arg2[%c0_8, %c0_9] : memref<8x128xf32, #tpu.memory_space<vmem>>, vector<8x8xf32>
    %27 = vector.shape_cast %26 : vector<8x8xf32> to vector<8x1x8xf32>
    %c0_10 = arith.constant 0 : index
    %c0_11 = arith.constant 0 : index
    %c0_12 = arith.constant 0 : index
    %28 = vector.load %arg4[%c0_10, %c0_11, %c0_12] : memref<2x8x128xf32, #tpu.memory_space<vmem>>, vector<1x8x128xf32>
    %29 = vector.shape_cast %28 : vector<1x8x128xf32> to vector<8x128xf32>
    %30 = vector.extract_strided_slice %29 {offsets = [0, 0], sizes = [1, 96], strides = [1, 1]} : vector<8x128xf32> to vector<1x96xf32>
    %31 = vector.extract_strided_slice %29 {offsets = [1, 0], sizes = [1, 32], strides = [1, 1]} : vector<8x128xf32> to vector<1x32xf32>
    %32 = vector.extract_strided_slice %29 {offsets = [2, 0], sizes = [1, 64], strides = [1, 1]} : vector<8x128xf32> to vector<1x64xf32>
    %33 = vector.extract_strided_slice %29 {offsets = [3, 0], sizes = [1, 32], strides = [1, 1]} : vector<8x128xf32> to vector<1x32xf32>
    %34 = vector.extract_strided_slice %29 {offsets = [4, 0], sizes = [1, 32], strides = [1, 1]} : vector<8x128xf32> to vector<1x32xf32>
    %35 = vector.extract_strided_slice %29 {offsets = [5, 0], sizes = [1, 32], strides = [1, 1]} : vector<8x128xf32> to vector<1x32xf32>
    %36 = vector.extract_strided_slice %29 {offsets = [6, 0], sizes = [1, 32], strides = [1, 1]} : vector<8x128xf32> to vector<1x32xf32>
    %37 = vector.extract_strided_slice %29 {offsets = [7, 0], sizes = [1, 32], strides = [1, 1]} : vector<8x128xf32> to vector<1x32xf32>
    %c0_13 = arith.constant 0 : index
    %c0_14 = arith.constant 0 : index
    %c0_15 = arith.constant 0 : index
    %38 = vector.load %arg3[%c0_13, %c0_14, %c0_15] : memref<2x64x256xbf16, #tpu.memory_space<vmem>>, vector<1x32x96xbf16>
    %39 = vector.shape_cast %38 : vector<1x32x96xbf16> to vector<32x96xbf16>
    %40 = arith.truncf %25 : vector<64x32xf32> to vector<64x32xbf16>
    %cst_16 = arith.constant dense<0.000000e+00> : vector<64x96xf32>
    %41 = tpu.matmul %40, %39, %cst_16 {dimension_numbers = #tpu.dot_dimension_numbers<[1], [0], [0], [1], [0, 0, 1, 1], [], []>} : vector<64x32xbf16>, vector<32x96xbf16>, vector<64x96xf32> -> vector<64x96xf32>
    %42 = vector.broadcast %30 : vector<1x96xf32> to vector<64x96xf32>
    %43 = arith.addf %41, %42 : vector<64x96xf32>
    %44 = vector.extract_strided_slice %43 {offsets = [0, 0], sizes = [64, 32], strides = [1, 1]} : vector<64x96xf32> to vector<64x32xf32>
    %45 = vector.shape_cast %44 : vector<64x32xf32> to vector<8x8x32xf32>
    %46 = vector.extract_strided_slice %43 {offsets = [0, 32], sizes = [64, 32], strides = [1, 1]} : vector<64x96xf32> to vector<64x32xf32>
    %47 = vector.shape_cast %46 : vector<64x32xf32> to vector<8x8x32xf32>
    %48 = vector.extract_strided_slice %43 {offsets = [0, 64], sizes = [64, 32], strides = [1, 1]} : vector<64x96xf32> to vector<64x32xf32>
    %49 = vector.shape_cast %48 : vector<64x32xf32> to vector<8x8x32xf32>
    %50 = vector.extract_strided_slice %45 {offsets = [0, 0, 0], sizes = [8, 8, 16], strides = [1, 1, 1]} : vector<8x8x32xf32> to vector<8x8x16xf32>
    %51 = arith.truncf %50 : vector<8x8x16xf32> to vector<8x8x16xbf16>
    %52 = vector.extract_strided_slice %47 {offsets = [0, 0, 0], sizes = [8, 8, 16], strides = [1, 1, 1]} : vector<8x8x32xf32> to vector<8x8x16xf32>
    %53 = arith.truncf %52 : vector<8x8x16xf32> to vector<8x8x16xbf16>
    %54 = vector.extract_strided_slice %49 {offsets = [0, 0, 0], sizes = [8, 8, 16], strides = [1, 1, 1]} : vector<8x8x32xf32> to vector<8x8x16xf32>
    %55 = arith.truncf %54 : vector<8x8x16xf32> to vector<8x8x16xbf16>
    "tpu.trace_start"() <{level = 10 : i32, message = "bqd,bkd->bqk"}> : () -> ()
    %cst_17 = arith.constant dense<0.000000e+00> : vector<8x8x8xf32>
    %56 = tpu.matmul %51, %53, %cst_17 {dimension_numbers = #tpu.dot_dimension_numbers<[2], [2], [1], [1], [0, 0, 0, 1, 1, 1], [0], [0]>} : vector<8x8x16xbf16>, vector<8x8x16xbf16>, vector<8x8x8xf32> -> vector<8x8x8xf32>
    "tpu.trace_stop"() : () -> ()
    %cst_18 = arith.constant 2.500000e-01 : f32
    %57 = vector.broadcast %cst_18 : f32 to vector<8x8x8xf32>
    %58 = arith.mulf %56, %57 : vector<8x8x8xf32>
    %59 = vector.broadcast %27 : vector<8x1x8xf32> to vector<8x8x8xf32>
    %60 = arith.addf %58, %59 : vector<8x8x8xf32>
    %cst_19 = arith.constant dense<0xFF800000> : vector<8x8xf32>
    %61 = vector.multi_reduction <maximumf>, %60, %cst_19 [2] : vector<8x8x8xf32> to vector<8x8xf32>
    %62 = vector.shape_cast %61 : vector<8x8xf32> to vector<8x8x1xf32>
    %63 = vector.broadcast %62 : vector<8x8x1xf32> to vector<8x8x8xf32>
    %64 = arith.subf %60, %63 : vector<8x8x8xf32>
    %65 = math.exp %64 : vector<8x8x8xf32>
    %cst_20 = arith.constant dense<0.000000e+00> : vector<8x8xf32>
    %66 = vector.multi_reduction <add>, %65, %cst_20 [2] : vector<8x8x8xf32> to vector<8x8xf32>
    %67 = vector.shape_cast %66 : vector<8x8xf32> to vector<8x8x1xf32>
    %68 = tpu.reciprocal %67 {approx = true} : vector<8x8x1xf32> -> vector<8x8x1xf32>
    %69 = vector.broadcast %68 : vector<8x8x1xf32> to vector<8x8x8xf32>
    %70 = arith.mulf %65, %69 : vector<8x8x8xf32>
    %71 = arith.truncf %70 : vector<8x8x8xf32> to vector<8x8x8xbf16>
    "tpu.trace_start"() <{level = 10 : i32, message = "bqk,bkd->bqd"}> : () -> ()
    %cst_21 = arith.constant dense<0.000000e+00> : vector<8x8x16xf32>
    %72 = tpu.matmul %71, %55, %cst_21 {dimension_numbers = #tpu.dot_dimension_numbers<[2], [1], [1], [2], [0, 0, 0, 1, 1, 2], [0], [0]>} : vector<8x8x8xbf16>, vector<8x8x16xbf16>, vector<8x8x16xf32> -> vector<8x8x16xf32>
    "tpu.trace_stop"() : () -> ()
    %c0_22 = arith.constant 0 : index
    %c0_23 = arith.constant 0 : index
    %c96 = arith.constant 96 : index
    %73 = vector.load %arg3[%c0_22, %c0_23, %c96] : memref<2x64x256xbf16, #tpu.memory_space<vmem>>, vector<1x16x32xbf16>
    %74 = vector.shape_cast %73 : vector<1x16x32xbf16> to vector<16x32xbf16>
    %75 = vector.shape_cast %72 : vector<8x8x16xf32> to vector<64x16xf32>
    %76 = arith.truncf %75 : vector<64x16xf32> to vector<64x16xbf16>
    %cst_24 = arith.constant dense<0.000000e+00> : vector<64x32xf32>
    %77 = tpu.matmul %76, %74, %cst_24 {dimension_numbers = #tpu.dot_dimension_numbers<[1], [0], [0], [1], [0, 0, 1, 1], [], []>} : vector<64x16xbf16>, vector<16x32xbf16>, vector<64x32xf32> -> vector<64x32xf32>
    %78 = vector.broadcast %31 : vector<1x32xf32> to vector<64x32xf32>
    %79 = arith.addf %78, %77 : vector<64x32xf32>
    %80 = vector.extract_strided_slice %45 {offsets = [0, 0, 16], sizes = [8, 8, 16], strides = [1, 1, 1]} : vector<8x8x32xf32> to vector<8x8x16xf32>
    %81 = arith.truncf %80 : vector<8x8x16xf32> to vector<8x8x16xbf16>
    %82 = vector.extract_strided_slice %47 {offsets = [0, 0, 16], sizes = [8, 8, 16], strides = [1, 1, 1]} : vector<8x8x32xf32> to vector<8x8x16xf32>
    %83 = arith.truncf %82 : vector<8x8x16xf32> to vector<8x8x16xbf16>
    %84 = vector.extract_strided_slice %49 {offsets = [0, 0, 16], sizes = [8, 8, 16], strides = [1, 1, 1]} : vector<8x8x32xf32> to vector<8x8x16xf32>
    %85 = arith.truncf %84 : vector<8x8x16xf32> to vector<8x8x16xbf16>
    "tpu.trace_start"() <{level = 10 : i32, message = "bqd,bkd->bqk"}> : () -> ()
    %cst_25 = arith.constant dense<0.000000e+00> : vector<8x8x8xf32>
    %86 = tpu.matmul %81, %83, %cst_25 {dimension_numbers = #tpu.dot_dimension_numbers<[2], [2], [1], [1], [0, 0, 0, 1, 1, 1], [0], [0]>} : vector<8x8x16xbf16>, vector<8x8x16xbf16>, vector<8x8x8xf32> -> vector<8x8x8xf32>
    "tpu.trace_stop"() : () -> ()
    %cst_26 = arith.constant 2.500000e-01 : f32
    %87 = vector.broadcast %cst_26 : f32 to vector<8x8x8xf32>
    %88 = arith.mulf %86, %87 : vector<8x8x8xf32>
    %89 = vector.broadcast %27 : vector<8x1x8xf32> to vector<8x8x8xf32>
    %90 = arith.addf %88, %89 : vector<8x8x8xf32>
    %cst_27 = arith.constant dense<0xFF800000> : vector<8x8xf32>
    %91 = vector.multi_reduction <maximumf>, %90, %cst_27 [2] : vector<8x8x8xf32> to vector<8x8xf32>
    %92 = vector.shape_cast %91 : vector<8x8xf32> to vector<8x8x1xf32>
    %93 = vector.broadcast %92 : vector<8x8x1xf32> to vector<8x8x8xf32>
    %94 = arith.subf %90, %93 : vector<8x8x8xf32>
    %95 = math.exp %94 : vector<8x8x8xf32>
    %cst_28 = arith.constant dense<0.000000e+00> : vector<8x8xf32>
    %96 = vector.multi_reduction <add>, %95, %cst_28 [2] : vector<8x8x8xf32> to vector<8x8xf32>
    %97 = vector.shape_cast %96 : vector<8x8xf32> to vector<8x8x1xf32>
    %98 = tpu.reciprocal %97 {approx = true} : vector<8x8x1xf32> -> vector<8x8x1xf32>
    %99 = vector.broadcast %98 : vector<8x8x1xf32> to vector<8x8x8xf32>
    %100 = arith.mulf %95, %99 : vector<8x8x8xf32>
    %101 = arith.truncf %100 : vector<8x8x8xf32> to vector<8x8x8xbf16>
    "tpu.trace_start"() <{level = 10 : i32, message = "bqk,bkd->bqd"}> : () -> ()
    %cst_29 = arith.constant dense<0.000000e+00> : vector<8x8x16xf32>
    %102 = tpu.matmul %101, %85, %cst_29 {dimension_numbers = #tpu.dot_dimension_numbers<[2], [1], [1], [2], [0, 0, 0, 1, 1, 2], [0], [0]>} : vector<8x8x8xbf16>, vector<8x8x16xbf16>, vector<8x8x16xf32> -> vector<8x8x16xf32>
    "tpu.trace_stop"() : () -> ()
    %c0_30 = arith.constant 0 : index
    %c16 = arith.constant 16 : index
    %c96_31 = arith.constant 96 : index
    %103 = vector.load %arg3[%c0_30, %c16, %c96_31] : memref<2x64x256xbf16, #tpu.memory_space<vmem>>, vector<1x16x32xbf16>
    %104 = vector.shape_cast %103 : vector<1x16x32xbf16> to vector<16x32xbf16>
    %105 = vector.shape_cast %102 : vector<8x8x16xf32> to vector<64x16xf32>
    %106 = arith.truncf %105 : vector<64x16xf32> to vector<64x16xbf16>
    %cst_32 = arith.constant dense<0.000000e+00> : vector<64x32xf32>
    %107 = tpu.matmul %106, %104, %cst_32 {dimension_numbers = #tpu.dot_dimension_numbers<[1], [0], [0], [1], [0, 0, 1, 1], [], []>} : vector<64x16xbf16>, vector<16x32xbf16>, vector<64x32xf32> -> vector<64x32xf32>
    %108 = arith.addf %79, %107 : vector<64x32xf32>
    %109 = arith.addf %25, %108 : vector<64x32xf32>
    %cst_33 = arith.constant dense<0.000000e+00> : vector<64xf32>
    %110 = vector.multi_reduction <add>, %109, %cst_33 [1] : vector<64x32xf32> to vector<64xf32>
    %111 = vector.shape_cast %110 : vector<64xf32> to vector<64x1xf32>
    %cst_34 = arith.constant 3.200000e+01 : f32
    %112 = vector.broadcast %cst_34 : f32 to vector<64x1xf32>
    %113 = arith.divf %111, %112 : vector<64x1xf32>
    %114 = vector.broadcast %113 : vector<64x1xf32> to vector<64x32xf32>
    %115 = arith.subf %109, %114 : vector<64x32xf32>
    %116 = arith.mulf %115, %115 : vector<64x32xf32>
    %cst_35 = arith.constant dense<0.000000e+00> : vector<64xf32>
    %117 = vector.multi_reduction <add>, %116, %cst_35 [1] : vector<64x32xf32> to vector<64xf32>
    %118 = vector.shape_cast %117 : vector<64xf32> to vector<64x1xf32>
    %cst_36 = arith.constant 3.200000e+01 : f32
    %119 = vector.broadcast %cst_36 : f32 to vector<64x1xf32>
    %120 = arith.divf %118, %119 : vector<64x1xf32>
    %121 = vector.broadcast %113 : vector<64x1xf32> to vector<64x32xf32>
    %122 = arith.subf %109, %121 : vector<64x32xf32>
    %cst_37 = arith.constant 9.99999974E-6 : f32
    %123 = vector.broadcast %cst_37 : f32 to vector<64x1xf32>
    %124 = arith.addf %120, %123 : vector<64x1xf32>
    %125 = math.rsqrt %124 : vector<64x1xf32>
    %126 = vector.broadcast %125 : vector<64x1xf32> to vector<64x32xf32>
    %127 = arith.mulf %122, %126 : vector<64x32xf32>
    %128 = vector.broadcast %34 : vector<1x32xf32> to vector<64x32xf32>
    %129 = arith.mulf %127, %128 : vector<64x32xf32>
    %130 = vector.broadcast %35 : vector<1x32xf32> to vector<64x32xf32>
    %131 = arith.addf %129, %130 : vector<64x32xf32>
    %c0_38 = arith.constant 0 : index
    %c0_39 = arith.constant 0 : index
    %c128 = arith.constant 128 : index
    %132 = vector.load %arg3[%c0_38, %c0_39, %c128] : memref<2x64x256xbf16, #tpu.memory_space<vmem>>, vector<1x32x64xbf16>
    %133 = vector.shape_cast %132 : vector<1x32x64xbf16> to vector<32x64xbf16>
    %c0_40 = arith.constant 0 : index
    %c0_41 = arith.constant 0 : index
    %c192 = arith.constant 192 : index
    %134 = vector.load %arg3[%c0_40, %c0_41, %c192] : memref<2x64x256xbf16, #tpu.memory_space<vmem>>, vector<1x64x32xbf16>
    %135 = vector.shape_cast %134 : vector<1x64x32xbf16> to vector<64x32xbf16>
    %136 = arith.truncf %131 : vector<64x32xf32> to vector<64x32xbf16>
    %cst_42 = arith.constant dense<0.000000e+00> : vector<64x64xf32>
    %137 = tpu.matmul %136, %133, %cst_42 {dimension_numbers = #tpu.dot_dimension_numbers<[1], [0], [0], [1], [0, 0, 1, 1], [], []>} : vector<64x32xbf16>, vector<32x64xbf16>, vector<64x64xf32> -> vector<64x64xf32>
    %138 = vector.broadcast %32 : vector<1x64xf32> to vector<64x64xf32>
    %139 = arith.addf %137, %138 : vector<64x64xf32>
    %140 = arith.mulf %139, %139 : vector<64x64xf32>
    %141 = arith.mulf %139, %140 : vector<64x64xf32>
    %cst_43 = arith.constant 4.471500e-02 : f32
    %142 = vector.broadcast %cst_43 : f32 to vector<64x64xf32>
    %143 = arith.mulf %142, %141 : vector<64x64xf32>
    %144 = arith.addf %139, %143 : vector<64x64xf32>
    %cst_44 = arith.constant 0.797884583 : f32
    %145 = vector.broadcast %cst_44 : f32 to vector<64x64xf32>
    %146 = arith.mulf %145, %144 : vector<64x64xf32>
    %147 = math.tanh %146 : vector<64x64xf32>
    %cst_45 = arith.constant 1.000000e+00 : f32
    %148 = vector.broadcast %cst_45 : f32 to vector<64x64xf32>
    %149 = arith.addf %148, %147 : vector<64x64xf32>
    %cst_46 = arith.constant 5.000000e-01 : f32
    %150 = vector.broadcast %cst_46 : f32 to vector<64x64xf32>
    %151 = arith.mulf %150, %149 : vector<64x64xf32>
    %152 = arith.mulf %139, %151 : vector<64x64xf32>
    %153 = arith.truncf %152 : vector<64x64xf32> to vector<64x64xbf16>
    %cst_47 = arith.constant dense<0.000000e+00> : vector<64x32xf32>
    %154 = tpu.matmul %153, %135, %cst_47 {dimension_numbers = #tpu.dot_dimension_numbers<[1], [0], [0], [1], [0, 0, 1, 1], [], []>} : vector<64x64xbf16>, vector<64x32xbf16>, vector<64x32xf32> -> vector<64x32xf32>
    %155 = vector.broadcast %33 : vector<1x32xf32> to vector<64x32xf32>
    %156 = arith.addf %154, %155 : vector<64x32xf32>
    %157 = arith.addf %131, %156 : vector<64x32xf32>
    %cst_48 = arith.constant dense<0.000000e+00> : vector<64xf32>
    %158 = vector.multi_reduction <add>, %157, %cst_48 [1] : vector<64x32xf32> to vector<64xf32>
    %159 = vector.shape_cast %158 : vector<64xf32> to vector<64x1xf32>
    %cst_49 = arith.constant 3.200000e+01 : f32
    %160 = vector.broadcast %cst_49 : f32 to vector<64x1xf32>
    %161 = arith.divf %159, %160 : vector<64x1xf32>
    %162 = vector.broadcast %161 : vector<64x1xf32> to vector<64x32xf32>
    %163 = arith.subf %157, %162 : vector<64x32xf32>
    %164 = arith.mulf %163, %163 : vector<64x32xf32>
    %cst_50 = arith.constant dense<0.000000e+00> : vector<64xf32>
    %165 = vector.multi_reduction <add>, %164, %cst_50 [1] : vector<64x32xf32> to vector<64xf32>
    %166 = vector.shape_cast %165 : vector<64xf32> to vector<64x1xf32>
    %cst_51 = arith.constant 3.200000e+01 : f32
    %167 = vector.broadcast %cst_51 : f32 to vector<64x1xf32>
    %168 = arith.divf %166, %167 : vector<64x1xf32>
    %169 = vector.broadcast %161 : vector<64x1xf32> to vector<64x32xf32>
    %170 = arith.subf %157, %169 : vector<64x32xf32>
    %cst_52 = arith.constant 9.99999974E-6 : f32
    %171 = vector.broadcast %cst_52 : f32 to vector<64x1xf32>
    %172 = arith.addf %168, %171 : vector<64x1xf32>
    %173 = math.rsqrt %172 : vector<64x1xf32>
    %174 = vector.broadcast %173 : vector<64x1xf32> to vector<64x32xf32>
    %175 = arith.mulf %170, %174 : vector<64x32xf32>
    %176 = vector.broadcast %36 : vector<1x32xf32> to vector<64x32xf32>
    %177 = arith.mulf %175, %176 : vector<64x32xf32>
    %178 = vector.broadcast %37 : vector<1x32xf32> to vector<64x32xf32>
    %179 = arith.addf %177, %178 : vector<64x32xf32>
    %c1 = arith.constant 1 : index
    %c0_53 = arith.constant 0 : index
    %c0_54 = arith.constant 0 : index
    %180 = vector.load %arg4[%c1, %c0_53, %c0_54] : memref<2x8x128xf32, #tpu.memory_space<vmem>>, vector<1x8x128xf32>
    %181 = vector.shape_cast %180 : vector<1x8x128xf32> to vector<8x128xf32>
    %182 = vector.extract_strided_slice %181 {offsets = [0, 0], sizes = [1, 96], strides = [1, 1]} : vector<8x128xf32> to vector<1x96xf32>
    %183 = vector.extract_strided_slice %181 {offsets = [1, 0], sizes = [1, 32], strides = [1, 1]} : vector<8x128xf32> to vector<1x32xf32>
    %184 = vector.extract_strided_slice %181 {offsets = [2, 0], sizes = [1, 64], strides = [1, 1]} : vector<8x128xf32> to vector<1x64xf32>
    %185 = vector.extract_strided_slice %181 {offsets = [3, 0], sizes = [1, 32], strides = [1, 1]} : vector<8x128xf32> to vector<1x32xf32>
    %186 = vector.extract_strided_slice %181 {offsets = [4, 0], sizes = [1, 32], strides = [1, 1]} : vector<8x128xf32> to vector<1x32xf32>
    %187 = vector.extract_strided_slice %181 {offsets = [5, 0], sizes = [1, 32], strides = [1, 1]} : vector<8x128xf32> to vector<1x32xf32>
    %188 = vector.extract_strided_slice %181 {offsets = [6, 0], sizes = [1, 32], strides = [1, 1]} : vector<8x128xf32> to vector<1x32xf32>
    %189 = vector.extract_strided_slice %181 {offsets = [7, 0], sizes = [1, 32], strides = [1, 1]} : vector<8x128xf32> to vector<1x32xf32>
    %c1_55 = arith.constant 1 : index
    %c0_56 = arith.constant 0 : index
    %c0_57 = arith.constant 0 : index
    %190 = vector.load %arg3[%c1_55, %c0_56, %c0_57] : memref<2x64x256xbf16, #tpu.memory_space<vmem>>, vector<1x32x96xbf16>
    %191 = vector.shape_cast %190 : vector<1x32x96xbf16> to vector<32x96xbf16>
    %192 = arith.truncf %179 : vector<64x32xf32> to vector<64x32xbf16>
    %cst_58 = arith.constant dense<0.000000e+00> : vector<64x96xf32>
    %193 = tpu.matmul %192, %191, %cst_58 {dimension_numbers = #tpu.dot_dimension_numbers<[1], [0], [0], [1], [0, 0, 1, 1], [], []>} : vector<64x32xbf16>, vector<32x96xbf16>, vector<64x96xf32> -> vector<64x96xf32>
    %194 = vector.broadcast %182 : vector<1x96xf32> to vector<64x96xf32>
    %195 = arith.addf %193, %194 : vector<64x96xf32>
    %196 = vector.extract_strided_slice %195 {offsets = [0, 0], sizes = [64, 32], strides = [1, 1]} : vector<64x96xf32> to vector<64x32xf32>
    %197 = vector.shape_cast %196 : vector<64x32xf32> to vector<8x8x32xf32>
    %198 = vector.extract_strided_slice %195 {offsets = [0, 32], sizes = [64, 32], strides = [1, 1]} : vector<64x96xf32> to vector<64x32xf32>
    %199 = vector.shape_cast %198 : vector<64x32xf32> to vector<8x8x32xf32>
    %200 = vector.extract_strided_slice %195 {offsets = [0, 64], sizes = [64, 32], strides = [1, 1]} : vector<64x96xf32> to vector<64x32xf32>
    %201 = vector.shape_cast %200 : vector<64x32xf32> to vector<8x8x32xf32>
    %202 = vector.extract_strided_slice %197 {offsets = [0, 0, 0], sizes = [8, 8, 16], strides = [1, 1, 1]} : vector<8x8x32xf32> to vector<8x8x16xf32>
    %203 = arith.truncf %202 : vector<8x8x16xf32> to vector<8x8x16xbf16>
    %204 = vector.extract_strided_slice %199 {offsets = [0, 0, 0], sizes = [8, 8, 16], strides = [1, 1, 1]} : vector<8x8x32xf32> to vector<8x8x16xf32>
    %205 = arith.truncf %204 : vector<8x8x16xf32> to vector<8x8x16xbf16>
    %206 = vector.extract_strided_slice %201 {offsets = [0, 0, 0], sizes = [8, 8, 16], strides = [1, 1, 1]} : vector<8x8x32xf32> to vector<8x8x16xf32>
    %207 = arith.truncf %206 : vector<8x8x16xf32> to vector<8x8x16xbf16>
    "tpu.trace_start"() <{level = 10 : i32, message = "bqd,bkd->bqk"}> : () -> ()
    %cst_59 = arith.constant dense<0.000000e+00> : vector<8x8x8xf32>
    %208 = tpu.matmul %203, %205, %cst_59 {dimension_numbers = #tpu.dot_dimension_numbers<[2], [2], [1], [1], [0, 0, 0, 1, 1, 1], [0], [0]>} : vector<8x8x16xbf16>, vector<8x8x16xbf16>, vector<8x8x8xf32> -> vector<8x8x8xf32>
    "tpu.trace_stop"() : () -> ()
    %cst_60 = arith.constant 2.500000e-01 : f32
    %209 = vector.broadcast %cst_60 : f32 to vector<8x8x8xf32>
    %210 = arith.mulf %208, %209 : vector<8x8x8xf32>
    %211 = vector.broadcast %27 : vector<8x1x8xf32> to vector<8x8x8xf32>
    %212 = arith.addf %210, %211 : vector<8x8x8xf32>
    %cst_61 = arith.constant dense<0xFF800000> : vector<8x8xf32>
    %213 = vector.multi_reduction <maximumf>, %212, %cst_61 [2] : vector<8x8x8xf32> to vector<8x8xf32>
    %214 = vector.shape_cast %213 : vector<8x8xf32> to vector<8x8x1xf32>
    %215 = vector.broadcast %214 : vector<8x8x1xf32> to vector<8x8x8xf32>
    %216 = arith.subf %212, %215 : vector<8x8x8xf32>
    %217 = math.exp %216 : vector<8x8x8xf32>
    %cst_62 = arith.constant dense<0.000000e+00> : vector<8x8xf32>
    %218 = vector.multi_reduction <add>, %217, %cst_62 [2] : vector<8x8x8xf32> to vector<8x8xf32>
    %219 = vector.shape_cast %218 : vector<8x8xf32> to vector<8x8x1xf32>
    %220 = tpu.reciprocal %219 {approx = true} : vector<8x8x1xf32> -> vector<8x8x1xf32>
    %221 = vector.broadcast %220 : vector<8x8x1xf32> to vector<8x8x8xf32>
    %222 = arith.mulf %217, %221 : vector<8x8x8xf32>
    %223 = arith.truncf %222 : vector<8x8x8xf32> to vector<8x8x8xbf16>
    "tpu.trace_start"() <{level = 10 : i32, message = "bqk,bkd->bqd"}> : () -> ()
    %cst_63 = arith.constant dense<0.000000e+00> : vector<8x8x16xf32>
    %224 = tpu.matmul %223, %207, %cst_63 {dimension_numbers = #tpu.dot_dimension_numbers<[2], [1], [1], [2], [0, 0, 0, 1, 1, 2], [0], [0]>} : vector<8x8x8xbf16>, vector<8x8x16xbf16>, vector<8x8x16xf32> -> vector<8x8x16xf32>
    "tpu.trace_stop"() : () -> ()
    %c1_64 = arith.constant 1 : index
    %c0_65 = arith.constant 0 : index
    %c96_66 = arith.constant 96 : index
    %225 = vector.load %arg3[%c1_64, %c0_65, %c96_66] : memref<2x64x256xbf16, #tpu.memory_space<vmem>>, vector<1x16x32xbf16>
    %226 = vector.shape_cast %225 : vector<1x16x32xbf16> to vector<16x32xbf16>
    %227 = vector.shape_cast %224 : vector<8x8x16xf32> to vector<64x16xf32>
    %228 = arith.truncf %227 : vector<64x16xf32> to vector<64x16xbf16>
    %cst_67 = arith.constant dense<0.000000e+00> : vector<64x32xf32>
    %229 = tpu.matmul %228, %226, %cst_67 {dimension_numbers = #tpu.dot_dimension_numbers<[1], [0], [0], [1], [0, 0, 1, 1], [], []>} : vector<64x16xbf16>, vector<16x32xbf16>, vector<64x32xf32> -> vector<64x32xf32>
    %230 = vector.broadcast %183 : vector<1x32xf32> to vector<64x32xf32>
    %231 = arith.addf %230, %229 : vector<64x32xf32>
    %232 = vector.extract_strided_slice %197 {offsets = [0, 0, 16], sizes = [8, 8, 16], strides = [1, 1, 1]} : vector<8x8x32xf32> to vector<8x8x16xf32>
    %233 = arith.truncf %232 : vector<8x8x16xf32> to vector<8x8x16xbf16>
    %234 = vector.extract_strided_slice %199 {offsets = [0, 0, 16], sizes = [8, 8, 16], strides = [1, 1, 1]} : vector<8x8x32xf32> to vector<8x8x16xf32>
    %235 = arith.truncf %234 : vector<8x8x16xf32> to vector<8x8x16xbf16>
    %236 = vector.extract_strided_slice %201 {offsets = [0, 0, 16], sizes = [8, 8, 16], strides = [1, 1, 1]} : vector<8x8x32xf32> to vector<8x8x16xf32>
    %237 = arith.truncf %236 : vector<8x8x16xf32> to vector<8x8x16xbf16>
    "tpu.trace_start"() <{level = 10 : i32, message = "bqd,bkd->bqk"}> : () -> ()
    %cst_68 = arith.constant dense<0.000000e+00> : vector<8x8x8xf32>
    %238 = tpu.matmul %233, %235, %cst_68 {dimension_numbers = #tpu.dot_dimension_numbers<[2], [2], [1], [1], [0, 0, 0, 1, 1, 1], [0], [0]>} : vector<8x8x16xbf16>, vector<8x8x16xbf16>, vector<8x8x8xf32> -> vector<8x8x8xf32>
    "tpu.trace_stop"() : () -> ()
    %cst_69 = arith.constant 2.500000e-01 : f32
    %239 = vector.broadcast %cst_69 : f32 to vector<8x8x8xf32>
    %240 = arith.mulf %238, %239 : vector<8x8x8xf32>
    %241 = vector.broadcast %27 : vector<8x1x8xf32> to vector<8x8x8xf32>
    %242 = arith.addf %240, %241 : vector<8x8x8xf32>
    %cst_70 = arith.constant dense<0xFF800000> : vector<8x8xf32>
    %243 = vector.multi_reduction <maximumf>, %242, %cst_70 [2] : vector<8x8x8xf32> to vector<8x8xf32>
    %244 = vector.shape_cast %243 : vector<8x8xf32> to vector<8x8x1xf32>
    %245 = vector.broadcast %244 : vector<8x8x1xf32> to vector<8x8x8xf32>
    %246 = arith.subf %242, %245 : vector<8x8x8xf32>
    %247 = math.exp %246 : vector<8x8x8xf32>
    %cst_71 = arith.constant dense<0.000000e+00> : vector<8x8xf32>
    %248 = vector.multi_reduction <add>, %247, %cst_71 [2] : vector<8x8x8xf32> to vector<8x8xf32>
    %249 = vector.shape_cast %248 : vector<8x8xf32> to vector<8x8x1xf32>
    %250 = tpu.reciprocal %249 {approx = true} : vector<8x8x1xf32> -> vector<8x8x1xf32>
    %251 = vector.broadcast %250 : vector<8x8x1xf32> to vector<8x8x8xf32>
    %252 = arith.mulf %247, %251 : vector<8x8x8xf32>
    %253 = arith.truncf %252 : vector<8x8x8xf32> to vector<8x8x8xbf16>
    "tpu.trace_start"() <{level = 10 : i32, message = "bqk,bkd->bqd"}> : () -> ()
    %cst_72 = arith.constant dense<0.000000e+00> : vector<8x8x16xf32>
    %254 = tpu.matmul %253, %237, %cst_72 {dimension_numbers = #tpu.dot_dimension_numbers<[2], [1], [1], [2], [0, 0, 0, 1, 1, 2], [0], [0]>} : vector<8x8x8xbf16>, vector<8x8x16xbf16>, vector<8x8x16xf32> -> vector<8x8x16xf32>
    "tpu.trace_stop"() : () -> ()
    %c1_73 = arith.constant 1 : index
    %c16_74 = arith.constant 16 : index
    %c96_75 = arith.constant 96 : index
    %255 = vector.load %arg3[%c1_73, %c16_74, %c96_75] : memref<2x64x256xbf16, #tpu.memory_space<vmem>>, vector<1x16x32xbf16>
    %256 = vector.shape_cast %255 : vector<1x16x32xbf16> to vector<16x32xbf16>
    %257 = vector.shape_cast %254 : vector<8x8x16xf32> to vector<64x16xf32>
    %258 = arith.truncf %257 : vector<64x16xf32> to vector<64x16xbf16>
    %cst_76 = arith.constant dense<0.000000e+00> : vector<64x32xf32>
    %259 = tpu.matmul %258, %256, %cst_76 {dimension_numbers = #tpu.dot_dimension_numbers<[1], [0], [0], [1], [0, 0, 1, 1], [], []>} : vector<64x16xbf16>, vector<16x32xbf16>, vector<64x32xf32> -> vector<64x32xf32>
    %260 = arith.addf %231, %259 : vector<64x32xf32>
    %261 = arith.addf %179, %260 : vector<64x32xf32>
    %cst_77 = arith.constant dense<0.000000e+00> : vector<64xf32>
    %262 = vector.multi_reduction <add>, %261, %cst_77 [1] : vector<64x32xf32> to vector<64xf32>
    %263 = vector.shape_cast %262 : vector<64xf32> to vector<64x1xf32>
    %cst_78 = arith.constant 3.200000e+01 : f32
    %264 = vector.broadcast %cst_78 : f32 to vector<64x1xf32>
    %265 = arith.divf %263, %264 : vector<64x1xf32>
    %266 = vector.broadcast %265 : vector<64x1xf32> to vector<64x32xf32>
    %267 = arith.subf %261, %266 : vector<64x32xf32>
    %268 = arith.mulf %267, %267 : vector<64x32xf32>
    %cst_79 = arith.constant dense<0.000000e+00> : vector<64xf32>
    %269 = vector.multi_reduction <add>, %268, %cst_79 [1] : vector<64x32xf32> to vector<64xf32>
    %270 = vector.shape_cast %269 : vector<64xf32> to vector<64x1xf32>
    %cst_80 = arith.constant 3.200000e+01 : f32
    %271 = vector.broadcast %cst_80 : f32 to vector<64x1xf32>
    %272 = arith.divf %270, %271 : vector<64x1xf32>
    %273 = vector.broadcast %265 : vector<64x1xf32> to vector<64x32xf32>
    %274 = arith.subf %261, %273 : vector<64x32xf32>
    %cst_81 = arith.constant 9.99999974E-6 : f32
    %275 = vector.broadcast %cst_81 : f32 to vector<64x1xf32>
    %276 = arith.addf %272, %275 : vector<64x1xf32>
    %277 = math.rsqrt %276 : vector<64x1xf32>
    %278 = vector.broadcast %277 : vector<64x1xf32> to vector<64x32xf32>
    %279 = arith.mulf %274, %278 : vector<64x32xf32>
    %280 = vector.broadcast %186 : vector<1x32xf32> to vector<64x32xf32>
    %281 = arith.mulf %279, %280 : vector<64x32xf32>
    %282 = vector.broadcast %187 : vector<1x32xf32> to vector<64x32xf32>
    %283 = arith.addf %281, %282 : vector<64x32xf32>
    %c1_82 = arith.constant 1 : index
    %c0_83 = arith.constant 0 : index
    %c128_84 = arith.constant 128 : index
    %284 = vector.load %arg3[%c1_82, %c0_83, %c128_84] : memref<2x64x256xbf16, #tpu.memory_space<vmem>>, vector<1x32x64xbf16>
    %285 = vector.shape_cast %284 : vector<1x32x64xbf16> to vector<32x64xbf16>
    %c1_85 = arith.constant 1 : index
    %c0_86 = arith.constant 0 : index
    %c192_87 = arith.constant 192 : index
    %286 = vector.load %arg3[%c1_85, %c0_86, %c192_87] : memref<2x64x256xbf16, #tpu.memory_space<vmem>>, vector<1x64x32xbf16>
    %287 = vector.shape_cast %286 : vector<1x64x32xbf16> to vector<64x32xbf16>
    %288 = arith.truncf %283 : vector<64x32xf32> to vector<64x32xbf16>
    %cst_88 = arith.constant dense<0.000000e+00> : vector<64x64xf32>
    %289 = tpu.matmul %288, %285, %cst_88 {dimension_numbers = #tpu.dot_dimension_numbers<[1], [0], [0], [1], [0, 0, 1, 1], [], []>} : vector<64x32xbf16>, vector<32x64xbf16>, vector<64x64xf32> -> vector<64x64xf32>
    %290 = vector.broadcast %184 : vector<1x64xf32> to vector<64x64xf32>
    %291 = arith.addf %289, %290 : vector<64x64xf32>
    %292 = arith.mulf %291, %291 : vector<64x64xf32>
    %293 = arith.mulf %291, %292 : vector<64x64xf32>
    %cst_89 = arith.constant 4.471500e-02 : f32
    %294 = vector.broadcast %cst_89 : f32 to vector<64x64xf32>
    %295 = arith.mulf %294, %293 : vector<64x64xf32>
    %296 = arith.addf %291, %295 : vector<64x64xf32>
    %cst_90 = arith.constant 0.797884583 : f32
    %297 = vector.broadcast %cst_90 : f32 to vector<64x64xf32>
    %298 = arith.mulf %297, %296 : vector<64x64xf32>
    %299 = math.tanh %298 : vector<64x64xf32>
    %cst_91 = arith.constant 1.000000e+00 : f32
    %300 = vector.broadcast %cst_91 : f32 to vector<64x64xf32>
    %301 = arith.addf %300, %299 : vector<64x64xf32>
    %cst_92 = arith.constant 5.000000e-01 : f32
    %302 = vector.broadcast %cst_92 : f32 to vector<64x64xf32>
    %303 = arith.mulf %302, %301 : vector<64x64xf32>
    %304 = arith.mulf %291, %303 : vector<64x64xf32>
    %305 = arith.truncf %304 : vector<64x64xf32> to vector<64x64xbf16>
    %cst_93 = arith.constant dense<0.000000e+00> : vector<64x32xf32>
    %306 = tpu.matmul %305, %287, %cst_93 {dimension_numbers = #tpu.dot_dimension_numbers<[1], [0], [0], [1], [0, 0, 1, 1], [], []>} : vector<64x64xbf16>, vector<64x32xbf16>, vector<64x32xf32> -> vector<64x32xf32>
    %307 = vector.broadcast %185 : vector<1x32xf32> to vector<64x32xf32>
    %308 = arith.addf %306, %307 : vector<64x32xf32>
    %309 = arith.addf %283, %308 : vector<64x32xf32>
    %cst_94 = arith.constant dense<0.000000e+00> : vector<64xf32>
    %310 = vector.multi_reduction <add>, %309, %cst_94 [1] : vector<64x32xf32> to vector<64xf32>
    %311 = vector.shape_cast %310 : vector<64xf32> to vector<64x1xf32>
    %cst_95 = arith.constant 3.200000e+01 : f32
    %312 = vector.broadcast %cst_95 : f32 to vector<64x1xf32>
    %313 = arith.divf %311, %312 : vector<64x1xf32>
    %314 = vector.broadcast %313 : vector<64x1xf32> to vector<64x32xf32>
    %315 = arith.subf %309, %314 : vector<64x32xf32>
    %316 = arith.mulf %315, %315 : vector<64x32xf32>
    %cst_96 = arith.constant dense<0.000000e+00> : vector<64xf32>
    %317 = vector.multi_reduction <add>, %316, %cst_96 [1] : vector<64x32xf32> to vector<64xf32>
    %318 = vector.shape_cast %317 : vector<64xf32> to vector<64x1xf32>
    %cst_97 = arith.constant 3.200000e+01 : f32
    %319 = vector.broadcast %cst_97 : f32 to vector<64x1xf32>
    %320 = arith.divf %318, %319 : vector<64x1xf32>
    %321 = vector.broadcast %313 : vector<64x1xf32> to vector<64x32xf32>
    %322 = arith.subf %309, %321 : vector<64x32xf32>
    %cst_98 = arith.constant 9.99999974E-6 : f32
    %323 = vector.broadcast %cst_98 : f32 to vector<64x1xf32>
    %324 = arith.addf %320, %323 : vector<64x1xf32>
    %325 = math.rsqrt %324 : vector<64x1xf32>
    %326 = vector.broadcast %325 : vector<64x1xf32> to vector<64x32xf32>
    %327 = arith.mulf %322, %326 : vector<64x32xf32>
    %328 = vector.broadcast %188 : vector<1x32xf32> to vector<64x32xf32>
    %329 = arith.mulf %327, %328 : vector<64x32xf32>
    %330 = vector.broadcast %189 : vector<1x32xf32> to vector<64x32xf32>
    %331 = arith.addf %329, %330 : vector<64x32xf32>
    %332 = vector.shape_cast %331 : vector<64x32xf32> to vector<8x8x32xf32>
    %333 = vector.extract_strided_slice %332 {offsets = [0, 0, 0], sizes = [8, 1, 32], strides = [1, 1, 1]} : vector<8x8x32xf32> to vector<8x1x32xf32>
    %334 = vector.shape_cast %333 : vector<8x1x32xf32> to vector<8x32xf32>
    %c0_99 = arith.constant 0 : index
    %c0_100 = arith.constant 0 : index
    %335 = vector.load %arg5[%c0_99, %c0_100] : memref<40x128xf32, #tpu.memory_space<vmem>>, vector<32x128xf32>
    %c32 = arith.constant 32 : index
    %c0_101 = arith.constant 0 : index
    %336 = vector.load %arg5[%c32, %c0_101] : memref<40x128xf32, #tpu.memory_space<vmem>>, vector<1x128xf32>
    %cst_102 = arith.constant dense<0.000000e+00> : vector<8x128xf32>
    %337 = tpu.matmul %334, %335, %cst_102 {dimension_numbers = #tpu.dot_dimension_numbers<[1], [0], [0], [1], [0, 0, 1, 1], [], []>} : vector<8x32xf32>, vector<32x128xf32>, vector<8x128xf32> -> vector<8x128xf32>
    %338 = vector.broadcast %336 : vector<1x128xf32> to vector<8x128xf32>
    %339 = arith.addf %337, %338 : vector<8x128xf32>
    %c0_103 = arith.constant 0 : index
    %c0_104 = arith.constant 0 : index
    %340 = vector.load %arg6[%c0_103, %c0_104] : memref<8x128xf32, #tpu.memory_space<vmem>>, vector<8x128xf32>
    tpu.vector_store %arg6[%c0_103, %c0_104], %339 {strides = array<i32>} : memref<8x128xf32, #tpu.memory_space<vmem>>, vector<8x128xf32>,
    return
  }
  func.func @transform_0(%arg0: i32) -> (i32, i32, i32) {
    %c0_i32 = arith.constant 0 : i32
    %c0_i32_0 = arith.constant 0 : i32
    %c0_i32_1 = arith.constant 0 : i32
    return %arg0, %c0_i32, %c0_i32_0 : i32, i32, i32
  }
  func.func @transform_1(%arg0: i32) -> (i32, i32) {
    %c0_i32 = arith.constant 0 : i32
    %c0_i32_0 = arith.constant 0 : i32
    return %arg0, %c0_i32 : i32, i32
  }
  func.func @transform_2(%arg0: i32) -> (i32, i32, i32) {
    %c0_i32 = arith.constant 0 : i32
    %c0_i32_0 = arith.constant 0 : i32
    %c0_i32_1 = arith.constant 0 : i32
    %c0_i32_2 = arith.constant 0 : i32
    return %c0_i32, %c0_i32_0, %c0_i32_1 : i32, i32, i32
  }
  func.func @transform_3(%arg0: i32) -> (i32, i32, i32) {
    %c0_i32 = arith.constant 0 : i32
    %c0_i32_0 = arith.constant 0 : i32
    %c0_i32_1 = arith.constant 0 : i32
    %c0_i32_2 = arith.constant 0 : i32
    return %c0_i32, %c0_i32_0, %c0_i32_1 : i32, i32, i32
  }
  func.func @transform_4(%arg0: i32) -> (i32, i32) {
    %c0_i32 = arith.constant 0 : i32
    %c0_i32_0 = arith.constant 0 : i32
    %c0_i32_1 = arith.constant 0 : i32
    return %c0_i32, %c0_i32_0 : i32, i32
  }
  func.func @transform_5(%arg0: i32) -> (i32, i32) {
    %c0_i32 = arith.constant 0 : i32
    %c0_i32_0 = arith.constant 0 : i32
    return %arg0, %c0_i32 : i32, i32
  }
}

</mosaic_0001>

<llo_original>
// kernel: encoder_forward.1
$region0: #{encoder_forward.1}
  #allocation0 [shape = 'u32[]', space=smem, size = 0x4, offset = 0x4, fixed_abs, tag = 'smem constant byte address 0x4 - core index']
  #allocation1 [shape = 'u32[144,128]{1,0:T(1,128)}', space=vmem, size = 0x12000, scoped, tag = 'internal scratch']
  %s0 = inlined_call_operand.vmem [shape: f32[8,8,32], index: 0, kind: input, shape index: {}]
  %s1 = inlined_call_operand.vmem [shape: f32[8,128], index: 1, kind: input, shape index: {}]
  %s2 = inlined_call_operand.vmem [shape: bf16[2,64,256], index: 2, kind: input, shape index: {}]
  %s3 = inlined_call_operand.vmem [shape: f32[2,8,128], index: 3, kind: input, shape index: {}]
  %s4 = inlined_call_operand.vmem [shape: f32[40,128], index: 4, kind: input, shape index: {}]
  %s5 = inlined_call_operand.vmem [shape: f32[8,128], index: 5, kind: output, shape index: {}]
  %s6 = sld [smem:[#allocation0]]
  $region30: #{encoder_forward.1} parent=0
    _
  %s8 = ssub.s32 1, %s6
  %s9 = scalar_select 0, %s8, %s6
  // Predicated region
  $region2: #{encoder_forward.1} parent=0 // pred_check
    _
  $region3: #{encoder_forward.1} parent=0 // pred_check_branch
    %11 = sbr.rel (0) target = $region5
  $region4: #{encoder_forward.1} parent=0 // pred_region
    _
  $region5: #{encoder_forward.1} parent=0 // pred_fallthru
    _
  // Predicated region
  $region6: #{encoder_forward.1} parent=0 // pred_check
    _
  $region7: #{encoder_forward.1} parent=0 // pred_check_branch
    %13 = sbr.rel (0) target = $region9
  $region8: #{encoder_forward.1} parent=0 // pred_region
    _
  $region9: #{encoder_forward.1} parent=0 // pred_fallthru
    _
  // Predicated region
  $region10: #{encoder_forward.1} parent=0 // pred_check
    _
  $region11: #{encoder_forward.1} parent=0 // pred_check_branch
    %15 = sbr.rel (0) target = $region13
  $region12: #{encoder_forward.1} parent=0 // pred_region
    _
  $region13: #{encoder_forward.1} parent=0 // pred_fallthru
    _
  // Predicated region
  $region14: #{encoder_forward.1} parent=0 // pred_check
    _
  $region15: #{encoder_forward.1} parent=0 // pred_check_branch
    %17 = sbr.rel (0) target = $region17
  $region16: #{encoder_forward.1} parent=0 // pred_region
    _
  $region17: #{encoder_forward.1} parent=0 // pred_fallthru
    _
  // Predicated region
  $region18: #{encoder_forward.1} parent=0 // pred_check
    _
  $region19: #{encoder_forward.1} parent=0 // pred_check_branch
    %19 = sbr.rel (0) target = $region21
  $region20: #{encoder_forward.1} parent=0 // pred_region
    _
  $region21: #{encoder_forward.1} parent=0 // pred_fallthru
    _
  %v21 = vld [vmem:[%s4 + $0x21] sm:$0x1]
  %v22 = vld [vmem:[%s4 + $0x22] sm:$0x1]
  %v23 = vld [vmem:[%s0] sm:$0xff]
  %v24 = vld [vmem:[%s0 + $0x8] sm:$0xff]
  %v25 = vld [vmem:[%s0 + $0x10] sm:$0xff]
  %v26 = vld [vmem:[%s0 + $0x18] sm:$0xff]
  %v27 = vld [vmem:[%s0 + $0x20] sm:$0xff]
  %v28 = vld [vmem:[%s0 + $0x28] sm:$0xff]
  %v29 = vld [vmem:[%s0 + $0x30] sm:$0xff]
  %v30 = vld [vmem:[%s0 + $0x38] sm:$0xff]
  %vm31 = vcmask 261120
  %v32 = vsel %vm31, %v23, 0.0
  %33 = vadd.xlane.f32.xlu0 %v32
  %v34 = vpop.xlane.xlu0 %33
  %v35 = vsel %vm31, %v24, 0.0
  %36 = vadd.xlane.f32.xlu0 %v35
  %v37 = vpop.xlane.xlu0 %36
  %v38 = vsel %vm31, %v25, 0.0
  %39 = vadd.xlane.f32.xlu0 %v38
  %v40 = vpop.xlane.xlu0 %39
  %v41 = vsel %vm31, %v26, 0.0
  %42 = vadd.xlane.f32.xlu0 %v41
  %v43 = vpop.xlane.xlu0 %42
  %v44 = vsel %vm31, %v27, 0.0
  %45 = vadd.xlane.f32.xlu0 %v44
  %v46 = vpop.xlane.xlu0 %45
  %v47 = vsel %vm31, %v28, 0.0
  %48 = vadd.xlane.f32.xlu0 %v47
  %v49 = vpop.xlane.xlu0 %48
  %v50 = vsel %vm31, %v29, 0.0
  %51 = vadd.xlane.f32.xlu0 %v50
  %v52 = vpop.xlane.xlu0 %51
  %v53 = vsel %vm31, %v30, 0.0
  %54 = vadd.xlane.f32.xlu0 %v53
  %v55 = vpop.xlane.xlu0 %54
  %v56 = vrcp.pop 32.0
  %v57 = vmul.f32 %v34, %v56
  %v58 = vmul.f32 %v37, %v56
  %v59 = vmul.f32 %v40, %v56
  %v60 = vmul.f32 %v43, %v56
  %v61 = vmul.f32 %v46, %v56
  %v62 = vmul.f32 %v49, %v56
  %v63 = vmul.f32 %v52, %v56
  %v64 = vmul.f32 %v55, %v56
  %v65 = vsub.f32 %v23, %v57
  %v66 = vsub.f32 %v24, %v58
  %v67 = vsub.f32 %v25, %v59
  %v68 = vsub.f32 %v26, %v60
  %v69 = vsub.f32 %v27, %v61
  %v70 = vsub.f32 %v28, %v62
  %v71 = vsub.f32 %v29, %v63
  %v72 = vsub.f32 %v30, %v64
  %v73 = vmul.f32 %v65, %v65
  %v74 = vmul.f32 %v66, %v66
  %v75 = vmul.f32 %v67, %v67
  %v76 = vmul.f32 %v68, %v68
  %v77 = vmul.f32 %v69, %v69
  %v78 = vmul.f32 %v70, %v70
  %v79 = vmul.f32 %v71, %v71
  %v80 = vmul.f32 %v72, %v72
  %v81 = vsel %vm31, %v73, 0.0
  %82 = vadd.xlane.f32.xlu0 %v81
  %v83 = vpop.xlane.xlu0 %82
  %v84 = vsel %vm31, %v74, 0.0
  %85 = vadd.xlane.f32.xlu0 %v84
  %v86 = vpop.xlane.xlu0 %85
  %v87 = vsel %vm31, %v75, 0.0
  %88 = vadd.xlane.f32.xlu0 %v87
  %v89 = vpop.xlane.xlu0 %88
  %v90 = vsel %vm31, %v76, 0.0
  %91 = vadd.xlane.f32.xlu0 %v90
  %v92 = vpop.xlane.xlu0 %91
  %v93 = vsel %vm31, %v77, 0.0
  %94 = vadd.xlane.f32.xlu0 %v93
  %v95 = vpop.xlane.xlu0 %94
  %v96 = vsel %vm31, %v78, 0.0
  %97 = vadd.xlane.f32.xlu0 %v96
  %v98 = vpop.xlane.xlu0 %97
  %v99 = vsel %vm31, %v79, 0.0
  %100 = vadd.xlane.f32.xlu0 %v99
  %v101 = vpop.xlane.xlu0 %100
  %v102 = vsel %vm31, %v80, 0.0
  %103 = vadd.xlane.f32.xlu0 %v102
  %v104 = vpop.xlane.xlu0 %103
  %v105 = vmul.f32 %v83, %v56
  %v106 = vmul.f32 %v86, %v56
  %v107 = vmul.f32 %v89, %v56
  %v108 = vmul.f32 %v92, %v56
  %v109 = vmul.f32 %v95, %v56
  %v110 = vmul.f32 %v98, %v56
  %v111 = vmul.f32 %v101, %v56
  %v112 = vmul.f32 %v104, %v56
  %v113 = vadd.f32 %v105, 1e-05
  %v114 = vadd.f32 %v106, 1e-05
  %v115 = vadd.f32 %v107, 1e-05
  %v116 = vadd.f32 %v108, 1e-05
  %v117 = vadd.f32 %v109, 1e-05
  %v118 = vadd.f32 %v110, 1e-05
  %v119 = vadd.f32 %v111, 1e-05
  %v120 = vadd.f32 %v112, 1e-05
  %v121 = vrsqrt.pop %v113
  %v122 = vrsqrt.pop %v114
  %v123 = vrsqrt.pop %v115
  %v124 = vrsqrt.pop %v116
  %v125 = vrsqrt.pop %v117
  %v126 = vrsqrt.pop %v118
  %v127 = vrsqrt.pop %v119
  %v128 = vrsqrt.pop %v120
  %v129 = vmul.f32 %v65, %v121
  %v130 = vmul.f32 %v66, %v122
  %v131 = vmul.f32 %v67, %v123
  %v132 = vmul.f32 %v68, %v124
  %v133 = vmul.f32 %v69, %v125
  %v134 = vmul.f32 %v70, %v126
  %v135 = vmul.f32 %v71, %v127
  %v136 = vmul.f32 %v72, %v128
  %v137 = vlaneseq
  %v138 = vshrl.u32 %v137, 7
  %v139 = vsub.s32 0, %v138
  %v140 = vrot.slane %v21, %v139
  %v141 = vmul.f32 %v129, %v140
  %v142 = vmul.f32 %v130, %v140
  %v143 = vmul.f32 %v131, %v140
  %v144 = vmul.f32 %v132, %v140
  %v145 = vmul.f32 %v133, %v140
  %v146 = vmul.f32 %v134, %v140
  %v147 = vmul.f32 %v135, %v140
  %v148 = vmul.f32 %v136, %v140
  %v149 = vlaneseq
  %v150 = vshrl.u32 %v149, 7
  %v151 = vsub.s32 0, %v150
  %v152 = vrot.slane %v22, %v151
  %v153 = vadd.f32 %v141, %v152
  %v154 = vadd.f32 %v142, %v152
  %v155 = vadd.f32 %v143, %v152
  %v156 = vadd.f32 %v144, %v152
  %v157 = vadd.f32 %v145, %v152
  %v158 = vadd.f32 %v146, %v152
  %v159 = vadd.f32 %v147, %v152
  %v160 = vadd.f32 %v148, %v152
  %v161 = vld [vmem:[%s1] sm:$0xff]
  %v163 = vcombine.high %v161, %v161
  %v165 = vunpack.c.l.s4 1966171168
  %v166 = vunpack.c.0.s8 %v165
  %v167 = vlaneseq
  %v168 = vshrl.u32 %v167, 7
  %v169 = vsub.s32 %v166, %v168
  %v170 = vrot.slane %v161, %v169
  %v172 = vunpack.c.l.s4 1966171168
  %v173 = vunpack.c.0.s8 %v172
  %v174 = vlaneseq
  %v175 = vshrl.u32 %v174, 7
  %v176 = vsub.s32 %v173, %v175
  %v177 = vrot.slane %v163, %v176
  %v178 = vcombine.high %v170, %v170
  %v179 = vcombine.high %v177, %v177
  %v181 = vunpack.c.l.s4 1966171168
  %v182 = vunpack.c.0.s8 %v181
  %v183 = vlaneseq
  %v184 = vshrl.u32 %v183, 7
  %v185 = vsub.s32 %v182, %v184
  %v186 = vrot.slane %v170, %v185
  %v188 = vunpack.c.l.s4 1966171168
  %v189 = vunpack.c.0.s8 %v188
  %v190 = vlaneseq
  %v191 = vshrl.u32 %v190, 7
  %v192 = vsub.s32 %v189, %v191
  %v193 = vrot.slane %v177, %v192
  %v195 = vunpack.c.l.s4 1966171168
  %v196 = vunpack.c.0.s8 %v195
  %v197 = vlaneseq
  %v198 = vshrl.u32 %v197, 7
  %v199 = vsub.s32 %v196, %v198
  %v200 = vrot.slane %v178, %v199
  %v202 = vunpack.c.l.s4 1966171168
  %v203 = vunpack.c.0.s8 %v202
  %v204 = vlaneseq
  %v205 = vshrl.u32 %v204, 7
  %v206 = vsub.s32 %v203, %v205
  %v207 = vrot.slane %v179, %v206
  %v208 = vcombine.high %v186, %v186
  %v209 = vcombine.high %v193, %v193
  %v210 = vcombine.high %v200, %v200
  %v211 = vcombine.high %v207, %v207
  %v212 = vld [vmem:[%s3] sm:$0xff]
  %v213 = vld [vmem:[%s2] sm:$0xf]
  %v214 = vld [vmem:[%s2 + $0x8] sm:$0xf]
  %v215 = vld [vmem:[%s2 + $0x10] sm:$0xf]
  %v216 = vld [vmem:[%s2 + $0x18] sm:$0xf]
  %v217 = vpack.c.bf16 %v154, %v153
  %v218 = vpack.c.bf16 %v156, %v155
  %v219 = vpack.c.bf16 %v158, %v157
  %v220 = vpack.c.bf16 %v160, %v159
  %v221 = vlaneseq
  %v222 = vshrl.u32 %v221, 7
  %v223 = vsub.s32 0, %v222
  %v224 = vrot.slane %v212, %v223
  %v229 = vunpack.c.l.b16 %v213
  %v230 = vunpack.c.l.b16 %v214
  %v231 = vunpack.c.l.b16 %v215
  %v232 = vunpack.c.l.b16 %v216
  %v233 = vpack.c.b16 %v230, %v229
  %v234 = vpack.c.b16 %v232, %v231
  %v238 = vsel %vm31, %v217, 0
  %v241 = vsel %vm31, %v218, 0
  %v244 = vsel %vm31, %v219, 0
  %v247 = vsel %vm31, %v220, 0
  %249 = vmatprep.subr.bf16.mxu0 0
  %250 = vmatpush1.bf16.msra.mxu0 0
  %251 = vmatprep.subr.bf16.mxu0 0
  %252 = vmatpush1.bf16.msra.mxu0 0
  %253 = vmatprep.subr.bf16.mxu0 0
  %254 = vmatpush1.bf16.msra.mxu0 0
  %255 = vmatprep.subr.bf16.mxu0 0
  %256 = vmatpush1.bf16.msra.mxu0 0
  %257 = vmatprep.subr.bf16.mxu0 0
  %258 = vmatpush1.bf16.msra.mxu0 0
  %259 = vmatprep.subr.bf16.mxu0 0
  %260 = vmatpush1.bf16.msra.mxu0 0
  %261 = vmatprep.subr.bf16.mxu0 0
  %262 = vmatpush1.bf16.msra.mxu0 %v234
  %263 = vmatprep.subr.bf16.mxu0 0
  %264 = vmatpush1.bf16.msra.mxu0 %v233
  %265 = vmatprep.subr.bf16.mxu0 0
  %266 = vmatpush2.bf16.msra.mxu0 0
  %267 = vmatprep.subr.bf16.mxu0 0
  %268 = vmatpush2.bf16.msra.mxu0 0
  %269 = vmatprep.subr.bf16.mxu0 0
  %270 = vmatpush2.bf16.msra.mxu0 0
  %271 = vmatprep.subr.bf16.mxu0 0
  %272 = vmatpush2.bf16.msra.mxu0 0
  %273 = vmatprep.subr.bf16.mxu0 0
  %274 = vmatpush2.bf16.msra.mxu0 0
  %275 = vmatprep.subr.bf16.mxu0 0
  %276 = vmatpush2.bf16.msra.mxu0 0
  %277 = vmatprep.subr.bf16.mxu0 0
  %278 = vmatpush2.bf16.msra.mxu0 0
  %279 = vmatprep.subr.bf16.mxu0 0
  %280 = vmatpush2.bf16.msra.mxu0 0
  %281 = vmatprep.mubr.bf16.mxu0 0
  %282 = vmatmul.mubr.bf16.gmra.mxu0 %v238
  %v283 = vpop.f32.mrf.mxu0
  %v284 = vadd.f32 %v224, %v283
  %v285 = vpop.f32.mrf.mxu0
  %v286 = vpop.f32.mrf.mxu0
  %v287 = vadd.f32 %v224, %v286
  %v288 = vpop.f32.mrf.mxu0
  %289 = vmatprep.mubr.bf16.mxu0 0
  %290 = vmatmul.mubr.bf16.gmra.mxu0 %v241
  %v291 = vpop.f32.mrf.mxu0
  %v292 = vadd.f32 %v224, %v291
  %v293 = vpop.f32.mrf.mxu0
  %v294 = vpop.f32.mrf.mxu0
  %v295 = vadd.f32 %v224, %v294
  %v296 = vpop.f32.mrf.mxu0
  %297 = vmatprep.mubr.bf16.mxu0 0
  %298 = vmatmul.mubr.bf16.gmra.mxu0 %v244
  %v299 = vpop.f32.mrf.mxu0
  %v300 = vadd.f32 %v224, %v299
  %v301 = vpop.f32.mrf.mxu0
  %v302 = vpop.f32.mrf.mxu0
  %v303 = vadd.f32 %v224, %v302
  %v304 = vpop.f32.mrf.mxu0
  %305 = vmatprep.mubr.bf16.mxu0 0
  %306 = vmatmul.mubr.bf16.gmra.mxu0 %v247
  %v307 = vpop.f32.mrf.mxu0
  %v308 = vadd.f32 %v224, %v307
  %v309 = vpop.f32.mrf.mxu0
  %v310 = vpop.f32.mrf.mxu0
  %v311 = vadd.f32 %v224, %v310
  %v312 = vpop.f32.mrf.mxu0
  %313 = vdwg.mxu0
  %v314 = vpack.c.bf16 %v284, %v284
  %v315 = vpack.c.bf16 %v287, %v287
  %v316 = vpack.c.bf16 %v292, %v292
  %v317 = vpack.c.bf16 %v295, %v295
  %v318 = vpack.c.bf16 %v300, %v300
  %v319 = vpack.c.bf16 %v303, %v303
  %v320 = vpack.c.bf16 %v308, %v308
  %v321 = vpack.c.bf16 %v311, %v311
  %323 = vrot.lane.b32.xlu0 %v314, 96
  %v324 = vpop.permute.xlu0 %323
  %vm325 = vcmask 130048
  %v327 = vsel %vm325, %v314, 0
  %v330 = vsel %vm325, %v324, 0
  %332 = vmatprep.subr.bf16.mxu0 0
  %333 = vmatpush1.bf16.xpose.msra.mxu0 0
  %334 = vmatprep.subr.bf16.mxu0 0
  %335 = vmatpush1.bf16.xpose.msra.mxu0 0
  %336 = vmatprep.subr.bf16.mxu0 0
  %337 = vmatpush1.bf16.xpose.msra.mxu0 0
  %338 = vmatprep.subr.bf16.mxu0 0
  %339 = vmatpush1.bf16.xpose.msra.mxu0 0
  %340 = vmatprep.subr.bf16.mxu0 0
  %341 = vmatpush1.bf16.xpose.msra.mxu0 0
  %342 = vmatprep.subr.bf16.mxu0 0
  %343 = vmatpush1.bf16.xpose.msra.mxu0 0
  %344 = vmatprep.subr.bf16.mxu0 0
  %345 = vmatpush1.bf16.xpose.msra.mxu0 0
  %346 = vmatprep.subr.bf16.mxu0 0
  %347 = vmatpush1.bf16.xpose.msra.mxu0 %v330
  %348 = vmatprep.subr.bf16.mxu0 0
  %349 = vmatpush2.bf16.xpose.msra.mxu0 0
  %350 = vmatprep.subr.bf16.mxu0 0
  %351 = vmatpush2.bf16.xpose.msra.mxu0 0
  %352 = vmatprep.subr.bf16.mxu0 0
  %353 = vmatpush2.bf16.xpose.msra.mxu0 0
  %354 = vmatprep.subr.bf16.mxu0 0
  %355 = vmatpush2.bf16.xpose.msra.mxu0 0
  %356 = vmatprep.subr.bf16.mxu0 0
  %357 = vmatpush2.bf16.xpose.msra.mxu0 0
  %358 = vmatprep.subr.bf16.mxu0 0
  %359 = vmatpush2.bf16.xpose.msra.mxu0 0
  %360 = vmatprep.subr.bf16.mxu0 0
  %361 = vmatpush2.bf16.xpose.msra.mxu0 0
  %362 = vmatprep.subr.bf16.mxu0 0
  %363 = vmatpush2.bf16.xpose.msra.mxu0 0
  %364 = vmatprep.mubr.bf16.mxu0 0
  %365 = vmatmul.mubr.bf16.gmra.mxu0 %v327
  %v366 = vpop.f32.mrf.mxu0
  %v367 = vadd.f32 0.0, %v366
  %v368 = vpop.f32.mrf.mxu0
  %v369 = vpop.f32.mrf.mxu0
  %v370 = vpop.f32.mrf.mxu0
  %371 = vdwg.mxu0
  %373 = vrot.lane.b32.xlu0 %v315, 96
  %v374 = vpop.permute.xlu0 %373
  %v376 = vsel %vm325, %v315, 0
  %v379 = vsel %vm325, %v374, 0
  %381 = vmatprep.subr.bf16.mxu0 0
  %382 = vmatpush1.bf16.xpose.msra.mxu0 0
  %383 = vmatprep.subr.bf16.mxu0 0
  %384 = vmatpush1.bf16.xpose.msra.mxu0 0
  %385 = vmatprep.subr.bf16.mxu0 0
  %386 = vmatpush1.bf16.xpose.msra.mxu0 0
  %387 = vmatprep.subr.bf16.mxu0 0
  %388 = vmatpush1.bf16.xpose.msra.mxu0 0
  %389 = vmatprep.subr.bf16.mxu0 0
  %390 = vmatpush1.bf16.xpose.msra.mxu0 0
  %391 = vmatprep.subr.bf16.mxu0 0
  %392 = vmatpush1.bf16.xpose.msra.mxu0 0
  %393 = vmatprep.subr.bf16.mxu0 0
  %394 = vmatpush1.bf16.xpose.msra.mxu0 0
  %395 = vmatprep.subr.bf16.mxu0 0
  %396 = vmatpush1.bf16.xpose.msra.mxu0 %v379
  %397 = vmatprep.subr.bf16.mxu0 0
  %398 = vmatpush2.bf16.xpose.msra.mxu0 0
  %399 = vmatprep.subr.bf16.mxu0 0
  %400 = vmatpush2.bf16.xpose.msra.mxu0 0
  %401 = vmatprep.subr.bf16.mxu0 0
  %402 = vmatpush2.bf16.xpose.msra.mxu0 0
  %403 = vmatprep.subr.bf16.mxu0 0
  %404 = vmatpush2.bf16.xpose.msra.mxu0 0
  %405 = vmatprep.subr.bf16.mxu0 0
  %406 = vmatpush2.bf16.xpose.msra.mxu0 0
  %407 = vmatprep.subr.bf16.mxu0 0
  %408 = vmatpush2.bf16.xpose.msra.mxu0 0
  %409 = vmatprep.subr.bf16.mxu0 0
  %410 = vmatpush2.bf16.xpose.msra.mxu0 0
  %411 = vmatprep.subr.bf16.mxu0 0
  %412 = vmatpush2.bf16.xpose.msra.mxu0 0
  %413 = vmatprep.mubr.bf16.mxu0 0
  %414 = vmatmul.mubr.bf16.gmra.mxu0 %v376
  %v415 = vpop.f32.mrf.mxu0
  %v416 = vadd.f32 0.0, %v415
  %v417 = vpop.f32.mrf.mxu0
  %v418 = vpop.f32.mrf.mxu0
  %v419 = vpop.f32.mrf.mxu0
  %420 = vdwg.mxu0
  %422 = vrot.lane.b32.xlu0 %v316, 96
  %v423 = vpop.permute.xlu0 %422
  %v425 = vsel %vm325, %v316, 0
  %v428 = vsel %vm325, %v423, 0
  %430 = vmatprep.subr.bf16.mxu0 0
  %431 = vmatpush1.bf16.xpose.msra.mxu0 0
  %432 = vmatprep.subr.bf16.mxu0 0
  %433 = vmatpush1.bf16.xpose.msra.mxu0 0
  %434 = vmatprep.subr.bf16.mxu0 0
  %435 = vmatpush1.bf16.xpose.msra.mxu0 0
  %436 = vmatprep.subr.bf16.mxu0 0
  %437 = vmatpush1.bf16.xpose.msra.mxu0 0
  %438 = vmatprep.subr.bf16.mxu0 0
  %439 = vmatpush1.bf16.xpose.msra.mxu0 0
  %440 = vmatprep.subr.bf16.mxu0 0
  %441 = vmatpush1.bf16.xpose.msra.mxu0 0
  %442 = vmatprep.subr.bf16.mxu0 0
  %443 = vmatpush1.bf16.xpose.msra.mxu0 0
  %444 = vmatprep.subr.bf16.mxu0 0
  %445 = vmatpush1.bf16.xpose.msra.mxu0 %v428
  %446 = vmatprep.subr.bf16.mxu0 0
  %447 = vmatpush2.bf16.xpose.msra.mxu0 0
  %448 = vmatprep.subr.bf16.mxu0 0
  %449 = vmatpush2.bf16.xpose.msra.mxu0 0
  %450 = vmatprep.subr.bf16.mxu0 0
  %451 = vmatpush2.bf16.xpose.msra.mxu0 0
  %452 = vmatprep.subr.bf16.mxu0 0
  %453 = vmatpush2.bf16.xpose.msra.mxu0 0
  %454 = vmatprep.subr.bf16.mxu0 0
  %455 = vmatpush2.bf16.xpose.msra.mxu0 0
  %456 = vmatprep.subr.bf16.mxu0 0
  %457 = vmatpush2.bf16.xpose.msra.mxu0 0
  %458 = vmatprep.subr.bf16.mxu0 0
  %459 = vmatpush2.bf16.xpose.msra.mxu0 0
  %460 = vmatprep.subr.bf16.mxu0 0
  %461 = vmatpush2.bf16.xpose.msra.mxu0 0
  %462 = vmatprep.mubr.bf16.mxu0 0
  %463 = vmatmul.mubr.bf16.gmra.mxu0 %v425
  %v464 = vpop.f32.mrf.mxu0
  %v465 = vadd.f32 0.0, %v464
  %v466 = vpop.f32.mrf.mxu0
  %v467 = vpop.f32.mrf.mxu0
  %v468 = vpop.f32.mrf.mxu0
  %469 = vdwg.mxu0
  %471 = vrot.lane.b32.xlu0 %v317, 96
  %v472 = vpop.permute.xlu0 %471
  %v474 = vsel %vm325, %v317, 0
  %v477 = vsel %vm325, %v472, 0
  %479 = vmatprep.subr.bf16.mxu0 0
  %480 = vmatpush1.bf16.xpose.msra.mxu0 0
  %481 = vmatprep.subr.bf16.mxu0 0
  %482 = vmatpush1.bf16.xpose.msra.mxu0 0
  %483 = vmatprep.subr.bf16.mxu0 0
  %484 = vmatpush1.bf16.xpose.msra.mxu0 0
  %485 = vmatprep.subr.bf16.mxu0 0
  %486 = vmatpush1.bf16.xpose.msra.mxu0 0
  %487 = vmatprep.subr.bf16.mxu0 0
  %488 = vmatpush1.bf16.xpose.msra.mxu0 0
  %489 = vmatprep.subr.bf16.mxu0 0
  %490 = vmatpush1.bf16.xpose.msra.mxu0 0
  %491 = vmatprep.subr.bf16.mxu0 0
  %492 = vmatpush1.bf16.xpose.msra.mxu0 0
  %493 = vmatprep.subr.bf16.mxu0 0
  %494 = vmatpush1.bf16.xpose.msra.mxu0 %v477
  %495 = vmatprep.subr.bf16.mxu0 0
  %496 = vmatpush2.bf16.xpose.msra.mxu0 0
  %497 = vmatprep.subr.bf16.mxu0 0
  %498 = vmatpush2.bf16.xpose.msra.mxu0 0
  %499 = vmatprep.subr.bf16.mxu0 0
  %500 = vmatpush2.bf16.xpose.msra.mxu0 0
  %501 = vmatprep.subr.bf16.mxu0 0
  %502 = vmatpush2.bf16.xpose.msra.mxu0 0
  %503 = vmatprep.subr.bf16.mxu0 0
  %504 = vmatpush2.bf16.xpose.msra.mxu0 0
  %505 = vmatprep.subr.bf16.mxu0 0
  %506 = vmatpush2.bf16.xpose.msra.mxu0 0
  %507 = vmatprep.subr.bf16.mxu0 0
  %508 = vmatpush2.bf16.xpose.msra.mxu0 0
  %509 = vmatprep.subr.bf16.mxu0 0
  %510 = vmatpush2.bf16.xpose.msra.mxu0 0
  %511 = vmatprep.mubr.bf16.mxu0 0
  %512 = vmatmul.mubr.bf16.gmra.mxu0 %v474
  %v513 = vpop.f32.mrf.mxu0
  %v514 = vadd.f32 0.0, %v513
  %v515 = vpop.f32.mrf.mxu0
  %v516 = vpop.f32.mrf.mxu0
  %v517 = vpop.f32.mrf.mxu0
  %518 = vdwg.mxu0
  %520 = vrot.lane.b32.xlu0 %v318, 96
  %v521 = vpop.permute.xlu0 %520
  %v523 = vsel %vm325, %v318, 0
  %v526 = vsel %vm325, %v521, 0
  %528 = vmatprep.subr.bf16.mxu0 0
  %529 = vmatpush1.bf16.xpose.msra.mxu0 0
  %530 = vmatprep.subr.bf16.mxu0 0
  %531 = vmatpush1.bf16.xpose.msra.mxu0 0
  %532 = vmatprep.subr.bf16.mxu0 0
  %533 = vmatpush1.bf16.xpose.msra.mxu0 0
  %534 = vmatprep.subr.bf16.mxu0 0
  %535 = vmatpush1.bf16.xpose.msra.mxu0 0
  %536 = vmatprep.subr.bf16.mxu0 0
  %537 = vmatpush1.bf16.xpose.msra.mxu0 0
  %538 = vmatprep.subr.bf16.mxu0 0
  %539 = vmatpush1.bf16.xpose.msra.mxu0 0
  %540 = vmatprep.subr.bf16.mxu0 0
  %541 = vmatpush1.bf16.xpose.msra.mxu0 0
  %542 = vmatprep.subr.bf16.mxu0 0
  %543 = vmatpush1.bf16.xpose.msra.mxu0 %v526
  %544 = vmatprep.subr.bf16.mxu0 0
  %545 = vmatpush2.bf16.xpose.msra.mxu0 0
  %546 = vmatprep.subr.bf16.mxu0 0
  %547 = vmatpush2.bf16.xpose.msra.mxu0 0
  %548 = vmatprep.subr.bf16.mxu0 0
  %549 = vmatpush2.bf16.xpose.msra.mxu0 0
  %550 = vmatprep.subr.bf16.mxu0 0
  %551 = vmatpush2.bf16.xpose.msra.mxu0 0
  %552 = vmatprep.subr.bf16.mxu0 0
  %553 = vmatpush2.bf16.xpose.msra.mxu0 0
  %554 = vmatprep.subr.bf16.mxu0 0
  %555 = vmatpush2.bf16.xpose.msra.mxu0 0
  %556 = vmatprep.subr.bf16.mxu0 0
  %557 = vmatpush2.bf16.xpose.msra.mxu0 0
  %558 = vmatprep.subr.bf16.mxu0 0
  %559 = vmatpush2.bf16.xpose.msra.mxu0 0
  %560 = vmatprep.mubr.bf16.mxu0 0
  %561 = vmatmul.mubr.bf16.gmra.mxu0 %v523
  %v562 = vpop.f32.mrf.mxu0
  %v563 = vadd.f32 0.0, %v562
  %v564 = vpop.f32.mrf.mxu0
  %v565 = vpop.f32.mrf.mxu0
  %v566 = vpop.f32.mrf.mxu0
  %567 = vdwg.mxu0
  %569 = vrot.lane.b32.xlu0 %v319, 96
  %v570 = vpop.permute.xlu0 %569
  %v572 = vsel %vm325, %v319, 0
  %v575 = vsel %vm325, %v570, 0
  %577 = vmatprep.subr.bf16.mxu0 0
  %578 = vmatpush1.bf16.xpose.msra.mxu0 0
  %579 = vmatprep.subr.bf16.mxu0 0
  %580 = vmatpush1.bf16.xpose.msra.mxu0 0
  %581 = vmatprep.subr.bf16.mxu0 0
  %582 = vmatpush1.bf16.xpose.msra.mxu0 0
  %583 = vmatprep.subr.bf16.mxu0 0
  %584 = vmatpush1.bf16.xpose.msra.mxu0 0
  %585 = vmatprep.subr.bf16.mxu0 0
  %586 = vmatpush1.bf16.xpose.msra.mxu0 0
  %587 = vmatprep.subr.bf16.mxu0 0
  %588 = vmatpush1.bf16.xpose.msra.mxu0 0
  %589 = vmatprep.subr.bf16.mxu0 0
  %590 = vmatpush1.bf16.xpose.msra.mxu0 0
  %591 = vmatprep.subr.bf16.mxu0 0
  %592 = vmatpush1.bf16.xpose.msra.mxu0 %v575
  %593 = vmatprep.subr.bf16.mxu0 0
  %594 = vmatpush2.bf16.xpose.msra.mxu0 0
  %595 = vmatprep.subr.bf16.mxu0 0
  %596 = vmatpush2.bf16.xpose.msra.mxu0 0
  %597 = vmatprep.subr.bf16.mxu0 0
  %598 = vmatpush2.bf16.xpose.msra.mxu0 0
  %599 = vmatprep.subr.bf16.mxu0 0
  %600 = vmatpush2.bf16.xpose.msra.mxu0 0
  %601 = vmatprep.subr.bf16.mxu0 0
  %602 = vmatpush2.bf16.xpose.msra.mxu0 0
  %603 = vmatprep.subr.bf16.mxu0 0
  %604 = vmatpush2.bf16.xpose.msra.mxu0 0
  %605 = vmatprep.subr.bf16.mxu0 0
  %606 = vmatpush2.bf16.xpose.msra.mxu0 0
  %607 = vmatprep.subr.bf16.mxu0 0
  %608 = vmatpush2.bf16.xpose.msra.mxu0 0
  %609 = vmatprep.mubr.bf16.mxu0 0
  %610 = vmatmul.mubr.bf16.gmra.mxu0 %v572
  %v611 = vpop.f32.mrf.mxu0
  %v612 = vadd.f32 0.0, %v611
  %v613 = vpop.f32.mrf.mxu0
  %v614 = vpop.f32.mrf.mxu0
  %v615 = vpop.f32.mrf.mxu0
  %616 = vdwg.mxu0
  %618 = vrot.lane.b32.xlu0 %v320, 96
  %v619 = vpop.permute.xlu0 %618
  %v621 = vsel %vm325, %v320, 0
  %v624 = vsel %vm325, %v619, 0
  %626 = vmatprep.subr.bf16.mxu0 0
  %627 = vmatpush1.bf16.xpose.msra.mxu0 0
  %628 = vmatprep.subr.bf16.mxu0 0
  %629 = vmatpush1.bf16.xpose.msra.mxu0 0
  %630 = vmatprep.subr.bf16.mxu0 0
  %631 = vmatpush1.bf16.xpose.msra.mxu0 0
  %632 = vmatprep.subr.bf16.mxu0 0
  %633 = vmatpush1.bf16.xpose.msra.mxu0 0
  %634 = vmatprep.subr.bf16.mxu0 0
  %635 = vmatpush1.bf16.xpose.msra.mxu0 0
  %636 = vmatprep.subr.bf16.mxu0 0
  %637 = vmatpush1.bf16.xpose.msra.mxu0 0
  %638 = vmatprep.subr.bf16.mxu0 0
  %639 = vmatpush1.bf16.xpose.msra.mxu0 0
  %640 = vmatprep.subr.bf16.mxu0 0
  %641 = vmatpush1.bf16.xpose.msra.mxu0 %v624
  %642 = vmatprep.subr.bf16.mxu0 0
  %643 = vmatpush2.bf16.xpose.msra.mxu0 0
  %644 = vmatprep.subr.bf16.mxu0 0
  %645 = vmatpush2.bf16.xpose.msra.mxu0 0
  %646 = vmatprep.subr.bf16.mxu0 0
  %647 = vmatpush2.bf16.xpose.msra.mxu0 0
  %648 = vmatprep.subr.bf16.mxu0 0
  %649 = vmatpush2.bf16.xpose.msra.mxu0 0
  %650 = vmatprep.subr.bf16.mxu0 0
  %651 = vmatpush2.bf16.xpose.msra.mxu0 0
  %652 = vmatprep.subr.bf16.mxu0 0
  %653 = vmatpush2.bf16.xpose.msra.mxu0 0
  %654 = vmatprep.subr.bf16.mxu0 0
  %655 = vmatpush2.bf16.xpose.msra.mxu0 0
  %656 = vmatprep.subr.bf16.mxu0 0
  %657 = vmatpush2.bf16.xpose.msra.mxu0 0
  %658 = vmatprep.mubr.bf16.mxu0 0
  %659 = vmatmul.mubr.bf16.gmra.mxu0 %v621
  %v660 = vpop.f32.mrf.mxu0
  %v661 = vadd.f32 0.0, %v660
  %v662 = vpop.f32.mrf.mxu0
  %v663 = vpop.f32.mrf.mxu0
  %v664 = vpop.f32.mrf.mxu0
  %665 = vdwg.mxu0
  %667 = vrot.lane.b32.xlu0 %v321, 96
  %v668 = vpop.permute.xlu0 %667
  %v670 = vsel %vm325, %v321, 0
  %v673 = vsel %vm325, %v668, 0
  %675 = vmatprep.subr.bf16.mxu0 0
  %676 = vmatpush1.bf16.xpose.msra.mxu0 0
  %677 = vmatprep.subr.bf16.mxu0 0
  %678 = vmatpush1.bf16.xpose.msra.mxu0 0
  %679 = vmatprep.subr.bf16.mxu0 0
  %680 = vmatpush1.bf16.xpose.msra.mxu0 0
  %681 = vmatprep.subr.bf16.mxu0 0
  %682 = vmatpush1.bf16.xpose.msra.mxu0 0
  %683 = vmatprep.subr.bf16.mxu0 0
  %684 = vmatpush1.bf16.xpose.msra.mxu0 0
  %685 = vmatprep.subr.bf16.mxu0 0
  %686 = vmatpush1.bf16.xpose.msra.mxu0 0
  %687 = vmatprep.subr.bf16.mxu0 0
  %688 = vmatpush1.bf16.xpose.msra.mxu0 0
  %689 = vmatprep.subr.bf16.mxu0 0
  %690 = vmatpush1.bf16.xpose.msra.mxu0 %v673
  %691 = vmatprep.subr.bf16.mxu0 0
  %692 = vmatpush2.bf16.xpose.msra.mxu0 0
  %693 = vmatprep.subr.bf16.mxu0 0
  %694 = vmatpush2.bf16.xpose.msra.mxu0 0
  %695 = vmatprep.subr.bf16.mxu0 0
  %696 = vmatpush2.bf16.xpose.msra.mxu0 0
  %697 = vmatprep.subr.bf16.mxu0 0
  %698 = vmatpush2.bf16.xpose.msra.mxu0 0
  %699 = vmatprep.subr.bf16.mxu0 0
  %700 = vmatpush2.bf16.xpose.msra.mxu0 0
  %701 = vmatprep.subr.bf16.mxu0 0
  %702 = vmatpush2.bf16.xpose.msra.mxu0 0
  %703 = vmatprep.subr.bf16.mxu0 0
  %704 = vmatpush2.bf16.xpose.msra.mxu0 0
  %705 = vmatprep.subr.bf16.mxu0 0
  %706 = vmatpush2.bf16.xpose.msra.mxu0 0
  %707 = vmatprep.mubr.bf16.mxu0 0
  %708 = vmatmul.mubr.bf16.gmra.mxu0 %v670
  %v709 = vpop.f32.mrf.mxu0
  %v710 = vadd.f32 0.0, %v709
  %v711 = vpop.f32.mrf.mxu0
  %v712 = vpop.f32.mrf.mxu0
  %v713 = vpop.f32.mrf.mxu0
  %714 = vdwg.mxu0
  %v715 = vmul.f32 %v367, 0.25
  %v716 = vmul.f32 %v416, 0.25
  %v717 = vmul.f32 %v465, 0.25
  %v718 = vmul.f32 %v514, 0.25
  %v719 = vmul.f32 %v563, 0.25
  %v720 = vmul.f32 %v612, 0.25
  %v721 = vmul.f32 %v661, 0.25
  %v722 = vmul.f32 %v710, 0.25
  %v723 = vlaneseq
  %v724 = vshrl.u32 %v723, 7
  %v725 = vsub.s32 0, %v724
  %v726 = vrot.slane %v186, %v725
  %v727 = vlaneseq
  %v728 = vshrl.u32 %v727, 7
  %v729 = vsub.s32 0, %v728
  %v730 = vrot.slane %v200, %v729
  %v731 = vlaneseq
  %v732 = vshrl.u32 %v731, 7
  %v733 = vsub.s32 0, %v732
  %v734 = vrot.slane %v208, %v733
  %v735 = vlaneseq
  %v736 = vshrl.u32 %v735, 7
  %v737 = vsub.s32 0, %v736
  %v738 = vrot.slane %v210, %v737
  %v739 = vlaneseq
  %v740 = vshrl.u32 %v739, 7
  %v741 = vsub.s32 0, %v740
  %v742 = vrot.slane %v193, %v741
  %v743 = vlaneseq
  %v744 = vshrl.u32 %v743, 7
  %v745 = vsub.s32 0, %v744
  %v746 = vrot.slane %v207, %v745
  %v747 = vlaneseq
  %v748 = vshrl.u32 %v747, 7
  %v749 = vsub.s32 0, %v748
  %v750 = vrot.slane %v209, %v749
  %v751 = vlaneseq
  %v752 = vshrl.u32 %v751, 7
  %v753 = vsub.s32 0, %v752
  %v754 = vrot.slane %v211, %v753
  %v763 = vadd.f32 %v715, %v726
  %v764 = vadd.f32 %v716, %v730
  %v765 = vadd.f32 %v717, %v734
  %v766 = vadd.f32 %v718, %v738
  %v767 = vadd.f32 %v719, %v742
  %v768 = vadd.f32 %v720, %v746
  %v769 = vadd.f32 %v721, %v750
  %v770 = vadd.f32 %v722, %v754
  %vm771 = vcmask 64512
  %v772 = vsel %vm771, %v763, -inf
  %773 = vmax.xlane.f32.xlu0 %v772
  %v774 = vpop.xlane.xlu0 %773
  %v775 = vsel %vm771, %v764, -inf
  %776 = vmax.xlane.f32.xlu0 %v775
  %v777 = vpop.xlane.xlu0 %776
  %v778 = vsel %vm771, %v765, -inf
  %779 = vmax.xlane.f32.xlu0 %v778
  %v780 = vpop.xlane.xlu0 %779
  %v781 = vsel %vm771, %v766, -inf
  %782 = vmax.xlane.f32.xlu0 %v781
  %v783 = vpop.xlane.xlu0 %782
  %v784 = vsel %vm771, %v767, -inf
  %785 = vmax.xlane.f32.xlu0 %v784
  %v786 = vpop.xlane.xlu0 %785
  %v787 = vsel %vm771, %v768, -inf
  %788 = vmax.xlane.f32.xlu0 %v787
  %v789 = vpop.xlane.xlu0 %788
  %v790 = vsel %vm771, %v769, -inf
  %791 = vmax.xlane.f32.xlu0 %v790
  %v792 = vpop.xlane.xlu0 %791
  %v793 = vsel %vm771, %v770, -inf
  %794 = vmax.xlane.f32.xlu0 %v793
  %v795 = vpop.xlane.xlu0 %794
  %v796 = vsub.f32 %v763, %v774
  %v797 = vsub.f32 %v764, %v777
  %v798 = vsub.f32 %v765, %v780
  %v799 = vsub.f32 %v766, %v783
  %v800 = vsub.f32 %v767, %v786
  %v801 = vsub.f32 %v768, %v789
  %v802 = vsub.f32 %v769, %v792
  %v803 = vsub.f32 %v770, %v795
  %v804 = vmul.f32 %v796, 1.442695
  %v805 = vpow.pop %v804
  %v806 = vmul.f32 %v797, 1.442695
  %v807 = vpow.pop %v806
  %v808 = vmul.f32 %v798, 1.442695
  %v809 = vpow.pop %v808
  %v810 = vmul.f32 %v799, 1.442695
  %v811 = vpow.pop %v810
  %v812 = vmul.f32 %v800, 1.442695
  %v813 = vpow.pop %v812
  %v814 = vmul.f32 %v801, 1.442695
  %v815 = vpow.pop %v814
  %v816 = vmul.f32 %v802, 1.442695
  %v817 = vpow.pop %v816
  %v818 = vmul.f32 %v803, 1.442695
  %v819 = vpow.pop %v818
  %v820 = vsel %vm771, %v805, 0.0
  %821 = vadd.xlane.f32.xlu0 %v820
  %v822 = vpop.xlane.xlu0 %821
  %v823 = vsel %vm771, %v807, 0.0
  %824 = vadd.xlane.f32.xlu0 %v823
  %v825 = vpop.xlane.xlu0 %824
  %v826 = vsel %vm771, %v809, 0.0
  %827 = vadd.xlane.f32.xlu0 %v826
  %v828 = vpop.xlane.xlu0 %827
  %v829 = vsel %vm771, %v811, 0.0
  %830 = vadd.xlane.f32.xlu0 %v829
  %v831 = vpop.xlane.xlu0 %830
  %v832 = vsel %vm771, %v813, 0.0
  %833 = vadd.xlane.f32.xlu0 %v832
  %v834 = vpop.xlane.xlu0 %833
  %v835 = vsel %vm771, %v815, 0.0
  %836 = vadd.xlane.f32.xlu0 %v835
  %v837 = vpop.xlane.xlu0 %836
  %v838 = vsel %vm771, %v817, 0.0
  %839 = vadd.xlane.f32.xlu0 %v838
  %v840 = vpop.xlane.xlu0 %839
  %v841 = vsel %vm771, %v819, 0.0
  %842 = vadd.xlane.f32.xlu0 %v841
  %v843 = vpop.xlane.xlu0 %842
  %v844 = vrcp.pop %v822
  %v845 = vrcp.pop %v825
  %v846 = vrcp.pop %v828
  %v847 = vrcp.pop %v831
  %v848 = vrcp.pop %v834
  %v849 = vrcp.pop %v837
  %v850 = vrcp.pop %v840
  %v851 = vrcp.pop %v843
  %v852 = vmul.f32 %v805, %v844
  %v853 = vmul.f32 %v807, %v845
  %v854 = vmul.f32 %v809, %v846
  %v855 = vmul.f32 %v811, %v847
  %v856 = vmul.f32 %v813, %v848
  %v857 = vmul.f32 %v815, %v849
  %v858 = vmul.f32 %v817, %v850
  %v859 = vmul.f32 %v819, %v851
  %v860 = vpack.c.bf16 %v852, %v852
  %v861 = vpack.c.bf16 %v853, %v853
  %v862 = vpack.c.bf16 %v854, %v854
  %v863 = vpack.c.bf16 %v855, %v855
  %v864 = vpack.c.bf16 %v856, %v856
  %v865 = vpack.c.bf16 %v857, %v857
  %v866 = vpack.c.bf16 %v858, %v858
  %v867 = vpack.c.bf16 %v859, %v859
  %868 = vrot.lane.b32.xlu0 %v314, 64
  %v869 = vpop.permute.xlu0 %868
  %v871 = vsel %vm771, %v860, 0
  %vm873 = vcmask 1043456
  %v875 = vsel %vm873, %v869, 0
  %877 = vmatprep.subr.bf16.mxu0 0
  %878 = vmatpush1.bf16.msra.mxu0 0
  %879 = vmatprep.subr.bf16.mxu0 0
  %880 = vmatpush1.bf16.msra.mxu0 0
  %881 = vmatprep.subr.bf16.mxu0 0
  %882 = vmatpush1.bf16.msra.mxu0 0
  %883 = vmatprep.subr.bf16.mxu0 0
  %884 = vmatpush1.bf16.msra.mxu0 0
  %885 = vmatprep.subr.bf16.mxu0 0
  %886 = vmatpush1.bf16.msra.mxu0 0
  %887 = vmatprep.subr.bf16.mxu0 0
  %888 = vmatpush1.bf16.msra.mxu0 0
  %889 = vmatprep.subr.bf16.mxu0 0
  %890 = vmatpush1.bf16.msra.mxu0 0
  %891 = vmatprep.subr.bf16.mxu0 0
  %892 = vmatpush1.bf16.msra.mxu0 %v875
  %893 = vmatprep.subr.bf16.mxu0 0
  %894 = vmatpush2.bf16.msra.mxu0 0
  %895 = vmatprep.subr.bf16.mxu0 0
  %896 = vmatpush2.bf16.msra.mxu0 0
  %897 = vmatprep.subr.bf16.mxu0 0
  %898 = vmatpush2.bf16.msra.mxu0 0
  %899 = vmatprep.subr.bf16.mxu0 0
  %900 = vmatpush2.bf16.msra.mxu0 0
  %901 = vmatprep.subr.bf16.mxu0 0
  %902 = vmatpush2.bf16.msra.mxu0 0
  %903 = vmatprep.subr.bf16.mxu0 0
  %904 = vmatpush2.bf16.msra.mxu0 0
  %905 = vmatprep.subr.bf16.mxu0 0
  %906 = vmatpush2.bf16.msra.mxu0 0
  %907 = vmatprep.subr.bf16.mxu0 0
  %908 = vmatpush2.bf16.msra.mxu0 0
  %909 = vmatprep.mubr.bf16.mxu0 0
  %910 = vmatmul.mubr.bf16.gmra.mxu0 %v871
  %v911 = vpop.f32.mrf.mxu0
  %v912 = vadd.f32 0.0, %v911
  %v913 = vpop.f32.mrf.mxu0
  %v914 = vpop.f32.mrf.mxu0
  %v915 = vpop.f32.mrf.mxu0
  %916 = vdwg.mxu0
  %917 = vrot.lane.b32.xlu0 %v315, 64
  %v918 = vpop.permute.xlu0 %917
  %v920 = vsel %vm771, %v861, 0
  %v923 = vsel %vm873, %v918, 0
  %925 = vmatprep.subr.bf16.mxu0 0
  %926 = vmatpush1.bf16.msra.mxu0 0
  %927 = vmatprep.subr.bf16.mxu0 0
  %928 = vmatpush1.bf16.msra.mxu0 0
  %929 = vmatprep.subr.bf16.mxu0 0
  %930 = vmatpush1.bf16.msra.mxu0 0
  %931 = vmatprep.subr.bf16.mxu0 0
  %932 = vmatpush1.bf16.msra.mxu0 0
  %933 = vmatprep.subr.bf16.mxu0 0
  %934 = vmatpush1.bf16.msra.mxu0 0
  %935 = vmatprep.subr.bf16.mxu0 0
  %936 = vmatpush1.bf16.msra.mxu0 0
  %937 = vmatprep.subr.bf16.mxu0 0
  %938 = vmatpush1.bf16.msra.mxu0 0
  %939 = vmatprep.subr.bf16.mxu0 0
  %940 = vmatpush1.bf16.msra.mxu0 %v923
  %941 = vmatprep.subr.bf16.mxu0 0
  %942 = vmatpush2.bf16.msra.mxu0 0
  %943 = vmatprep.subr.bf16.mxu0 0
  %944 = vmatpush2.bf16.msra.mxu0 0
  %945 = vmatprep.subr.bf16.mxu0 0
  %946 = vmatpush2.bf16.msra.mxu0 0
  %947 = vmatprep.subr.bf16.mxu0 0
  %948 = vmatpush2.bf16.msra.mxu0 0
  %949 = vmatprep.subr.bf16.mxu0 0
  %950 = vmatpush2.bf16.msra.mxu0 0
  %951 = vmatprep.subr.bf16.mxu0 0
  %952 = vmatpush2.bf16.msra.mxu0 0
  %953 = vmatprep.subr.bf16.mxu0 0
  %954 = vmatpush2.bf16.msra.mxu0 0
  %955 = vmatprep.subr.bf16.mxu0 0
  %956 = vmatpush2.bf16.msra.mxu0 0
  %957 = vmatprep.mubr.bf16.mxu0 0
  %958 = vmatmul.mubr.bf16.gmra.mxu0 %v920
  %v959 = vpop.f32.mrf.mxu0
  %v960 = vadd.f32 0.0, %v959
  %v961 = vpop.f32.mrf.mxu0
  %v962 = vpop.f32.mrf.mxu0
  %v963 = vpop.f32.mrf.mxu0
  %964 = vdwg.mxu0
  %965 = vrot.lane.b32.xlu0 %v316, 64
  %v966 = vpop.permute.xlu0 %965
  %v968 = vsel %vm771, %v862, 0
  %v971 = vsel %vm873, %v966, 0
  %973 = vmatprep.subr.bf16.mxu0 0
  %974 = vmatpush1.bf16.msra.mxu0 0
  %975 = vmatprep.subr.bf16.mxu0 0
  %976 = vmatpush1.bf16.msra.mxu0 0
  %977 = vmatprep.subr.bf16.mxu0 0
  %978 = vmatpush1.bf16.msra.mxu0 0
  %979 = vmatprep.subr.bf16.mxu0 0
  %980 = vmatpush1.bf16.msra.mxu0 0
  %981 = vmatprep.subr.bf16.mxu0 0
  %982 = vmatpush1.bf16.msra.mxu0 0
  %983 = vmatprep.subr.bf16.mxu0 0
  %984 = vmatpush1.bf16.msra.mxu0 0
  %985 = vmatprep.subr.bf16.mxu0 0
  %986 = vmatpush1.bf16.msra.mxu0 0
  %987 = vmatprep.subr.bf16.mxu0 0
  %988 = vmatpush1.bf16.msra.mxu0 %v971
  %989 = vmatprep.subr.bf16.mxu0 0
  %990 = vmatpush2.bf16.msra.mxu0 0
  %991 = vmatprep.subr.bf16.mxu0 0
  %992 = vmatpush2.bf16.msra.mxu0 0
  %993 = vmatprep.subr.bf16.mxu0 0
  %994 = vmatpush2.bf16.msra.mxu0 0
  %995 = vmatprep.subr.bf16.mxu0 0
  %996 = vmatpush2.bf16.msra.mxu0 0
  %997 = vmatprep.subr.bf16.mxu0 0
  %998 = vmatpush2.bf16.msra.mxu0 0
  %999 = vmatprep.subr.bf16.mxu0 0
  %1000 = vmatpush2.bf16.msra.mxu0 0
  %1001 = vmatprep.subr.bf16.mxu0 0
  %1002 = vmatpush2.bf16.msra.mxu0 0
  %1003 = vmatprep.subr.bf16.mxu0 0
  %1004 = vmatpush2.bf16.msra.mxu0 0
  %1005 = vmatprep.mubr.bf16.mxu0 0
  %1006 = vmatmul.mubr.bf16.gmra.mxu0 %v968
  %v1007 = vpop.f32.mrf.mxu0
  %v1008 = vadd.f32 0.0, %v1007
  %v1009 = vpop.f32.mrf.mxu0
  %v1010 = vpop.f32.mrf.mxu0
  %v1011 = vpop.f32.mrf.mxu0
  %1012 = vdwg.mxu0
  %1013 = vrot.lane.b32.xlu0 %v317, 64
  %v1014 = vpop.permute.xlu0 %1013
  %v1016 = vsel %vm771, %v863, 0
  %v1019 = vsel %vm873, %v1014, 0
  %1021 = vmatprep.subr.bf16.mxu0 0
  %1022 = vmatpush1.bf16.msra.mxu0 0
  %1023 = vmatprep.subr.bf16.mxu0 0
  %1024 = vmatpush1.bf16.msra.mxu0 0
  %1025 = vmatprep.subr.bf16.mxu0 0
  %1026 = vmatpush1.bf16.msra.mxu0 0
  %1027 = vmatprep.subr.bf16.mxu0 0
  %1028 = vmatpush1.bf16.msra.mxu0 0
  %1029 = vmatprep.subr.bf16.mxu0 0
  %1030 = vmatpush1.bf16.msra.mxu0 0
  %1031 = vmatprep.subr.bf16.mxu0 0
  %1032 = vmatpush1.bf16.msra.mxu0 0
  %1033 = vmatprep.subr.bf16.mxu0 0
  %1034 = vmatpush1.bf16.msra.mxu0 0
  %1035 = vmatprep.subr.bf16.mxu0 0
  %1036 = vmatpush1.bf16.msra.mxu0 %v1019
  %1037 = vmatprep.subr.bf16.mxu0 0
  %1038 = vmatpush2.bf16.msra.mxu0 0
  %1039 = vmatprep.subr.bf16.mxu0 0
  %1040 = vmatpush2.bf16.msra.mxu0 0
  %1041 = vmatprep.subr.bf16.mxu0 0
  %1042 = vmatpush2.bf16.msra.mxu0 0
  %1043 = vmatprep.subr.bf16.mxu0 0
  %1044 = vmatpush2.bf16.msra.mxu0 0
  %1045 = vmatprep.subr.bf16.mxu0 0
  %1046 = vmatpush2.bf16.msra.mxu0 0
  %1047 = vmatprep.subr.bf16.mxu0 0
  %1048 = vmatpush2.bf16.msra.mxu0 0
  %1049 = vmatprep.subr.bf16.mxu0 0
  %1050 = vmatpush2.bf16.msra.mxu0 0
  %1051 = vmatprep.subr.bf16.mxu0 0
  %1052 = vmatpush2.bf16.msra.mxu0 0
  %1053 = vmatprep.mubr.bf16.mxu0 0
  %1054 = vmatmul.mubr.bf16.gmra.mxu0 %v1016
  %v1055 = vpop.f32.mrf.mxu0
  %v1056 = vadd.f32 0.0, %v1055
  %v1057 = vpop.f32.mrf.mxu0
  %v1058 = vpop.f32.mrf.mxu0
  %v1059 = vpop.f32.mrf.mxu0
  %1060 = vdwg.mxu0
  %1061 = vrot.lane.b32.xlu0 %v318, 64
  %v1062 = vpop.permute.xlu0 %1061
  %v1064 = vsel %vm771, %v864, 0
  %v1067 = vsel %vm873, %v1062, 0
  %1069 = vmatprep.subr.bf16.mxu0 0
  %1070 = vmatpush1.bf16.msra.mxu0 0
  %1071 = vmatprep.subr.bf16.mxu0 0
  %1072 = vmatpush1.bf16.msra.mxu0 0
  %1073 = vmatprep.subr.bf16.mxu0 0
  %1074 = vmatpush1.bf16.msra.mxu0 0
  %1075 = vmatprep.subr.bf16.mxu0 0
  %1076 = vmatpush1.bf16.msra.mxu0 0
  %1077 = vmatprep.subr.bf16.mxu0 0
  %1078 = vmatpush1.bf16.msra.mxu0 0
  %1079 = vmatprep.subr.bf16.mxu0 0
  %1080 = vmatpush1.bf16.msra.mxu0 0
  %1081 = vmatprep.subr.bf16.mxu0 0
  %1082 = vmatpush1.bf16.msra.mxu0 0
  %1083 = vmatprep.subr.bf16.mxu0 0
  %1084 = vmatpush1.bf16.msra.mxu0 %v1067
  %1085 = vmatprep.subr.bf16.mxu0 0
  %1086 = vmatpush2.bf16.msra.mxu0 0
  %1087 = vmatprep.subr.bf16.mxu0 0
  %1088 = vmatpush2.bf16.msra.mxu0 0
  %1089 = vmatprep.subr.bf16.mxu0 0
  %1090 = vmatpush2.bf16.msra.mxu0 0
  %1091 = vmatprep.subr.bf16.mxu0 0
  %1092 = vmatpush2.bf16.msra.mxu0 0
  %1093 = vmatprep.subr.bf16.mxu0 0
  %1094 = vmatpush2.bf16.msra.mxu0 0
  %1095 = vmatprep.subr.bf16.mxu0 0
  %1096 = vmatpush2.bf16.msra.mxu0 0
  %1097 = vmatprep.subr.bf16.mxu0 0
  %1098 = vmatpush2.bf16.msra.mxu0 0
  %1099 = vmatprep.subr.bf16.mxu0 0
  %1100 = vmatpush2.bf16.msra.mxu0 0
  %1101 = vmatprep.mubr.bf16.mxu0 0
  %1102 = vmatmul.mubr.bf16.gmra.mxu0 %v1064
  %v1103 = vpop.f32.mrf.mxu0
  %v1104 = vadd.f32 0.0, %v1103
  %v1105 = vpop.f32.mrf.mxu0
  %v1106 = vpop.f32.mrf.mxu0
  %v1107 = vpop.f32.mrf.mxu0
  %1108 = vdwg.mxu0
  %1109 = vrot.lane.b32.xlu0 %v319, 64
  %v1110 = vpop.permute.xlu0 %1109
  %v1112 = vsel %vm771, %v865, 0
  %v1115 = vsel %vm873, %v1110, 0
  %1117 = vmatprep.subr.bf16.mxu0 0
  %1118 = vmatpush1.bf16.msra.mxu0 0
  %1119 = vmatprep.subr.bf16.mxu0 0
  %1120 = vmatpush1.bf16.msra.mxu0 0
  %1121 = vmatprep.subr.bf16.mxu0 0
  %1122 = vmatpush1.bf16.msra.mxu0 0
  %1123 = vmatprep.subr.bf16.mxu0 0
  %1124 = vmatpush1.bf16.msra.mxu0 0
  %1125 = vmatprep.subr.bf16.mxu0 0
  %1126 = vmatpush1.bf16.msra.mxu0 0
  %1127 = vmatprep.subr.bf16.mxu0 0
  %1128 = vmatpush1.bf16.msra.mxu0 0
  %1129 = vmatprep.subr.bf16.mxu0 0
  %1130 = vmatpush1.bf16.msra.mxu0 0
  %1131 = vmatprep.subr.bf16.mxu0 0
  %1132 = vmatpush1.bf16.msra.mxu0 %v1115
  %1133 = vmatprep.subr.bf16.mxu0 0
  %1134 = vmatpush2.bf16.msra.mxu0 0
  %1135 = vmatprep.subr.bf16.mxu0 0
  %1136 = vmatpush2.bf16.msra.mxu0 0
  %1137 = vmatprep.subr.bf16.mxu0 0
  %1138 = vmatpush2.bf16.msra.mxu0 0
  %1139 = vmatprep.subr.bf16.mxu0 0
  %1140 = vmatpush2.bf16.msra.mxu0 0
  %1141 = vmatprep.subr.bf16.mxu0 0
  %1142 = vmatpush2.bf16.msra.mxu0 0
  %1143 = vmatprep.subr.bf16.mxu0 0
  %1144 = vmatpush2.bf16.msra.mxu0 0
  %1145 = vmatprep.subr.bf16.mxu0 0
  %1146 = vmatpush2.bf16.msra.mxu0 0
  %1147 = vmatprep.subr.bf16.mxu0 0
  %1148 = vmatpush2.bf16.msra.mxu0 0
  %1149 = vmatprep.mubr.bf16.mxu0 0
  %1150 = vmatmul.mubr.bf16.gmra.mxu0 %v1112
  %v1151 = vpop.f32.mrf.mxu0
  %v1152 = vadd.f32 0.0, %v1151
  %v1153 = vpop.f32.mrf.mxu0
  %v1154 = vpop.f32.mrf.mxu0
  %v1155 = vpop.f32.mrf.mxu0
  %1156 = vdwg.mxu0
  %1157 = vrot.lane.b32.xlu0 %v320, 64
  %v1158 = vpop.permute.xlu0 %1157
  %v1160 = vsel %vm771, %v866, 0
  %v1163 = vsel %vm873, %v1158, 0
  %1165 = vmatprep.subr.bf16.mxu0 0
  %1166 = vmatpush1.bf16.msra.mxu0 0
  %1167 = vmatprep.subr.bf16.mxu0 0
  %1168 = vmatpush1.bf16.msra.mxu0 0
  %1169 = vmatprep.subr.bf16.mxu0 0
  %1170 = vmatpush1.bf16.msra.mxu0 0
  %1171 = vmatprep.subr.bf16.mxu0 0
  %1172 = vmatpush1.bf16.msra.mxu0 0
  %1173 = vmatprep.subr.bf16.mxu0 0
  %1174 = vmatpush1.bf16.msra.mxu0 0
  %1175 = vmatprep.subr.bf16.mxu0 0
  %1176 = vmatpush1.bf16.msra.mxu0 0
  %1177 = vmatprep.subr.bf16.mxu0 0
  %1178 = vmatpush1.bf16.msra.mxu0 0
  %1179 = vmatprep.subr.bf16.mxu0 0
  %1180 = vmatpush1.bf16.msra.mxu0 %v1163
  %1181 = vmatprep.subr.bf16.mxu0 0
  %1182 = vmatpush2.bf16.msra.mxu0 0
  %1183 = vmatprep.subr.bf16.mxu0 0
  %1184 = vmatpush2.bf16.msra.mxu0 0
  %1185 = vmatprep.subr.bf16.mxu0 0
  %1186 = vmatpush2.bf16.msra.mxu0 0
  %1187 = vmatprep.subr.bf16.mxu0 0
  %1188 = vmatpush2.bf16.msra.mxu0 0
  %1189 = vmatprep.subr.bf16.mxu0 0
  %1190 = vmatpush2.bf16.msra.mxu0 0
  %1191 = vmatprep.subr.bf16.mxu0 0
  %1192 = vmatpush2.bf16.msra.mxu0 0
  %1193 = vmatprep.subr.bf16.mxu0 0
  %1194 = vmatpush2.bf16.msra.mxu0 0
  %1195 = vmatprep.subr.bf16.mxu0 0
  %1196 = vmatpush2.bf16.msra.mxu0 0
  %1197 = vmatprep.mubr.bf16.mxu0 0
  %1198 = vmatmul.mubr.bf16.gmra.mxu0 %v1160
  %v1199 = vpop.f32.mrf.mxu0
  %v1200 = vadd.f32 0.0, %v1199
  %v1201 = vpop.f32.mrf.mxu0
  %v1202 = vpop.f32.mrf.mxu0
  %v1203 = vpop.f32.mrf.mxu0
  %1204 = vdwg.mxu0
  %1205 = vrot.lane.b32.xlu0 %v321, 64
  %v1206 = vpop.permute.xlu0 %1205
  %v1208 = vsel %vm771, %v867, 0
  %v1211 = vsel %vm873, %v1206, 0
  %1213 = vmatprep.subr.bf16.mxu0 0
  %1214 = vmatpush1.bf16.msra.mxu0 0
  %1215 = vmatprep.subr.bf16.mxu0 0
  %1216 = vmatpush1.bf16.msra.mxu0 0
  %1217 = vmatprep.subr.bf16.mxu0 0
  %1218 = vmatpush1.bf16.msra.mxu0 0
  %1219 = vmatprep.subr.bf16.mxu0 0
  %1220 = vmatpush1.bf16.msra.mxu0 0
  %1221 = vmatprep.subr.bf16.mxu0 0
  %1222 = vmatpush1.bf16.msra.mxu0 0
  %1223 = vmatprep.subr.bf16.mxu0 0
  %1224 = vmatpush1.bf16.msra.mxu0 0
  %1225 = vmatprep.subr.bf16.mxu0 0
  %1226 = vmatpush1.bf16.msra.mxu0 0
  %1227 = vmatprep.subr.bf16.mxu0 0
  %1228 = vmatpush1.bf16.msra.mxu0 %v1211
  %1229 = vmatprep.subr.bf16.mxu0 0
  %1230 = vmatpush2.bf16.msra.mxu0 0
  %1231 = vmatprep.subr.bf16.mxu0 0
  %1232 = vmatpush2.bf16.msra.mxu0 0
  %1233 = vmatprep.subr.bf16.mxu0 0
  %1234 = vmatpush2.bf16.msra.mxu0 0
  %1235 = vmatprep.subr.bf16.mxu0 0
  %1236 = vmatpush2.bf16.msra.mxu0 0
  %1237 = vmatprep.subr.bf16.mxu0 0
  %1238 = vmatpush2.bf16.msra.mxu0 0
  %1239 = vmatprep.subr.bf16.mxu0 0
  %1240 = vmatpush2.bf16.msra.mxu0 0
  %1241 = vmatprep.subr.bf16.mxu0 0
  %1242 = vmatpush2.bf16.msra.mxu0 0
  %1243 = vmatprep.subr.bf16.mxu0 0
  %1244 = vmatpush2.bf16.msra.mxu0 0
  %1245 = vmatprep.mubr.bf16.mxu0 0
  %1246 = vmatmul.mubr.bf16.gmra.mxu0 %v1208
  %v1247 = vpop.f32.mrf.mxu0
  %v1248 = vadd.f32 0.0, %v1247
  %v1249 = vpop.f32.mrf.mxu0
  %v1250 = vpop.f32.mrf.mxu0
  %v1251 = vpop.f32.mrf.mxu0
  %1252 = vdwg.mxu0
  %v1253 = vld [vmem:[%s2] sm:$0xf]
  %v1254 = vld [vmem:[%s2 + $0x8] sm:$0xf]
  %v1255 = vpack.c.bf16 %v960, %v912
  %v1256 = vpack.c.bf16 %v1056, %v1008
  %v1257 = vpack.c.bf16 %v1152, %v1104
  %v1258 = vpack.c.bf16 %v1248, %v1200
  %v1261 = vunpack.c.l.b16 %v1253
  %v1262 = vunpack.c.l.b16 %v1254
  %v1263 = vpack.c.b16 %v1262, %v1261
  %1264 = vrot.lane.b32.xlu0 %v1263, 32
  %v1265 = vpop.permute.xlu0 %1264
  %v1268 = vsel %vm325, %v1255, 0
  %v1271 = vsel %vm325, %v1256, 0
  %v1274 = vsel %vm325, %v1257, 0
  %v1277 = vsel %vm325, %v1258, 0
  %1279 = vmatprep.subr.bf16.mxu0 0
  %1280 = vmatpush1.bf16.msra.mxu0 0
  %1281 = vmatprep.subr.bf16.mxu0 0
  %1282 = vmatpush1.bf16.msra.mxu0 0
  %1283 = vmatprep.subr.bf16.mxu0 0
  %1284 = vmatpush1.bf16.msra.mxu0 0
  %1285 = vmatprep.subr.bf16.mxu0 0
  %1286 = vmatpush1.bf16.msra.mxu0 0
  %1287 = vmatprep.subr.bf16.mxu0 0
  %1288 = vmatpush1.bf16.msra.mxu0 0
  %1289 = vmatprep.subr.bf16.mxu0 0
  %1290 = vmatpush1.bf16.msra.mxu0 0
  %1291 = vmatprep.subr.bf16.mxu0 0
  %1292 = vmatpush1.bf16.msra.mxu0 0
  %1293 = vmatprep.subr.bf16.mxu0 0
  %1294 = vmatpush1.bf16.msra.mxu0 %v1265
  %1295 = vmatprep.subr.bf16.mxu0 0
  %1296 = vmatpush2.bf16.msra.mxu0 0
  %1297 = vmatprep.subr.bf16.mxu0 0
  %1298 = vmatpush2.bf16.msra.mxu0 0
  %1299 = vmatprep.subr.bf16.mxu0 0
  %1300 = vmatpush2.bf16.msra.mxu0 0
  %1301 = vmatprep.subr.bf16.mxu0 0
  %1302 = vmatpush2.bf16.msra.mxu0 0
  %1303 = vmatprep.subr.bf16.mxu0 0
  %1304 = vmatpush2.bf16.msra.mxu0 0
  %1305 = vmatprep.subr.bf16.mxu0 0
  %1306 = vmatpush2.bf16.msra.mxu0 0
  %1307 = vmatprep.subr.bf16.mxu0 0
  %1308 = vmatpush2.bf16.msra.mxu0 0
  %1309 = vmatprep.subr.bf16.mxu0 0
  %1310 = vmatpush2.bf16.msra.mxu0 0
  %1311 = vmatprep.mubr.bf16.mxu0 0
  %1312 = vmatmul.mubr.bf16.gmra.mxu0 %v1268
  %v1313 = vpop.f32.mrf.mxu0
  %v1314 = vadd.f32 0.0, %v1313
  %v1315 = vpop.f32.mrf.mxu0
  %v1316 = vpop.f32.mrf.mxu0
  %v1317 = vadd.f32 0.0, %v1316
  %v1318 = vpop.f32.mrf.mxu0
  %1319 = vmatprep.mubr.bf16.mxu0 0
  %1320 = vmatmul.mubr.bf16.gmra.mxu0 %v1271
  %v1321 = vpop.f32.mrf.mxu0
  %v1322 = vadd.f32 0.0, %v1321
  %v1323 = vpop.f32.mrf.mxu0
  %v1324 = vpop.f32.mrf.mxu0
  %v1325 = vadd.f32 0.0, %v1324
  %v1326 = vpop.f32.mrf.mxu0
  %1327 = vmatprep.mubr.bf16.mxu0 0
  %1328 = vmatmul.mubr.bf16.gmra.mxu0 %v1274
  %v1329 = vpop.f32.mrf.mxu0
  %v1330 = vadd.f32 0.0, %v1329
  %v1331 = vpop.f32.mrf.mxu0
  %v1332 = vpop.f32.mrf.mxu0
  %v1333 = vadd.f32 0.0, %v1332
  %v1334 = vpop.f32.mrf.mxu0
  %1335 = vmatprep.mubr.bf16.mxu0 0
  %1336 = vmatmul.mubr.bf16.gmra.mxu0 %v1277
  %v1337 = vpop.f32.mrf.mxu0
  %v1338 = vadd.f32 0.0, %v1337
  %v1339 = vpop.f32.mrf.mxu0
  %v1340 = vpop.f32.mrf.mxu0
  %v1341 = vadd.f32 0.0, %v1340
  %v1342 = vpop.f32.mrf.mxu0
  %1343 = vdwg.mxu0
  %v1344 = vlaneseq
  %v1345 = vshrl.u32 %v1344, 7
  %v1346 = vsub.s32 1, %v1345
  %v1347 = vrot.slane %v212, %v1346
  %v1348 = vadd.f32 %v1347, %v1314
  %v1349 = vadd.f32 %v1347, %v1317
  %v1350 = vadd.f32 %v1347, %v1322
  %v1351 = vadd.f32 %v1347, %v1325
  %v1352 = vadd.f32 %v1347, %v1330
  %v1353 = vadd.f32 %v1347, %v1333
  %v1354 = vadd.f32 %v1347, %v1338
  %v1355 = vadd.f32 %v1347, %v1341
  %1356 = vrot.lane.b32.xlu0 %v314, 112
  %v1357 = vpop.permute.xlu0 %1356
  %1358 = vrot.lane.b32.xlu0 %v314, 80
  %v1359 = vpop.permute.xlu0 %1358
  %v1361 = vsel %vm325, %v1357, 0
  %v1364 = vsel %vm325, %v1359, 0
  %1366 = vmatprep.subr.bf16.mxu0 0
  %1367 = vmatpush1.bf16.xpose.msra.mxu0 0
  %1368 = vmatprep.subr.bf16.mxu0 0
  %1369 = vmatpush1.bf16.xpose.msra.mxu0 0
  %1370 = vmatprep.subr.bf16.mxu0 0
  %1371 = vmatpush1.bf16.xpose.msra.mxu0 0
  %1372 = vmatprep.subr.bf16.mxu0 0
  %1373 = vmatpush1.bf16.xpose.msra.mxu0 0
  %1374 = vmatprep.subr.bf16.mxu0 0
  %1375 = vmatpush1.bf16.xpose.msra.mxu0 0
  %1376 = vmatprep.subr.bf16.mxu0 0
  %1377 = vmatpush1.bf16.xpose.msra.mxu0 0
  %1378 = vmatprep.subr.bf16.mxu0 0
  %1379 = vmatpush1.bf16.xpose.msra.mxu0 0
  %1380 = vmatprep.subr.bf16.mxu0 0
  %1381 = vmatpush1.bf16.xpose.msra.mxu0 %v1364
  %1382 = vmatprep.subr.bf16.mxu0 0
  %1383 = vmatpush2.bf16.xpose.msra.mxu0 0
  %1384 = vmatprep.subr.bf16.mxu0 0
  %1385 = vmatpush2.bf16.xpose.msra.mxu0 0
  %1386 = vmatprep.subr.bf16.mxu0 0
  %1387 = vmatpush2.bf16.xpose.msra.mxu0 0
  %1388 = vmatprep.subr.bf16.mxu0 0
  %1389 = vmatpush2.bf16.xpose.msra.mxu0 0
  %1390 = vmatprep.subr.bf16.mxu0 0
  %1391 = vmatpush2.bf16.xpose.msra.mxu0 0
  %1392 = vmatprep.subr.bf16.mxu0 0
  %1393 = vmatpush2.bf16.xpose.msra.mxu0 0
  %1394 = vmatprep.subr.bf16.mxu0 0
  %1395 = vmatpush2.bf16.xpose.msra.mxu0 0
  %1396 = vmatprep.subr.bf16.mxu0 0
  %1397 = vmatpush2.bf16.xpose.msra.mxu0 0
  %1398 = vmatprep.mubr.bf16.mxu0 0
  %1399 = vmatmul.mubr.bf16.gmra.mxu0 %v1361
  %v1400 = vpop.f32.mrf.mxu0
  %v1401 = vadd.f32 0.0, %v1400
  %v1402 = vpop.f32.mrf.mxu0
  %v1403 = vpop.f32.mrf.mxu0
  %v1404 = vpop.f32.mrf.mxu0
  %1405 = vdwg.mxu0
  %1406 = vrot.lane.b32.xlu0 %v315, 112
  %v1407 = vpop.permute.xlu0 %1406
  %1408 = vrot.lane.b32.xlu0 %v315, 80
  %v1409 = vpop.permute.xlu0 %1408
  %v1411 = vsel %vm325, %v1407, 0
  %v1414 = vsel %vm325, %v1409, 0
  %1416 = vmatprep.subr.bf16.mxu0 0
  %1417 = vmatpush1.bf16.xpose.msra.mxu0 0
  %1418 = vmatprep.subr.bf16.mxu0 0
  %1419 = vmatpush1.bf16.xpose.msra.mxu0 0
  %1420 = vmatprep.subr.bf16.mxu0 0
  %1421 = vmatpush1.bf16.xpose.msra.mxu0 0
  %1422 = vmatprep.subr.bf16.mxu0 0
  %1423 = vmatpush1.bf16.xpose.msra.mxu0 0
  %1424 = vmatprep.subr.bf16.mxu0 0
  %1425 = vmatpush1.bf16.xpose.msra.mxu0 0
  %1426 = vmatprep.subr.bf16.mxu0 0
  %1427 = vmatpush1.bf16.xpose.msra.mxu0 0
  %1428 = vmatprep.subr.bf16.mxu0 0
  %1429 = vmatpush1.bf16.xpose.msra.mxu0 0
  %1430 = vmatprep.subr.bf16.mxu0 0
  %1431 = vmatpush1.bf16.xpose.msra.mxu0 %v1414
  %1432 = vmatprep.subr.bf16.mxu0 0
  %1433 = vmatpush2.bf16.xpose.msra.mxu0 0
  %1434 = vmatprep.subr.bf16.mxu0 0
  %1435 = vmatpush2.bf16.xpose.msra.mxu0 0
  %1436 = vmatprep.subr.bf16.mxu0 0
  %1437 = vmatpush2.bf16.xpose.msra.mxu0 0
  %1438 = vmatprep.subr.bf16.mxu0 0
  %1439 = vmatpush2.bf16.xpose.msra.mxu0 0
  %1440 = vmatprep.subr.bf16.mxu0 0
  %1441 = vmatpush2.bf16.xpose.msra.mxu0 0
  %1442 = vmatprep.subr.bf16.mxu0 0
  %1443 = vmatpush2.bf16.xpose.msra.mxu0 0
  %1444 = vmatprep.subr.bf16.mxu0 0
  %1445 = vmatpush2.bf16.xpose.msra.mxu0 0
  %1446 = vmatprep.subr.bf16.mxu0 0
  %1447 = vmatpush2.bf16.xpose.msra.mxu0 0
  %1448 = vmatprep.mubr.bf16.mxu0 0
  %1449 = vmatmul.mubr.bf16.gmra.mxu0 %v1411
  %v1450 = vpop.f32.mrf.mxu0
  %v1451 = vadd.f32 0.0, %v1450
  %v1452 = vpop.f32.mrf.mxu0
  %v1453 = vpop.f32.mrf.mxu0
  %v1454 = vpop.f32.mrf.mxu0
  %1455 = vdwg.mxu0
  %1456 = vrot.lane.b32.xlu0 %v316, 112
  %v1457 = vpop.permute.xlu0 %1456
  %1458 = vrot.lane.b32.xlu0 %v316, 80
  %v1459 = vpop.permute.xlu0 %1458
  %v1461 = vsel %vm325, %v1457, 0
  %v1464 = vsel %vm325, %v1459, 0
  %1466 = vmatprep.subr.bf16.mxu0 0
  %1467 = vmatpush1.bf16.xpose.msra.mxu0 0
  %1468 = vmatprep.subr.bf16.mxu0 0
  %1469 = vmatpush1.bf16.xpose.msra.mxu0 0
  %1470 = vmatprep.subr.bf16.mxu0 0
  %1471 = vmatpush1.bf16.xpose.msra.mxu0 0
  %1472 = vmatprep.subr.bf16.mxu0 0
  %1473 = vmatpush1.bf16.xpose.msra.mxu0 0
  %1474 = vmatprep.subr.bf16.mxu0 0
  %1475 = vmatpush1.bf16.xpose.msra.mxu0 0
  %1476 = vmatprep.subr.bf16.mxu0 0
  %1477 = vmatpush1.bf16.xpose.msra.mxu0 0
  %1478 = vmatprep.subr.bf16.mxu0 0
  %1479 = vmatpush1.bf16.xpose.msra.mxu0 0
  %1480 = vmatprep.subr.bf16.mxu0 0
  %1481 = vmatpush1.bf16.xpose.msra.mxu0 %v1464
  %1482 = vmatprep.subr.bf16.mxu0 0
  %1483 = vmatpush2.bf16.xpose.msra.mxu0 0
  %1484 = vmatprep.subr.bf16.mxu0 0
  %1485 = vmatpush2.bf16.xpose.msra.mxu0 0
  %1486 = vmatprep.subr.bf16.mxu0 0
  %1487 = vmatpush2.bf16.xpose.msra.mxu0 0
  %1488 = vmatprep.subr.bf16.mxu0 0
  %1489 = vmatpush2.bf16.xpose.msra.mxu0 0
  %1490 = vmatprep.subr.bf16.mxu0 0
  %1491 = vmatpush2.bf16.xpose.msra.mxu0 0
  %1492 = vmatprep.subr.bf16.mxu0 0
  %1493 = vmatpush2.bf16.xpose.msra.mxu0 0
  %1494 = vmatprep.subr.bf16.mxu0 0
  %1495 = vmatpush2.bf16.xpose.msra.mxu0 0
  %1496 = vmatprep.subr.bf16.mxu0 0
  %1497 = vmatpush2.bf16.xpose.msra.mxu0 0
  %1498 = vmatprep.mubr.bf16.mxu0 0
  %1499 = vmatmul.mubr.bf16.gmra.mxu0 %v1461
  %v1500 = vpop.f32.mrf.mxu0
  %v1501 = vadd.f32 0.0, %v1500
  %v1502 = vpop.f32.mrf.mxu0
  %v1503 = vpop.f32.mrf.mxu0
  %v1504 = vpop.f32.mrf.mxu0
  %1505 = vdwg.mxu0
  %1506 = vrot.lane.b32.xlu0 %v317, 112
  %v1507 = vpop.permute.xlu0 %1506
  %1508 = vrot.lane.b32.xlu0 %v317, 80
  %v1509 = vpop.permute.xlu0 %1508
  %v1511 = vsel %vm325, %v1507, 0
  %v1514 = vsel %vm325, %v1509, 0
  %1516 = vmatprep.subr.bf16.mxu0 0
  %1517 = vmatpush1.bf16.xpose.msra.mxu0 0
  %1518 = vmatprep.subr.bf16.mxu0 0
  %1519 = vmatpush1.bf16.xpose.msra.mxu0 0
  %1520 = vmatprep.subr.bf16.mxu0 0
  %1521 = vmatpush1.bf16.xpose.msra.mxu0 0
  %1522 = vmatprep.subr.bf16.mxu0 0
  %1523 = vmatpush1.bf16.xpose.msra.mxu0 0
  %1524 = vmatprep.subr.bf16.mxu0 0
  %1525 = vmatpush1.bf16.xpose.msra.mxu0 0
  %1526 = vmatprep.subr.bf16.mxu0 0
  %1527 = vmatpush1.bf16.xpose.msra.mxu0 0
  %1528 = vmatprep.subr.bf16.mxu0 0
  %1529 = vmatpush1.bf16.xpose.msra.mxu0 0
  %1530 = vmatprep.subr.bf16.mxu0 0
  %1531 = vmatpush1.bf16.xpose.msra.mxu0 %v1514
  %1532 = vmatprep.subr.bf16.mxu0 0
  %1533 = vmatpush2.bf16.xpose.msra.mxu0 0
  %1534 = vmatprep.subr.bf16.mxu0 0
  %1535 = vmatpush2.bf16.xpose.msra.mxu0 0
  %1536 = vmatprep.subr.bf16.mxu0 0
  %1537 = vmatpush2.bf16.xpose.msra.mxu0 0
  %1538 = vmatprep.subr.bf16.mxu0 0
  %1539 = vmatpush2.bf16.xpose.msra.mxu0 0
  %1540 = vmatprep.subr.bf16.mxu0 0
  %1541 = vmatpush2.bf16.xpose.msra.mxu0 0
  %1542 = vmatprep.subr.bf16.mxu0 0
  %1543 = vmatpush2.bf16.xpose.msra.mxu0 0
  %1544 = vmatprep.subr.bf16.mxu0 0
  %1545 = vmatpush2.bf16.xpose.msra.mxu0 0
  %1546 = vmatprep.subr.bf16.mxu0 0
  %1547 = vmatpush2.bf16.xpose.msra.mxu0 0
  %1548 = vmatprep.mubr.bf16.mxu0 0
  %1549 = vmatmul.mubr.bf16.gmra.mxu0 %v1511
  %v1550 = vpop.f32.mrf.mxu0
  %v1551 = vadd.f32 0.0, %v1550
  %v1552 = vpop.f32.mrf.mxu0
  %v1553 = vpop.f32.mrf.mxu0
  %v1554 = vpop.f32.mrf.mxu0
  %1555 = vdwg.mxu0
  %1556 = vrot.lane.b32.xlu0 %v318, 112
  %v1557 = vpop.permute.xlu0 %1556
  %1558 = vrot.lane.b32.xlu0 %v318, 80
  %v1559 = vpop.permute.xlu0 %1558
  %v1561 = vsel %vm325, %v1557, 0
  %v1564 = vsel %vm325, %v1559, 0
  %1566 = vmatprep.subr.bf16.mxu0 0
  %1567 = vmatpush1.bf16.xpose.msra.mxu0 0
  %1568 = vmatprep.subr.bf16.mxu0 0
  %1569 = vmatpush1.bf16.xpose.msra.mxu0 0
  %1570 = vmatprep.subr.bf16.mxu0 0
  %1571 = vmatpush1.bf16.xpose.msra.mxu0 0
  %1572 = vmatprep.subr.bf16.mxu0 0
  %1573 = vmatpush1.bf16.xpose.msra.mxu0 0
  %1574 = vmatprep.subr.bf16.mxu0 0
  %1575 = vmatpush1.bf16.xpose.msra.mxu0 0
  %1576 = vmatprep.subr.bf16.mxu0 0
  %1577 = vmatpush1.bf16.xpose.msra.mxu0 0
  %1578 = vmatprep.subr.bf16.mxu0 0
  %1579 = vmatpush1.bf16.xpose.msra.mxu0 0
  %1580 = vmatprep.subr.bf16.mxu0 0
  %1581 = vmatpush1.bf16.xpose.msra.mxu0 %v1564
  %1582 = vmatprep.subr.bf16.mxu0 0
  %1583 = vmatpush2.bf16.xpose.msra.mxu0 0
  %1584 = vmatprep.subr.bf16.mxu0 0
  %1585 = vmatpush2.bf16.xpose.msra.mxu0 0
  %1586 = vmatprep.subr.bf16.mxu0 0
  %1587 = vmatpush2.bf16.xpose.msra.mxu0 0
  %1588 = vmatprep.subr.bf16.mxu0 0
  %1589 = vmatpush2.bf16.xpose.msra.mxu0 0
  %1590 = vmatprep.subr.bf16.mxu0 0
  %1591 = vmatpush2.bf16.xpose.msra.mxu0 0
  %1592 = vmatprep.subr.bf16.mxu0 0
  %1593 = vmatpush2.bf16.xpose.msra.mxu0 0
  %1594 = vmatprep.subr.bf16.mxu0 0
  %1595 = vmatpush2.bf16.xpose.msra.mxu0 0
  %1596 = vmatprep.subr.bf16.mxu0 0
  %1597 = vmatpush2.bf16.xpose.msra.mxu0 0
  %1598 = vmatprep.mubr.bf16.mxu0 0
  %1599 = vmatmul.mubr.bf16.gmra.mxu0 %v1561
  %v1600 = vpop.f32.mrf.mxu0
  %v1601 = vadd.f32 0.0, %v1600
  %v1602 = vpop.f32.mrf.mxu0
  %v1603 = vpop.f32.mrf.mxu0
  %v1604 = vpop.f32.mrf.mxu0
  %1605 = vdwg.mxu0
  %1606 = vrot.lane.b32.xlu0 %v319, 112
  %v1607 = vpop.permute.xlu0 %1606
  %1608 = vrot.lane.b32.xlu0 %v319, 80
  %v1609 = vpop.permute.xlu0 %1608
  %v1611 = vsel %vm325, %v1607, 0
  %v1614 = vsel %vm325, %v1609, 0
  %1616 = vmatprep.subr.bf16.mxu0 0
  %1617 = vmatpush1.bf16.xpose.msra.mxu0 0
  %1618 = vmatprep.subr.bf16.mxu0 0
  %1619 = vmatpush1.bf16.xpose.msra.mxu0 0
  %1620 = vmatprep.subr.bf16.mxu0 0
  %1621 = vmatpush1.bf16.xpose.msra.mxu0 0
  %1622 = vmatprep.subr.bf16.mxu0 0
  %1623 = vmatpush1.bf16.xpose.msra.mxu0 0
  %1624 = vmatprep.subr.bf16.mxu0 0
  %1625 = vmatpush1.bf16.xpose.msra.mxu0 0
  %1626 = vmatprep.subr.bf16.mxu0 0
  %1627 = vmatpush1.bf16.xpose.msra.mxu0 0
  %1628 = vmatprep.subr.bf16.mxu0 0
  %1629 = vmatpush1.bf16.xpose.msra.mxu0 0
  %1630 = vmatprep.subr.bf16.mxu0 0
  %1631 = vmatpush1.bf16.xpose.msra.mxu0 %v1614
  %1632 = vmatprep.subr.bf16.mxu0 0
  %1633 = vmatpush2.bf16.xpose.msra.mxu0 0
  %1634 = vmatprep.subr.bf16.mxu0 0
  %1635 = vmatpush2.bf16.xpose.msra.mxu0 0
  %1636 = vmatprep.subr.bf16.mxu0 0
  %1637 = vmatpush2.bf16.xpose.msra.mxu0 0
  %1638 = vmatprep.subr.bf16.mxu0 0
  %1639 = vmatpush2.bf16.xpose.msra.mxu0 0
  %1640 = vmatprep.subr.bf16.mxu0 0
  %1641 = vmatpush2.bf16.xpose.msra.mxu0 0
  %1642 = vmatprep.subr.bf16.mxu0 0
  %1643 = vmatpush2.bf16.xpose.msra.mxu0 0
  %1644 = vmatprep.subr.bf16.mxu0 0
  %1645 = vmatpush2.bf16.xpose.msra.mxu0 0
  %1646 = vmatprep.subr.bf16.mxu0 0
  %1647 = vmatpush2.bf16.xpose.msra.mxu0 0
  %1648 = vmatprep.mubr.bf16.mxu0 0
  %1649 = vmatmul.mubr.bf16.gmra.mxu0 %v1611
  %v1650 = vpop.f32.mrf.mxu0
  %v1651 = vadd.f32 0.0, %v1650
  %v1652 = vpop.f32.mrf.mxu0
  %v1653 = vpop.f32.mrf.mxu0
  %v1654 = vpop.f32.mrf.mxu0
  %1655 = vdwg.mxu0
  %1656 = vrot.lane.b32.xlu0 %v320, 112
  %v1657 = vpop.permute.xlu0 %1656
  %1658 = vrot.lane.b32.xlu0 %v320, 80
  %v1659 = vpop.permute.xlu0 %1658
  %v1661 = vsel %vm325, %v1657, 0
  %v1664 = vsel %vm325, %v1659, 0
  %1666 = vmatprep.subr.bf16.mxu0 0
  %1667 = vmatpush1.bf16.xpose.msra.mxu0 0
  %1668 = vmatprep.subr.bf16.mxu0 0
  %1669 = vmatpush1.bf16.xpose.msra.mxu0 0
  %1670 = vmatprep.subr.bf16.mxu0 0
  %1671 = vmatpush1.bf16.xpose.msra.mxu0 0
  %1672 = vmatprep.subr.bf16.mxu0 0
  %1673 = vmatpush1.bf16.xpose.msra.mxu0 0
  %1674 = vmatprep.subr.bf16.mxu0 0
  %1675 = vmatpush1.bf16.xpose.msra.mxu0 0
  %1676 = vmatprep.subr.bf16.mxu0 0
  %1677 = vmatpush1.bf16.xpose.msra.mxu0 0
  %1678 = vmatprep.subr.bf16.mxu0 0
  %1679 = vmatpush1.bf16.xpose.msra.mxu0 0
  %1680 = vmatprep.subr.bf16.mxu0 0
  %1681 = vmatpush1.bf16.xpose.msra.mxu0 %v1664
  %1682 = vmatprep.subr.bf16.mxu0 0
  %1683 = vmatpush2.bf16.xpose.msra.mxu0 0
  %1684 = vmatprep.subr.bf16.mxu0 0
  %1685 = vmatpush2.bf16.xpose.msra.mxu0 0
  %1686 = vmatprep.subr.bf16.mxu0 0
  %1687 = vmatpush2.bf16.xpose.msra.mxu0 0
  %1688 = vmatprep.subr.bf16.mxu0 0
  %1689 = vmatpush2.bf16.xpose.msra.mxu0 0
  %1690 = vmatprep.subr.bf16.mxu0 0
  %1691 = vmatpush2.bf16.xpose.msra.mxu0 0
  %1692 = vmatprep.subr.bf16.mxu0 0
  %1693 = vmatpush2.bf16.xpose.msra.mxu0 0
  %1694 = vmatprep.subr.bf16.mxu0 0
  %1695 = vmatpush2.bf16.xpose.msra.mxu0 0
  %1696 = vmatprep.subr.bf16.mxu0 0
  %1697 = vmatpush2.bf16.xpose.msra.mxu0 0
  %1698 = vmatprep.mubr.bf16.mxu0 0
  %1699 = vmatmul.mubr.bf16.gmra.mxu0 %v1661
  %v1700 = vpop.f32.mrf.mxu0
  %v1701 = vadd.f32 0.0, %v1700
  %v1702 = vpop.f32.mrf.mxu0
  %v1703 = vpop.f32.mrf.mxu0
  %v1704 = vpop.f32.mrf.mxu0
  %1705 = vdwg.mxu0
  %1706 = vrot.lane.b32.xlu0 %v321, 112
  %v1707 = vpop.permute.xlu0 %1706
  %1708 = vrot.lane.b32.xlu0 %v321, 80
  %v1709 = vpop.permute.xlu0 %1708
  %v1711 = vsel %vm325, %v1707, 0
  %v1714 = vsel %vm325, %v1709, 0
  %1716 = vmatprep.subr.bf16.mxu0 0
  %1717 = vmatpush1.bf16.xpose.msra.mxu0 0
  %1718 = vmatprep.subr.bf16.mxu0 0
  %1719 = vmatpush1.bf16.xpose.msra.mxu0 0
  %1720 = vmatprep.subr.bf16.mxu0 0
  %1721 = vmatpush1.bf16.xpose.msra.mxu0 0
  %1722 = vmatprep.subr.bf16.mxu0 0
  %1723 = vmatpush1.bf16.xpose.msra.mxu0 0
  %1724 = vmatprep.subr.bf16.mxu0 0
  %1725 = vmatpush1.bf16.xpose.msra.mxu0 0
  %1726 = vmatprep.subr.bf16.mxu0 0
  %1727 = vmatpush1.bf16.xpose.msra.mxu0 0
  %1728 = vmatprep.subr.bf16.mxu0 0
  %1729 = vmatpush1.bf16.xpose.msra.mxu0 0
  %1730 = vmatprep.subr.bf16.mxu0 0
  %1731 = vmatpush1.bf16.xpose.msra.mxu0 %v1714
  %1732 = vmatprep.subr.bf16.mxu0 0
  %1733 = vmatpush2.bf16.xpose.msra.mxu0 0
  %1734 = vmatprep.subr.bf16.mxu0 0
  %1735 = vmatpush2.bf16.xpose.msra.mxu0 0
  %1736 = vmatprep.subr.bf16.mxu0 0
  %1737 = vmatpush2.bf16.xpose.msra.mxu0 0
  %1738 = vmatprep.subr.bf16.mxu0 0
  %1739 = vmatpush2.bf16.xpose.msra.mxu0 0
  %1740 = vmatprep.subr.bf16.mxu0 0
  %1741 = vmatpush2.bf16.xpose.msra.mxu0 0
  %1742 = vmatprep.subr.bf16.mxu0 0
  %1743 = vmatpush2.bf16.xpose.msra.mxu0 0
  %1744 = vmatprep.subr.bf16.mxu0 0
  %1745 = vmatpush2.bf16.xpose.msra.mxu0 0
  %1746 = vmatprep.subr.bf16.mxu0 0
  %1747 = vmatpush2.bf16.xpose.msra.mxu0 0
  %1748 = vmatprep.mubr.bf16.mxu0 0
  %1749 = vmatmul.mubr.bf16.gmra.mxu0 %v1711
  %v1750 = vpop.f32.mrf.mxu0
  %v1751 = vadd.f32 0.0, %v1750
  %v1752 = vpop.f32.mrf.mxu0
  %v1753 = vpop.f32.mrf.mxu0
  %v1754 = vpop.f32.mrf.mxu0
  %1755 = vdwg.mxu0
  %v1756 = vmul.f32 %v1401, 0.25
  %v1757 = vmul.f32 %v1451, 0.25
  %v1758 = vmul.f32 %v1501, 0.25
  %v1759 = vmul.f32 %v1551, 0.25
  %v1760 = vmul.f32 %v1601, 0.25
  %v1761 = vmul.f32 %v1651, 0.25
  %v1762 = vmul.f32 %v1701, 0.25
  %v1763 = vmul.f32 %v1751, 0.25
  %v1764 = vadd.f32 %v1756, %v726
  %v1765 = vadd.f32 %v1757, %v730
  %v1766 = vadd.f32 %v1758, %v734
  %v1767 = vadd.f32 %v1759, %v738
  %v1768 = vadd.f32 %v1760, %v742
  %v1769 = vadd.f32 %v1761, %v746
  %v1770 = vadd.f32 %v1762, %v750
  %v1771 = vadd.f32 %v1763, %v754
  %v1772 = vsel %vm771, %v1764, -inf
  %1773 = vmax.xlane.f32.xlu0 %v1772
  %v1774 = vpop.xlane.xlu0 %1773
  %v1775 = vsel %vm771, %v1765, -inf
  %1776 = vmax.xlane.f32.xlu0 %v1775
  %v1777 = vpop.xlane.xlu0 %1776
  %v1778 = vsel %vm771, %v1766, -inf
  %1779 = vmax.xlane.f32.xlu0 %v1778
  %v1780 = vpop.xlane.xlu0 %1779
  %v1781 = vsel %vm771, %v1767, -inf
  %1782 = vmax.xlane.f32.xlu0 %v1781
  %v1783 = vpop.xlane.xlu0 %1782
  %v1784 = vsel %vm771, %v1768, -inf
  %1785 = vmax.xlane.f32.xlu0 %v1784
  %v1786 = vpop.xlane.xlu0 %1785
  %v1787 = vsel %vm771, %v1769, -inf
  %1788 = vmax.xlane.f32.xlu0 %v1787
  %v1789 = vpop.xlane.xlu0 %1788
  %v1790 = vsel %vm771, %v1770, -inf
  %1791 = vmax.xlane.f32.xlu0 %v1790
  %v1792 = vpop.xlane.xlu0 %1791
  %v1793 = vsel %vm771, %v1771, -inf
  %1794 = vmax.xlane.f32.xlu0 %v1793
  %v1795 = vpop.xlane.xlu0 %1794
  %v1796 = vsub.f32 %v1764, %v1774
  %v1797 = vsub.f32 %v1765, %v1777
  %v1798 = vsub.f32 %v1766, %v1780
  %v1799 = vsub.f32 %v1767, %v1783
  %v1800 = vsub.f32 %v1768, %v1786
  %v1801 = vsub.f32 %v1769, %v1789
  %v1802 = vsub.f32 %v1770, %v1792
  %v1803 = vsub.f32 %v1771, %v1795
  %v1804 = vmul.f32 %v1796, 1.442695
  %v1805 = vpow.pop %v1804
  %v1806 = vmul.f32 %v1797, 1.442695
  %v1807 = vpow.pop %v1806
  %v1808 = vmul.f32 %v1798, 1.442695
  %v1809 = vpow.pop %v1808
  %v1810 = vmul.f32 %v1799, 1.442695
  %v1811 = vpow.pop %v1810
  %v1812 = vmul.f32 %v1800, 1.442695
  %v1813 = vpow.pop %v1812
  %v1814 = vmul.f32 %v1801, 1.442695
  %v1815 = vpow.pop %v1814
  %v1816 = vmul.f32 %v1802, 1.442695
  %v1817 = vpow.pop %v1816
  %v1818 = vmul.f32 %v1803, 1.442695
  %v1819 = vpow.pop %v1818
  %v1820 = vsel %vm771, %v1805, 0.0
  %1821 = vadd.xlane.f32.xlu0 %v1820
  %v1822 = vpop.xlane.xlu0 %1821
  %v1823 = vsel %vm771, %v1807, 0.0
  %1824 = vadd.xlane.f32.xlu0 %v1823
  %v1825 = vpop.xlane.xlu0 %1824
  %v1826 = vsel %vm771, %v1809, 0.0
  %1827 = vadd.xlane.f32.xlu0 %v1826
  %v1828 = vpop.xlane.xlu0 %1827
  %v1829 = vsel %vm771, %v1811, 0.0
  %1830 = vadd.xlane.f32.xlu0 %v1829
  %v1831 = vpop.xlane.xlu0 %1830
  %v1832 = vsel %vm771, %v1813, 0.0
  %1833 = vadd.xlane.f32.xlu0 %v1832
  %v1834 = vpop.xlane.xlu0 %1833
  %v1835 = vsel %vm771, %v1815, 0.0
  %1836 = vadd.xlane.f32.xlu0 %v1835
  %v1837 = vpop.xlane.xlu0 %1836
  %v1838 = vsel %vm771, %v1817, 0.0
  %1839 = vadd.xlane.f32.xlu0 %v1838
  %v1840 = vpop.xlane.xlu0 %1839
  %v1841 = vsel %vm771, %v1819, 0.0
  %1842 = vadd.xlane.f32.xlu0 %v1841
  %v1843 = vpop.xlane.xlu0 %1842
  %v1844 = vrcp.pop %v1822
  %v1845 = vrcp.pop %v1825
  %v1846 = vrcp.pop %v1828
  %v1847 = vrcp.pop %v1831
  %v1848 = vrcp.pop %v1834
  %v1849 = vrcp.pop %v1837
  %v1850 = vrcp.pop %v1840
  %v1851 = vrcp.pop %v1843
  %v1852 = vmul.f32 %v1805, %v1844
  %v1853 = vmul.f32 %v1807, %v1845
  %v1854 = vmul.f32 %v1809, %v1846
  %v1855 = vmul.f32 %v1811, %v1847
  %v1856 = vmul.f32 %v1813, %v1848
  %v1857 = vmul.f32 %v1815, %v1849
  %v1858 = vmul.f32 %v1817, %v1850
  %v1859 = vmul.f32 %v1819, %v1851
  %v1860 = vpack.c.bf16 %v1852, %v1852
  %v1861 = vpack.c.bf16 %v1853, %v1853
  %v1862 = vpack.c.bf16 %v1854, %v1854
  %v1863 = vpack.c.bf16 %v1855, %v1855
  %v1864 = vpack.c.bf16 %v1856, %v1856
  %v1865 = vpack.c.bf16 %v1857, %v1857
  %v1866 = vpack.c.bf16 %v1858, %v1858
  %v1867 = vpack.c.bf16 %v1859, %v1859
  %1868 = vrot.lane.b32.xlu0 %v314, 48
  %v1869 = vpop.permute.xlu0 %1868
  %v1871 = vsel %vm771, %v1860, 0
  %v1874 = vsel %vm873, %v1869, 0
  %1876 = vmatprep.subr.bf16.mxu0 0
  %1877 = vmatpush1.bf16.msra.mxu0 0
  %1878 = vmatprep.subr.bf16.mxu0 0
  %1879 = vmatpush1.bf16.msra.mxu0 0
  %1880 = vmatprep.subr.bf16.mxu0 0
  %1881 = vmatpush1.bf16.msra.mxu0 0
  %1882 = vmatprep.subr.bf16.mxu0 0
  %1883 = vmatpush1.bf16.msra.mxu0 0
  %1884 = vmatprep.subr.bf16.mxu0 0
  %1885 = vmatpush1.bf16.msra.mxu0 0
  %1886 = vmatprep.subr.bf16.mxu0 0
  %1887 = vmatpush1.bf16.msra.mxu0 0
  %1888 = vmatprep.subr.bf16.mxu0 0
  %1889 = vmatpush1.bf16.msra.mxu0 0
  %1890 = vmatprep.subr.bf16.mxu0 0
  %1891 = vmatpush1.bf16.msra.mxu0 %v1874
  %1892 = vmatprep.subr.bf16.mxu0 0
  %1893 = vmatpush2.bf16.msra.mxu0 0
  %1894 = vmatprep.subr.bf16.mxu0 0
  %1895 = vmatpush2.bf16.msra.mxu0 0
  %1896 = vmatprep.subr.bf16.mxu0 0
  %1897 = vmatpush2.bf16.msra.mxu0 0
  %1898 = vmatprep.subr.bf16.mxu0 0
  %1899 = vmatpush2.bf16.msra.mxu0 0
  %1900 = vmatprep.subr.bf16.mxu0 0
  %1901 = vmatpush2.bf16.msra.mxu0 0
  %1902 = vmatprep.subr.bf16.mxu0 0
  %1903 = vmatpush2.bf16.msra.mxu0 0
  %1904 = vmatprep.subr.bf16.mxu0 0
  %1905 = vmatpush2.bf16.msra.mxu0 0
  %1906 = vmatprep.subr.bf16.mxu0 0
  %1907 = vmatpush2.bf16.msra.mxu0 0
  %1908 = vmatprep.mubr.bf16.mxu0 0
  %1909 = vmatmul.mubr.bf16.gmra.mxu0 %v1871
  %v1910 = vpop.f32.mrf.mxu0
  %v1911 = vadd.f32 0.0, %v1910
  %v1912 = vpop.f32.mrf.mxu0
  %v1913 = vpop.f32.mrf.mxu0
  %v1914 = vpop.f32.mrf.mxu0
  %1915 = vdwg.mxu0
  %1916 = vrot.lane.b32.xlu0 %v315, 48
  %v1917 = vpop.permute.xlu0 %1916
  %v1919 = vsel %vm771, %v1861, 0
  %v1922 = vsel %vm873, %v1917, 0
  %1924 = vmatprep.subr.bf16.mxu0 0
  %1925 = vmatpush1.bf16.msra.mxu0 0
  %1926 = vmatprep.subr.bf16.mxu0 0
  %1927 = vmatpush1.bf16.msra.mxu0 0
  %1928 = vmatprep.subr.bf16.mxu0 0
  %1929 = vmatpush1.bf16.msra.mxu0 0
  %1930 = vmatprep.subr.bf16.mxu0 0
  %1931 = vmatpush1.bf16.msra.mxu0 0
  %1932 = vmatprep.subr.bf16.mxu0 0
  %1933 = vmatpush1.bf16.msra.mxu0 0
  %1934 = vmatprep.subr.bf16.mxu0 0
  %1935 = vmatpush1.bf16.msra.mxu0 0
  %1936 = vmatprep.subr.bf16.mxu0 0
  %1937 = vmatpush1.bf16.msra.mxu0 0
  %1938 = vmatprep.subr.bf16.mxu0 0
  %1939 = vmatpush1.bf16.msra.mxu0 %v1922
  %1940 = vmatprep.subr.bf16.mxu0 0
  %1941 = vmatpush2.bf16.msra.mxu0 0
  %1942 = vmatprep.subr.bf16.mxu0 0
  %1943 = vmatpush2.bf16.msra.mxu0 0
  %1944 = vmatprep.subr.bf16.mxu0 0
  %1945 = vmatpush2.bf16.msra.mxu0 0
  %1946 = vmatprep.subr.bf16.mxu0 0
  %1947 = vmatpush2.bf16.msra.mxu0 0
  %1948 = vmatprep.subr.bf16.mxu0 0
  %1949 = vmatpush2.bf16.msra.mxu0 0
  %1950 = vmatprep.subr.bf16.mxu0 0
  %1951 = vmatpush2.bf16.msra.mxu0 0
  %1952 = vmatprep.subr.bf16.mxu0 0
  %1953 = vmatpush2.bf16.msra.mxu0 0
  %1954 = vmatprep.subr.bf16.mxu0 0
  %1955 = vmatpush2.bf16.msra.mxu0 0
  %1956 = vmatprep.mubr.bf16.mxu0 0
  %1957 = vmatmul.mubr.bf16.gmra.mxu0 %v1919
  %v1958 = vpop.f32.mrf.mxu0
  %v1959 = vadd.f32 0.0, %v1958
  %v1960 = vpop.f32.mrf.mxu0
  %v1961 = vpop.f32.mrf.mxu0
  %v1962 = vpop.f32.mrf.mxu0
  %1963 = vdwg.mxu0
  %1964 = vrot.lane.b32.xlu0 %v316, 48
  %v1965 = vpop.permute.xlu0 %1964
  %v1967 = vsel %vm771, %v1862, 0
  %v1970 = vsel %vm873, %v1965, 0
  %1972 = vmatprep.subr.bf16.mxu0 0
  %1973 = vmatpush1.bf16.msra.mxu0 0
  %1974 = vmatprep.subr.bf16.mxu0 0
  %1975 = vmatpush1.bf16.msra.mxu0 0
  %1976 = vmatprep.subr.bf16.mxu0 0
  %1977 = vmatpush1.bf16.msra.mxu0 0
  %1978 = vmatprep.subr.bf16.mxu0 0
  %1979 = vmatpush1.bf16.msra.mxu0 0
  %1980 = vmatprep.subr.bf16.mxu0 0
  %1981 = vmatpush1.bf16.msra.mxu0 0
  %1982 = vmatprep.subr.bf16.mxu0 0
  %1983 = vmatpush1.bf16.msra.mxu0 0
  %1984 = vmatprep.subr.bf16.mxu0 0
  %1985 = vmatpush1.bf16.msra.mxu0 0
  %1986 = vmatprep.subr.bf16.mxu0 0
  %1987 = vmatpush1.bf16.msra.mxu0 %v1970
  %1988 = vmatprep.subr.bf16.mxu0 0
  %1989 = vmatpush2.bf16.msra.mxu0 0
  %1990 = vmatprep.subr.bf16.mxu0 0
  %1991 = vmatpush2.bf16.msra.mxu0 0
  %1992 = vmatprep.subr.bf16.mxu0 0
  %1993 = vmatpush2.bf16.msra.mxu0 0
  %1994 = vmatprep.subr.bf16.mxu0 0
  %1995 = vmatpush2.bf16.msra.mxu0 0
  %1996 = vmatprep.subr.bf16.mxu0 0
  %1997 = vmatpush2.bf16.msra.mxu0 0
  %1998 = vmatprep.subr.bf16.mxu0 0
  %1999 = vmatpush2.bf16.msra.mxu0 0
  %2000 = vmatprep.subr.bf16.mxu0 0
  %2001 = vmatpush2.bf16.msra.mxu0 0
  %2002 = vmatprep.subr.bf16.mxu0 0
  %2003 = vmatpush2.bf16.msra.mxu0 0
  %2004 = vmatprep.mubr.bf16.mxu0 0
  %2005 = vmatmul.mubr.bf16.gmra.mxu0 %v1967
  %v2006 = vpop.f32.mrf.mxu0
  %v2007 = vadd.f32 0.0, %v2006
  %v2008 = vpop.f32.mrf.mxu0
  %v2009 = vpop.f32.mrf.mxu0
  %v2010 = vpop.f32.mrf.mxu0
  %2011 = vdwg.mxu0
  %2012 = vrot.lane.b32.xlu0 %v317, 48
  %v2013 = vpop.permute.xlu0 %2012
  %v2015 = vsel %vm771, %v1863, 0
  %v2018 = vsel %vm873, %v2013, 0
  %2020 = vmatprep.subr.bf16.mxu0 0
  %2021 = vmatpush1.bf16.msra.mxu0 0
  %2022 = vmatprep.subr.bf16.mxu0 0
  %2023 = vmatpush1.bf16.msra.mxu0 0
  %2024 = vmatprep.subr.bf16.mxu0 0
  %2025 = vmatpush1.bf16.msra.mxu0 0
  %2026 = vmatprep.subr.bf16.mxu0 0
  %2027 = vmatpush1.bf16.msra.mxu0 0
  %2028 = vmatprep.subr.bf16.mxu0 0
  %2029 = vmatpush1.bf16.msra.mxu0 0
  %2030 = vmatprep.subr.bf16.mxu0 0
  %2031 = vmatpush1.bf16.msra.mxu0 0
  %2032 = vmatprep.subr.bf16.mxu0 0
  %2033 = vmatpush1.bf16.msra.mxu0 0
  %2034 = vmatprep.subr.bf16.mxu0 0
  %2035 = vmatpush1.bf16.msra.mxu0 %v2018
  %2036 = vmatprep.subr.bf16.mxu0 0
  %2037 = vmatpush2.bf16.msra.mxu0 0
  %2038 = vmatprep.subr.bf16.mxu0 0
  %2039 = vmatpush2.bf16.msra.mxu0 0
  %2040 = vmatprep.subr.bf16.mxu0 0
  %2041 = vmatpush2.bf16.msra.mxu0 0
  %2042 = vmatprep.subr.bf16.mxu0 0
  %2043 = vmatpush2.bf16.msra.mxu0 0
  %2044 = vmatprep.subr.bf16.mxu0 0
  %2045 = vmatpush2.bf16.msra.mxu0 0
  %2046 = vmatprep.subr.bf16.mxu0 0
  %2047 = vmatpush2.bf16.msra.mxu0 0
  %2048 = vmatprep.subr.bf16.mxu0 0
  %2049 = vmatpush2.bf16.msra.mxu0 0
  %2050 = vmatprep.subr.bf16.mxu0 0
  %2051 = vmatpush2.bf16.msra.mxu0 0
  %2052 = vmatprep.mubr.bf16.mxu0 0
  %2053 = vmatmul.mubr.bf16.gmra.mxu0 %v2015
  %v2054 = vpop.f32.mrf.mxu0
  %v2055 = vadd.f32 0.0, %v2054
  %v2056 = vpop.f32.mrf.mxu0
  %v2057 = vpop.f32.mrf.mxu0
  %v2058 = vpop.f32.mrf.mxu0
  %2059 = vdwg.mxu0
  %2060 = vrot.lane.b32.xlu0 %v318, 48
  %v2061 = vpop.permute.xlu0 %2060
  %v2063 = vsel %vm771, %v1864, 0
  %v2066 = vsel %vm873, %v2061, 0
  %2068 = vmatprep.subr.bf16.mxu0 0
  %2069 = vmatpush1.bf16.msra.mxu0 0
  %2070 = vmatprep.subr.bf16.mxu0 0
  %2071 = vmatpush1.bf16.msra.mxu0 0
  %2072 = vmatprep.subr.bf16.mxu0 0
  %2073 = vmatpush1.bf16.msra.mxu0 0
  %2074 = vmatprep.subr.bf16.mxu0 0
  %2075 = vmatpush1.bf16.msra.mxu0 0
  %2076 = vmatprep.subr.bf16.mxu0 0
  %2077 = vmatpush1.bf16.msra.mxu0 0
  %2078 = vmatprep.subr.bf16.mxu0 0
  %2079 = vmatpush1.bf16.msra.mxu0 0
  %2080 = vmatprep.subr.bf16.mxu0 0
  %2081 = vmatpush1.bf16.msra.mxu0 0
  %2082 = vmatprep.subr.bf16.mxu0 0
  %2083 = vmatpush1.bf16.msra.mxu0 %v2066
  %2084 = vmatprep.subr.bf16.mxu0 0
  %2085 = vmatpush2.bf16.msra.mxu0 0
  %2086 = vmatprep.subr.bf16.mxu0 0
  %2087 = vmatpush2.bf16.msra.mxu0 0
  %2088 = vmatprep.subr.bf16.mxu0 0
  %2089 = vmatpush2.bf16.msra.mxu0 0
  %2090 = vmatprep.subr.bf16.mxu0 0
  %2091 = vmatpush2.bf16.msra.mxu0 0
  %2092 = vmatprep.subr.bf16.mxu0 0
  %2093 = vmatpush2.bf16.msra.mxu0 0
  %2094 = vmatprep.subr.bf16.mxu0 0
  %2095 = vmatpush2.bf16.msra.mxu0 0
  %2096 = vmatprep.subr.bf16.mxu0 0
  %2097 = vmatpush2.bf16.msra.mxu0 0
  %2098 = vmatprep.subr.bf16.mxu0 0
  %2099 = vmatpush2.bf16.msra.mxu0 0
  %2100 = vmatprep.mubr.bf16.mxu0 0
  %2101 = vmatmul.mubr.bf16.gmra.mxu0 %v2063
  %v2102 = vpop.f32.mrf.mxu0
  %v2103 = vadd.f32 0.0, %v2102
  %v2104 = vpop.f32.mrf.mxu0
  %v2105 = vpop.f32.mrf.mxu0
  %v2106 = vpop.f32.mrf.mxu0
  %2107 = vdwg.mxu0
  %2108 = vrot.lane.b32.xlu0 %v319, 48
  %v2109 = vpop.permute.xlu0 %2108
  %v2111 = vsel %vm771, %v1865, 0
  %v2114 = vsel %vm873, %v2109, 0
  %2116 = vmatprep.subr.bf16.mxu0 0
  %2117 = vmatpush1.bf16.msra.mxu0 0
  %2118 = vmatprep.subr.bf16.mxu0 0
  %2119 = vmatpush1.bf16.msra.mxu0 0
  %2120 = vmatprep.subr.bf16.mxu0 0
  %2121 = vmatpush1.bf16.msra.mxu0 0
  %2122 = vmatprep.subr.bf16.mxu0 0
  %2123 = vmatpush1.bf16.msra.mxu0 0
  %2124 = vmatprep.subr.bf16.mxu0 0
  %2125 = vmatpush1.bf16.msra.mxu0 0
  %2126 = vmatprep.subr.bf16.mxu0 0
  %2127 = vmatpush1.bf16.msra.mxu0 0
  %2128 = vmatprep.subr.bf16.mxu0 0
  %2129 = vmatpush1.bf16.msra.mxu0 0
  %2130 = vmatprep.subr.bf16.mxu0 0
  %2131 = vmatpush1.bf16.msra.mxu0 %v2114
  %2132 = vmatprep.subr.bf16.mxu0 0
  %2133 = vmatpush2.bf16.msra.mxu0 0
  %2134 = vmatprep.subr.bf16.mxu0 0
  %2135 = vmatpush2.bf16.msra.mxu0 0
  %2136 = vmatprep.subr.bf16.mxu0 0
  %2137 = vmatpush2.bf16.msra.mxu0 0
  %2138 = vmatprep.subr.bf16.mxu0 0
  %2139 = vmatpush2.bf16.msra.mxu0 0
  %2140 = vmatprep.subr.bf16.mxu0 0
  %2141 = vmatpush2.bf16.msra.mxu0 0
  %2142 = vmatprep.subr.bf16.mxu0 0
  %2143 = vmatpush2.bf16.msra.mxu0 0
  %2144 = vmatprep.subr.bf16.mxu0 0
  %2145 = vmatpush2.bf16.msra.mxu0 0
  %2146 = vmatprep.subr.bf16.mxu0 0
  %2147 = vmatpush2.bf16.msra.mxu0 0
  %2148 = vmatprep.mubr.bf16.mxu0 0
  %2149 = vmatmul.mubr.bf16.gmra.mxu0 %v2111
  %v2150 = vpop.f32.mrf.mxu0
  %v2151 = vadd.f32 0.0, %v2150
  %v2152 = vpop.f32.mrf.mxu0
  %v2153 = vpop.f32.mrf.mxu0
  %v2154 = vpop.f32.mrf.mxu0
  %2155 = vdwg.mxu0
  %2156 = vrot.lane.b32.xlu0 %v320, 48
  %v2157 = vpop.permute.xlu0 %2156
  %v2159 = vsel %vm771, %v1866, 0
  %v2162 = vsel %vm873, %v2157, 0
  %2164 = vmatprep.subr.bf16.mxu0 0
  %2165 = vmatpush1.bf16.msra.mxu0 0
  %2166 = vmatprep.subr.bf16.mxu0 0
  %2167 = vmatpush1.bf16.msra.mxu0 0
  %2168 = vmatprep.subr.bf16.mxu0 0
  %2169 = vmatpush1.bf16.msra.mxu0 0
  %2170 = vmatprep.subr.bf16.mxu0 0
  %2171 = vmatpush1.bf16.msra.mxu0 0
  %2172 = vmatprep.subr.bf16.mxu0 0
  %2173 = vmatpush1.bf16.msra.mxu0 0
  %2174 = vmatprep.subr.bf16.mxu0 0
  %2175 = vmatpush1.bf16.msra.mxu0 0
  %2176 = vmatprep.subr.bf16.mxu0 0
  %2177 = vmatpush1.bf16.msra.mxu0 0
  %2178 = vmatprep.subr.bf16.mxu0 0
  %2179 = vmatpush1.bf16.msra.mxu0 %v2162
  %2180 = vmatprep.subr.bf16.mxu0 0
  %2181 = vmatpush2.bf16.msra.mxu0 0
  %2182 = vmatprep.subr.bf16.mxu0 0
  %2183 = vmatpush2.bf16.msra.mxu0 0
  %2184 = vmatprep.subr.bf16.mxu0 0
  %2185 = vmatpush2.bf16.msra.mxu0 0
  %2186 = vmatprep.subr.bf16.mxu0 0
  %2187 = vmatpush2.bf16.msra.mxu0 0
  %2188 = vmatprep.subr.bf16.mxu0 0
  %2189 = vmatpush2.bf16.msra.mxu0 0
  %2190 = vmatprep.subr.bf16.mxu0 0
  %2191 = vmatpush2.bf16.msra.mxu0 0
  %2192 = vmatprep.subr.bf16.mxu0 0
  %2193 = vmatpush2.bf16.msra.mxu0 0
  %2194 = vmatprep.subr.bf16.mxu0 0
  %2195 = vmatpush2.bf16.msra.mxu0 0
  %2196 = vmatprep.mubr.bf16.mxu0 0
  %2197 = vmatmul.mubr.bf16.gmra.mxu0 %v2159
  %v2198 = vpop.f32.mrf.mxu0
  %v2199 = vadd.f32 0.0, %v2198
  %v2200 = vpop.f32.mrf.mxu0
  %v2201 = vpop.f32.mrf.mxu0
  %v2202 = vpop.f32.mrf.mxu0
  %2203 = vdwg.mxu0
  %2204 = vrot.lane.b32.xlu0 %v321, 48
  %v2205 = vpop.permute.xlu0 %2204
  %v2207 = vsel %vm771, %v1867, 0
  %v2210 = vsel %vm873, %v2205, 0
  %2212 = vmatprep.subr.bf16.mxu0 0
  %2213 = vmatpush1.bf16.msra.mxu0 0
  %2214 = vmatprep.subr.bf16.mxu0 0
  %2215 = vmatpush1.bf16.msra.mxu0 0
  %2216 = vmatprep.subr.bf16.mxu0 0
  %2217 = vmatpush1.bf16.msra.mxu0 0
  %2218 = vmatprep.subr.bf16.mxu0 0
  %2219 = vmatpush1.bf16.msra.mxu0 0
  %2220 = vmatprep.subr.bf16.mxu0 0
  %2221 = vmatpush1.bf16.msra.mxu0 0
  %2222 = vmatprep.subr.bf16.mxu0 0
  %2223 = vmatpush1.bf16.msra.mxu0 0
  %2224 = vmatprep.subr.bf16.mxu0 0
  %2225 = vmatpush1.bf16.msra.mxu0 0
  %2226 = vmatprep.subr.bf16.mxu0 0
  %2227 = vmatpush1.bf16.msra.mxu0 %v2210
  %2228 = vmatprep.subr.bf16.mxu0 0
  %2229 = vmatpush2.bf16.msra.mxu0 0
  %2230 = vmatprep.subr.bf16.mxu0 0
  %2231 = vmatpush2.bf16.msra.mxu0 0
  %2232 = vmatprep.subr.bf16.mxu0 0
  %2233 = vmatpush2.bf16.msra.mxu0 0
  %2234 = vmatprep.subr.bf16.mxu0 0
  %2235 = vmatpush2.bf16.msra.mxu0 0
  %2236 = vmatprep.subr.bf16.mxu0 0
  %2237 = vmatpush2.bf16.msra.mxu0 0
  %2238 = vmatprep.subr.bf16.mxu0 0
  %2239 = vmatpush2.bf16.msra.mxu0 0
  %2240 = vmatprep.subr.bf16.mxu0 0
  %2241 = vmatpush2.bf16.msra.mxu0 0
  %2242 = vmatprep.subr.bf16.mxu0 0
  %2243 = vmatpush2.bf16.msra.mxu0 0
  %2244 = vmatprep.mubr.bf16.mxu0 0
  %2245 = vmatmul.mubr.bf16.gmra.mxu0 %v2207
  %v2246 = vpop.f32.mrf.mxu0
  %v2247 = vadd.f32 0.0, %v2246
  %v2248 = vpop.f32.mrf.mxu0
  %v2249 = vpop.f32.mrf.mxu0
  %v2250 = vpop.f32.mrf.mxu0
  %2251 = vdwg.mxu0
  %v2252 = vld [vmem:[%s2 + $0x10] sm:$0xf]
  %v2253 = vld [vmem:[%s2 + $0x18] sm:$0xf]
  %v2254 = vpack.c.bf16 %v1959, %v1911
  %v2255 = vpack.c.bf16 %v2055, %v2007
  %v2256 = vpack.c.bf16 %v2151, %v2103
  %v2257 = vpack.c.bf16 %v2247, %v2199
  %v2260 = vunpack.c.l.b16 %v2252
  %v2261 = vunpack.c.l.b16 %v2253
  %v2262 = vpack.c.b16 %v2261, %v2260
  %2263 = vrot.lane.b32.xlu0 %v2262, 32
  %v2264 = vpop.permute.xlu0 %2263
  %v2267 = vsel %vm325, %v2254, 0
  %v2270 = vsel %vm325, %v2255, 0
  %v2273 = vsel %vm325, %v2256, 0
  %v2276 = vsel %vm325, %v2257, 0
  %2278 = vmatprep.subr.bf16.mxu0 0
  %2279 = vmatpush1.bf16.msra.mxu0 0
  %2280 = vmatprep.subr.bf16.mxu0 0
  %2281 = vmatpush1.bf16.msra.mxu0 0
  %2282 = vmatprep.subr.bf16.mxu0 0
  %2283 = vmatpush1.bf16.msra.mxu0 0
  %2284 = vmatprep.subr.bf16.mxu0 0
  %2285 = vmatpush1.bf16.msra.mxu0 0
  %2286 = vmatprep.subr.bf16.mxu0 0
  %2287 = vmatpush1.bf16.msra.mxu0 0
  %2288 = vmatprep.subr.bf16.mxu0 0
  %2289 = vmatpush1.bf16.msra.mxu0 0
  %2290 = vmatprep.subr.bf16.mxu0 0
  %2291 = vmatpush1.bf16.msra.mxu0 0
  %2292 = vmatprep.subr.bf16.mxu0 0
  %2293 = vmatpush1.bf16.msra.mxu0 %v2264
  %2294 = vmatprep.subr.bf16.mxu0 0
  %2295 = vmatpush2.bf16.msra.mxu0 0
  %2296 = vmatprep.subr.bf16.mxu0 0
  %2297 = vmatpush2.bf16.msra.mxu0 0
  %2298 = vmatprep.subr.bf16.mxu0 0
  %2299 = vmatpush2.bf16.msra.mxu0 0
  %2300 = vmatprep.subr.bf16.mxu0 0
  %2301 = vmatpush2.bf16.msra.mxu0 0
  %2302 = vmatprep.subr.bf16.mxu0 0
  %2303 = vmatpush2.bf16.msra.mxu0 0
  %2304 = vmatprep.subr.bf16.mxu0 0
  %2305 = vmatpush2.bf16.msra.mxu0 0
  %2306 = vmatprep.subr.bf16.mxu0 0
  %2307 = vmatpush2.bf16.msra.mxu0 0
  %2308 = vmatprep.subr.bf16.mxu0 0
  %2309 = vmatpush2.bf16.msra.mxu0 0
  %2310 = vmatprep.mubr.bf16.mxu0 0
  %2311 = vmatmul.mubr.bf16.gmra.mxu0 %v2267
  %v2312 = vpop.f32.mrf.mxu0
  %v2313 = vadd.f32 0.0, %v2312
  %v2314 = vpop.f32.mrf.mxu0
  %v2315 = vpop.f32.mrf.mxu0
  %v2316 = vadd.f32 0.0, %v2315
  %v2317 = vpop.f32.mrf.mxu0
  %2318 = vmatprep.mubr.bf16.mxu0 0
  %2319 = vmatmul.mubr.bf16.gmra.mxu0 %v2270
  %v2320 = vpop.f32.mrf.mxu0
  %v2321 = vadd.f32 0.0, %v2320
  %v2322 = vpop.f32.mrf.mxu0
  %v2323 = vpop.f32.mrf.mxu0
  %v2324 = vadd.f32 0.0, %v2323
  %v2325 = vpop.f32.mrf.mxu0
  %2326 = vmatprep.mubr.bf16.mxu0 0
  %2327 = vmatmul.mubr.bf16.gmra.mxu0 %v2273
  %v2328 = vpop.f32.mrf.mxu0
  %v2329 = vadd.f32 0.0, %v2328
  %v2330 = vpop.f32.mrf.mxu0
  %v2331 = vpop.f32.mrf.mxu0
  %v2332 = vadd.f32 0.0, %v2331
  %v2333 = vpop.f32.mrf.mxu0
  %2334 = vmatprep.mubr.bf16.mxu0 0
  %2335 = vmatmul.mubr.bf16.gmra.mxu0 %v2276
  %v2336 = vpop.f32.mrf.mxu0
  %v2337 = vadd.f32 0.0, %v2336
  %v2338 = vpop.f32.mrf.mxu0
  %v2339 = vpop.f32.mrf.mxu0
  %v2340 = vadd.f32 0.0, %v2339
  %v2341 = vpop.f32.mrf.mxu0
  %2342 = vdwg.mxu0
  %v2343 = vadd.f32 %v1348, %v2313
  %v2344 = vadd.f32 %v1349, %v2316
  %v2345 = vadd.f32 %v1350, %v2321
  %v2346 = vadd.f32 %v1351, %v2324
  %v2347 = vadd.f32 %v1352, %v2329
  %v2348 = vadd.f32 %v1353, %v2332
  %v2349 = vadd.f32 %v1354, %v2337
  %v2350 = vadd.f32 %v1355, %v2340
  %v2351 = vadd.f32 %v153, %v2343
  %v2352 = vadd.f32 %v154, %v2344
  %v2353 = vadd.f32 %v155, %v2345
  %v2354 = vadd.f32 %v156, %v2346
  %v2355 = vadd.f32 %v157, %v2347
  %v2356 = vadd.f32 %v158, %v2348
  %v2357 = vadd.f32 %v159, %v2349
  %v2358 = vadd.f32 %v160, %v2350
  %v2359 = vsel %vm31, %v2351, 0.0
  %2360 = vadd.xlane.f32.xlu0 %v2359
  %v2361 = vpop.xlane.xlu0 %2360
  %v2362 = vsel %vm31, %v2352, 0.0
  %2363 = vadd.xlane.f32.xlu0 %v2362
  %v2364 = vpop.xlane.xlu0 %2363
  %v2365 = vsel %vm31, %v2353, 0.0
  %2366 = vadd.xlane.f32.xlu0 %v2365
  %v2367 = vpop.xlane.xlu0 %2366
  %v2368 = vsel %vm31, %v2354, 0.0
  %2369 = vadd.xlane.f32.xlu0 %v2368
  %v2370 = vpop.xlane.xlu0 %2369
  %v2371 = vsel %vm31, %v2355, 0.0
  %2372 = vadd.xlane.f32.xlu0 %v2371
  %v2373 = vpop.xlane.xlu0 %2372
  %v2374 = vsel %vm31, %v2356, 0.0
  %2375 = vadd.xlane.f32.xlu0 %v2374
  %v2376 = vpop.xlane.xlu0 %2375
  %v2377 = vsel %vm31, %v2357, 0.0
  %2378 = vadd.xlane.f32.xlu0 %v2377
  %v2379 = vpop.xlane.xlu0 %2378
  %v2380 = vsel %vm31, %v2358, 0.0
  %2381 = vadd.xlane.f32.xlu0 %v2380
  %v2382 = vpop.xlane.xlu0 %2381
  %v2383 = vmul.f32 %v2361, %v56
  %v2384 = vmul.f32 %v2364, %v56
  %v2385 = vmul.f32 %v2367, %v56
  %v2386 = vmul.f32 %v2370, %v56
  %v2387 = vmul.f32 %v2373, %v56
  %v2388 = vmul.f32 %v2376, %v56
  %v2389 = vmul.f32 %v2379, %v56
  %v2390 = vmul.f32 %v2382, %v56
  %v2391 = vsub.f32 %v2351, %v2383
  %v2392 = vsub.f32 %v2352, %v2384
  %v2393 = vsub.f32 %v2353, %v2385
  %v2394 = vsub.f32 %v2354, %v2386
  %v2395 = vsub.f32 %v2355, %v2387
  %v2396 = vsub.f32 %v2356, %v2388
  %v2397 = vsub.f32 %v2357, %v2389
  %v2398 = vsub.f32 %v2358, %v2390
  %v2399 = vmul.f32 %v2391, %v2391
  %v2400 = vmul.f32 %v2392, %v2392
  %v2401 = vmul.f32 %v2393, %v2393
  %v2402 = vmul.f32 %v2394, %v2394
  %v2403 = vmul.f32 %v2395, %v2395
  %v2404 = vmul.f32 %v2396, %v2396
  %v2405 = vmul.f32 %v2397, %v2397
  %v2406 = vmul.f32 %v2398, %v2398
  %v2407 = vsel %vm31, %v2399, 0.0
  %2408 = vadd.xlane.f32.xlu0 %v2407
  %v2409 = vpop.xlane.xlu0 %2408
  %v2410 = vsel %vm31, %v2400, 0.0
  %2411 = vadd.xlane.f32.xlu0 %v2410
  %v2412 = vpop.xlane.xlu0 %2411
  %v2413 = vsel %vm31, %v2401, 0.0
  %2414 = vadd.xlane.f32.xlu0 %v2413
  %v2415 = vpop.xlane.xlu0 %2414
  %v2416 = vsel %vm31, %v2402, 0.0
  %2417 = vadd.xlane.f32.xlu0 %v2416
  %v2418 = vpop.xlane.xlu0 %2417
  %v2419 = vsel %vm31, %v2403, 0.0
  %2420 = vadd.xlane.f32.xlu0 %v2419
  %v2421 = vpop.xlane.xlu0 %2420
  %v2422 = vsel %vm31, %v2404, 0.0
  %2423 = vadd.xlane.f32.xlu0 %v2422
  %v2424 = vpop.xlane.xlu0 %2423
  %v2425 = vsel %vm31, %v2405, 0.0
  %2426 = vadd.xlane.f32.xlu0 %v2425
  %v2427 = vpop.xlane.xlu0 %2426
  %v2428 = vsel %vm31, %v2406, 0.0
  %2429 = vadd.xlane.f32.xlu0 %v2428
  %v2430 = vpop.xlane.xlu0 %2429
  %v2431 = vmul.f32 %v2409, %v56
  %v2432 = vmul.f32 %v2412, %v56
  %v2433 = vmul.f32 %v2415, %v56
  %v2434 = vmul.f32 %v2418, %v56
  %v2435 = vmul.f32 %v2421, %v56
  %v2436 = vmul.f32 %v2424, %v56
  %v2437 = vmul.f32 %v2427, %v56
  %v2438 = vmul.f32 %v2430, %v56
  %v2439 = vadd.f32 %v2431, 1e-05
  %v2440 = vadd.f32 %v2432, 1e-05
  %v2441 = vadd.f32 %v2433, 1e-05
  %v2442 = vadd.f32 %v2434, 1e-05
  %v2443 = vadd.f32 %v2435, 1e-05
  %v2444 = vadd.f32 %v2436, 1e-05
  %v2445 = vadd.f32 %v2437, 1e-05
  %v2446 = vadd.f32 %v2438, 1e-05
  %v2447 = vrsqrt.pop %v2439
  %v2448 = vrsqrt.pop %v2440
  %v2449 = vrsqrt.pop %v2441
  %v2450 = vrsqrt.pop %v2442
  %v2451 = vrsqrt.pop %v2443
  %v2452 = vrsqrt.pop %v2444
  %v2453 = vrsqrt.pop %v2445
  %v2454 = vrsqrt.pop %v2446
  %v2455 = vmul.f32 %v2391, %v2447
  %v2456 = vmul.f32 %v2392, %v2448
  %v2457 = vmul.f32 %v2393, %v2449
  %v2458 = vmul.f32 %v2394, %v2450
  %v2459 = vmul.f32 %v2395, %v2451
  %v2460 = vmul.f32 %v2396, %v2452
  %v2461 = vmul.f32 %v2397, %v2453
  %v2462 = vmul.f32 %v2398, %v2454
  %v2463 = vlaneseq
  %v2464 = vshrl.u32 %v2463, 7
  %v2465 = vsub.s32 4, %v2464
  %v2466 = vrot.slane %v212, %v2465
  %v2467 = vmul.f32 %v2455, %v2466
  %v2468 = vmul.f32 %v2456, %v2466
  %v2469 = vmul.f32 %v2457, %v2466
  %v2470 = vmul.f32 %v2458, %v2466
  %v2471 = vmul.f32 %v2459, %v2466
  %v2472 = vmul.f32 %v2460, %v2466
  %v2473 = vmul.f32 %v2461, %v2466
  %v2474 = vmul.f32 %v2462, %v2466
  %v2475 = vlaneseq
  %v2476 = vshrl.u32 %v2475, 7
  %v2477 = vsub.s32 5, %v2476
  %v2478 = vrot.slane %v212, %v2477
  %v2479 = vadd.f32 %v2467, %v2478
  %v2480 = vadd.f32 %v2468, %v2478
  %v2481 = vadd.f32 %v2469, %v2478
  %v2482 = vadd.f32 %v2470, %v2478
  %v2483 = vadd.f32 %v2471, %v2478
  %v2484 = vadd.f32 %v2472, %v2478
  %v2485 = vadd.f32 %v2473, %v2478
  %v2486 = vadd.f32 %v2474, %v2478
  %v2487 = vld [vmem:[%s2 + $0x4] sm:$0xf]
  %v2488 = vld [vmem:[%s2 + $0xc] sm:$0xf]
  %v2489 = vld [vmem:[%s2 + $0x14] sm:$0xf]
  %v2490 = vld [vmem:[%s2 + $0x1c] sm:$0xf]
  %v2491 = vld [vmem:[%s2 + $0x24] sm:$0xf]
  %v2492 = vld [vmem:[%s2 + $0x2c] sm:$0xf]
  %v2493 = vld [vmem:[%s2 + $0x34] sm:$0xf]
  %v2494 = vld [vmem:[%s2 + $0x3c] sm:$0xf]
  %v2495 = vpack.c.bf16 %v2480, %v2479
  %v2496 = vpack.c.bf16 %v2482, %v2481
  %v2497 = vpack.c.bf16 %v2484, %v2483
  %v2498 = vpack.c.bf16 %v2486, %v2485
  %v2499 = vlaneseq
  %v2500 = vshrl.u32 %v2499, 7
  %v2501 = vsub.s32 2, %v2500
  %v2502 = vrot.slane %v212, %v2501
  %v2507 = vunpack.c.l.b16 %v2487
  %v2508 = vunpack.c.l.b16 %v2488
  %v2509 = vunpack.c.l.b16 %v2489
  %v2510 = vunpack.c.l.b16 %v2490
  %v2511 = vpack.c.b16 %v2508, %v2507
  %v2512 = vpack.c.b16 %v2510, %v2509
  %v2516 = vsel %vm31, %v2495, 0
  %v2519 = vsel %vm31, %v2496, 0
  %v2522 = vsel %vm31, %v2497, 0
  %v2525 = vsel %vm31, %v2498, 0
  %2527 = vmatprep.subr.bf16.mxu0 0
  %2528 = vmatpush1.bf16.msra.mxu0 0
  %2529 = vmatprep.subr.bf16.mxu0 0
  %2530 = vmatpush1.bf16.msra.mxu0 0
  %2531 = vmatprep.subr.bf16.mxu0 0
  %2532 = vmatpush1.bf16.msra.mxu0 0
  %2533 = vmatprep.subr.bf16.mxu0 0
  %2534 = vmatpush1.bf16.msra.mxu0 0
  %2535 = vmatprep.subr.bf16.mxu0 0
  %2536 = vmatpush1.bf16.msra.mxu0 0
  %2537 = vmatprep.subr.bf16.mxu0 0
  %2538 = vmatpush1.bf16.msra.mxu0 0
  %2539 = vmatprep.subr.bf16.mxu0 0
  %2540 = vmatpush1.bf16.msra.mxu0 %v2512
  %2541 = vmatprep.subr.bf16.mxu0 0
  %2542 = vmatpush1.bf16.msra.mxu0 %v2511
  %2543 = vmatprep.subr.bf16.mxu0 0
  %2544 = vmatpush2.bf16.msra.mxu0 0
  %2545 = vmatprep.subr.bf16.mxu0 0
  %2546 = vmatpush2.bf16.msra.mxu0 0
  %2547 = vmatprep.subr.bf16.mxu0 0
  %2548 = vmatpush2.bf16.msra.mxu0 0
  %2549 = vmatprep.subr.bf16.mxu0 0
  %2550 = vmatpush2.bf16.msra.mxu0 0
  %2551 = vmatprep.subr.bf16.mxu0 0
  %2552 = vmatpush2.bf16.msra.mxu0 0
  %2553 = vmatprep.subr.bf16.mxu0 0
  %2554 = vmatpush2.bf16.msra.mxu0 0
  %2555 = vmatprep.subr.bf16.mxu0 0
  %2556 = vmatpush2.bf16.msra.mxu0 0
  %2557 = vmatprep.subr.bf16.mxu0 0
  %2558 = vmatpush2.bf16.msra.mxu0 0
  %2559 = vmatprep.mubr.bf16.mxu0 0
  %2560 = vmatmul.mubr.bf16.gmra.mxu0 %v2516
  %v2561 = vpop.f32.mrf.mxu0
  %v2562 = vadd.f32 %v2502, %v2561
  %v2563 = vpop.f32.mrf.mxu0
  %v2564 = vpop.f32.mrf.mxu0
  %v2565 = vadd.f32 %v2502, %v2564
  %v2566 = vpop.f32.mrf.mxu0
  %2567 = vmatprep.mubr.bf16.mxu0 0
  %2568 = vmatmul.mubr.bf16.gmra.mxu0 %v2519
  %v2569 = vpop.f32.mrf.mxu0
  %v2570 = vadd.f32 %v2502, %v2569
  %v2571 = vpop.f32.mrf.mxu0
  %v2572 = vpop.f32.mrf.mxu0
  %v2573 = vadd.f32 %v2502, %v2572
  %v2574 = vpop.f32.mrf.mxu0
  %2575 = vmatprep.mubr.bf16.mxu0 0
  %2576 = vmatmul.mubr.bf16.gmra.mxu0 %v2522
  %v2577 = vpop.f32.mrf.mxu0
  %v2578 = vadd.f32 %v2502, %v2577
  %v2579 = vpop.f32.mrf.mxu0
  %v2580 = vpop.f32.mrf.mxu0
  %v2581 = vadd.f32 %v2502, %v2580
  %v2582 = vpop.f32.mrf.mxu0
  %2583 = vmatprep.mubr.bf16.mxu0 0
  %2584 = vmatmul.mubr.bf16.gmra.mxu0 %v2525
  %v2585 = vpop.f32.mrf.mxu0
  %v2586 = vadd.f32 %v2502, %v2585
  %v2587 = vpop.f32.mrf.mxu0
  %v2588 = vpop.f32.mrf.mxu0
  %v2589 = vadd.f32 %v2502, %v2588
  %v2590 = vpop.f32.mrf.mxu0
  %2591 = vdwg.mxu0
  %v2592 = vmul.f32 %v2562, %v2562
  %v2593 = vmul.f32 %v2565, %v2565
  %v2594 = vmul.f32 %v2570, %v2570
  %v2595 = vmul.f32 %v2573, %v2573
  %v2596 = vmul.f32 %v2578, %v2578
  %v2597 = vmul.f32 %v2581, %v2581
  %v2598 = vmul.f32 %v2586, %v2586
  %v2599 = vmul.f32 %v2589, %v2589
  %v2600 = vmul.f32 %v2562, %v2592
  %v2601 = vmul.f32 %v2565, %v2593
  %v2602 = vmul.f32 %v2570, %v2594
  %v2603 = vmul.f32 %v2573, %v2595
  %v2604 = vmul.f32 %v2578, %v2596
  %v2605 = vmul.f32 %v2581, %v2597
  %v2606 = vmul.f32 %v2586, %v2598
  %v2607 = vmul.f32 %v2589, %v2599
  %v2608 = vmul.f32 %v2600, 0.044715
  %v2609 = vmul.f32 %v2601, 0.044715
  %v2610 = vmul.f32 %v2602, 0.044715
  %v2611 = vmul.f32 %v2603, 0.044715
  %v2612 = vmul.f32 %v2604, 0.044715
  %v2613 = vmul.f32 %v2605, 0.044715
  %v2614 = vmul.f32 %v2606, 0.044715
  %v2615 = vmul.f32 %v2607, 0.044715
  %v2616 = vadd.f32 %v2562, %v2608
  %v2617 = vadd.f32 %v2565, %v2609
  %v2618 = vadd.f32 %v2570, %v2610
  %v2619 = vadd.f32 %v2573, %v2611
  %v2620 = vadd.f32 %v2578, %v2612
  %v2621 = vadd.f32 %v2581, %v2613
  %v2622 = vadd.f32 %v2586, %v2614
  %v2623 = vadd.f32 %v2589, %v2615
  %v2624 = vmul.f32 %v2616, 0.7978846
  %v2625 = vmul.f32 %v2617, 0.7978846
  %v2626 = vmul.f32 %v2618, 0.7978846
  %v2627 = vmul.f32 %v2619, 0.7978846
  %v2628 = vmul.f32 %v2620, 0.7978846
  %v2629 = vmul.f32 %v2621, 0.7978846
  %v2630 = vmul.f32 %v2622, 0.7978846
  %v2631 = vmul.f32 %v2623, 0.7978846
  %v2632 = vtanh.pop %v2624
  %v2633 = vtanh.pop %v2625
  %v2634 = vtanh.pop %v2626
  %v2635 = vtanh.pop %v2627
  %v2636 = vtanh.pop %v2628
  %v2637 = vtanh.pop %v2629
  %v2638 = vtanh.pop %v2630
  %v2639 = vtanh.pop %v2631
  %v2640 = vadd.f32 %v2632, 1.0
  %v2641 = vadd.f32 %v2633, 1.0
  %v2642 = vadd.f32 %v2634, 1.0
  %v2643 = vadd.f32 %v2635, 1.0
  %v2644 = vadd.f32 %v2636, 1.0
  %v2645 = vadd.f32 %v2637, 1.0
  %v2646 = vadd.f32 %v2638, 1.0
  %v2647 = vadd.f32 %v2639, 1.0
  %v2648 = vmul.f32 %v2640, 0.5
  %v2649 = vmul.f32 %v2641, 0.5
  %v2650 = vmul.f32 %v2642, 0.5
  %v2651 = vmul.f32 %v2643, 0.5
  %v2652 = vmul.f32 %v2644, 0.5
  %v2653 = vmul.f32 %v2645, 0.5
  %v2654 = vmul.f32 %v2646, 0.5
  %v2655 = vmul.f32 %v2647, 0.5
  %v2656 = vmul.f32 %v2562, %v2648
  %v2657 = vmul.f32 %v2565, %v2649
  %v2658 = vmul.f32 %v2570, %v2650
  %v2659 = vmul.f32 %v2573, %v2651
  %v2660 = vmul.f32 %v2578, %v2652
  %v2661 = vmul.f32 %v2581, %v2653
  %v2662 = vmul.f32 %v2586, %v2654
  %v2663 = vmul.f32 %v2589, %v2655
  %v2664 = vpack.c.bf16 %v2657, %v2656
  %v2665 = vpack.c.bf16 %v2659, %v2658
  %v2666 = vpack.c.bf16 %v2661, %v2660
  %v2667 = vpack.c.bf16 %v2663, %v2662
  %v2668 = vlaneseq
  %v2669 = vshrl.u32 %v2668, 7
  %v2670 = vsub.s32 3, %v2669
  %v2671 = vrot.slane %v212, %v2670
  %v2676 = vunpack.c.l.b16 %v2491
  %v2677 = vunpack.c.l.b16 %v2492
  %v2678 = vunpack.c.l.b16 %v2493
  %v2679 = vunpack.c.l.b16 %v2494
  %v2680 = vpack.c.b16 %v2677, %v2676
  %v2681 = vpack.c.b16 %v2679, %v2678
  %2682 = vrot.lane.b32.xlu0 %v2511, 64
  %v2683 = vpop.permute.xlu0 %2682
  %2684 = vrot.lane.b32.xlu0 %v2512, 64
  %v2685 = vpop.permute.xlu0 %2684
  %2686 = vrot.lane.b32.xlu0 %v2680, 64
  %v2687 = vpop.permute.xlu0 %2686
  %2688 = vrot.lane.b32.xlu0 %v2681, 64
  %v2689 = vpop.permute.xlu0 %2688
  %vm2694 = vcmask 523264
  %v2696 = vsel %vm2694, %v2664, 0
  %v2699 = vsel %vm2694, %v2665, 0
  %v2702 = vsel %vm2694, %v2666, 0
  %v2705 = vsel %vm2694, %v2667, 0
  %2707 = vmatprep.subr.bf16.mxu0 0
  %2708 = vmatpush1.bf16.msra.mxu0 0
  %2709 = vmatprep.subr.bf16.mxu0 0
  %2710 = vmatpush1.bf16.msra.mxu0 0
  %2711 = vmatprep.subr.bf16.mxu0 0
  %2712 = vmatpush1.bf16.msra.mxu0 0
  %2713 = vmatprep.subr.bf16.mxu0 0
  %2714 = vmatpush1.bf16.msra.mxu0 0
  %2715 = vmatprep.subr.bf16.mxu0 0
  %2716 = vmatpush1.bf16.msra.mxu0 %v2689
  %2717 = vmatprep.subr.bf16.mxu0 0
  %2718 = vmatpush1.bf16.msra.mxu0 %v2687
  %2719 = vmatprep.subr.bf16.mxu0 0
  %2720 = vmatpush1.bf16.msra.mxu0 %v2685
  %2721 = vmatprep.subr.bf16.mxu0 0
  %2722 = vmatpush1.bf16.msra.mxu0 %v2683
  %2723 = vmatprep.subr.bf16.mxu0 0
  %2724 = vmatpush2.bf16.msra.mxu0 0
  %2725 = vmatprep.subr.bf16.mxu0 0
  %2726 = vmatpush2.bf16.msra.mxu0 0
  %2727 = vmatprep.subr.bf16.mxu0 0
  %2728 = vmatpush2.bf16.msra.mxu0 0
  %2729 = vmatprep.subr.bf16.mxu0 0
  %2730 = vmatpush2.bf16.msra.mxu0 0
  %2731 = vmatprep.subr.bf16.mxu0 0
  %2732 = vmatpush2.bf16.msra.mxu0 0
  %2733 = vmatprep.subr.bf16.mxu0 0
  %2734 = vmatpush2.bf16.msra.mxu0 0
  %2735 = vmatprep.subr.bf16.mxu0 0
  %2736 = vmatpush2.bf16.msra.mxu0 0
  %2737 = vmatprep.subr.bf16.mxu0 0
  %2738 = vmatpush2.bf16.msra.mxu0 0
  %2739 = vmatprep.mubr.bf16.mxu0 0
  %2740 = vmatmul.mubr.bf16.gmra.mxu0 %v2696
  %v2741 = vpop.f32.mrf.mxu0
  %v2742 = vadd.f32 %v2671, %v2741
  %v2743 = vpop.f32.mrf.mxu0
  %v2744 = vpop.f32.mrf.mxu0
  %v2745 = vadd.f32 %v2671, %v2744
  %v2746 = vpop.f32.mrf.mxu0
  %2747 = vmatprep.mubr.bf16.mxu0 0
  %2748 = vmatmul.mubr.bf16.gmra.mxu0 %v2699
  %v2749 = vpop.f32.mrf.mxu0
  %v2750 = vadd.f32 %v2671, %v2749
  %v2751 = vpop.f32.mrf.mxu0
  %v2752 = vpop.f32.mrf.mxu0
  %v2753 = vadd.f32 %v2671, %v2752
  %v2754 = vpop.f32.mrf.mxu0
  %2755 = vmatprep.mubr.bf16.mxu0 0
  %2756 = vmatmul.mubr.bf16.gmra.mxu0 %v2702
  %v2757 = vpop.f32.mrf.mxu0
  %v2758 = vadd.f32 %v2671, %v2757
  %v2759 = vpop.f32.mrf.mxu0
  %v2760 = vpop.f32.mrf.mxu0
  %v2761 = vadd.f32 %v2671, %v2760
  %v2762 = vpop.f32.mrf.mxu0
  %2763 = vmatprep.mubr.bf16.mxu0 0
  %2764 = vmatmul.mubr.bf16.gmra.mxu0 %v2705
  %v2765 = vpop.f32.mrf.mxu0
  %v2766 = vadd.f32 %v2671, %v2765
  %v2767 = vpop.f32.mrf.mxu0
  %v2768 = vpop.f32.mrf.mxu0
  %v2769 = vadd.f32 %v2671, %v2768
  %v2770 = vpop.f32.mrf.mxu0
  %2771 = vdwg.mxu0
  %v2772 = vadd.f32 %v2479, %v2742
  %v2773 = vadd.f32 %v2480, %v2745
  %v2774 = vadd.f32 %v2481, %v2750
  %v2775 = vadd.f32 %v2482, %v2753
  %v2776 = vadd.f32 %v2483, %v2758
  %v2777 = vadd.f32 %v2484, %v2761
  %v2778 = vadd.f32 %v2485, %v2766
  %v2779 = vadd.f32 %v2486, %v2769
  %v2780 = vsel %vm31, %v2772, 0.0
  %2781 = vadd.xlane.f32.xlu0 %v2780
  %v2782 = vpop.xlane.xlu0 %2781
  %v2783 = vsel %vm31, %v2773, 0.0
  %2784 = vadd.xlane.f32.xlu0 %v2783
  %v2785 = vpop.xlane.xlu0 %2784
  %v2786 = vsel %vm31, %v2774, 0.0
  %2787 = vadd.xlane.f32.xlu0 %v2786
  %v2788 = vpop.xlane.xlu0 %2787
  %v2789 = vsel %vm31, %v2775, 0.0
  %2790 = vadd.xlane.f32.xlu0 %v2789
  %v2791 = vpop.xlane.xlu0 %2790
  %v2792 = vsel %vm31, %v2776, 0.0
  %2793 = vadd.xlane.f32.xlu0 %v2792
  %v2794 = vpop.xlane.xlu0 %2793
  %v2795 = vsel %vm31, %v2777, 0.0
  %2796 = vadd.xlane.f32.xlu0 %v2795
  %v2797 = vpop.xlane.xlu0 %2796
  %v2798 = vsel %vm31, %v2778, 0.0
  %2799 = vadd.xlane.f32.xlu0 %v2798
  %v2800 = vpop.xlane.xlu0 %2799
  %v2801 = vsel %vm31, %v2779, 0.0
  %2802 = vadd.xlane.f32.xlu0 %v2801
  %v2803 = vpop.xlane.xlu0 %2802
  %v2804 = vmul.f32 %v2782, %v56
  %v2805 = vmul.f32 %v2785, %v56
  %v2806 = vmul.f32 %v2788, %v56
  %v2807 = vmul.f32 %v2791, %v56
  %v2808 = vmul.f32 %v2794, %v56
  %v2809 = vmul.f32 %v2797, %v56
  %v2810 = vmul.f32 %v2800, %v56
  %v2811 = vmul.f32 %v2803, %v56
  %v2812 = vsub.f32 %v2772, %v2804
  %v2813 = vsub.f32 %v2773, %v2805
  %v2814 = vsub.f32 %v2774, %v2806
  %v2815 = vsub.f32 %v2775, %v2807
  %v2816 = vsub.f32 %v2776, %v2808
  %v2817 = vsub.f32 %v2777, %v2809
  %v2818 = vsub.f32 %v2778, %v2810
  %v2819 = vsub.f32 %v2779, %v2811
  %v2820 = vmul.f32 %v2812, %v2812
  %v2821 = vmul.f32 %v2813, %v2813
  %v2822 = vmul.f32 %v2814, %v2814
  %v2823 = vmul.f32 %v2815, %v2815
  %v2824 = vmul.f32 %v2816, %v2816
  %v2825 = vmul.f32 %v2817, %v2817
  %v2826 = vmul.f32 %v2818, %v2818
  %v2827 = vmul.f32 %v2819, %v2819
  %v2828 = vsel %vm31, %v2820, 0.0
  %2829 = vadd.xlane.f32.xlu0 %v2828
  %v2830 = vpop.xlane.xlu0 %2829
  %v2831 = vsel %vm31, %v2821, 0.0
  %2832 = vadd.xlane.f32.xlu0 %v2831
  %v2833 = vpop.xlane.xlu0 %2832
  %v2834 = vsel %vm31, %v2822, 0.0
  %2835 = vadd.xlane.f32.xlu0 %v2834
  %v2836 = vpop.xlane.xlu0 %2835
  %v2837 = vsel %vm31, %v2823, 0.0
  %2838 = vadd.xlane.f32.xlu0 %v2837
  %v2839 = vpop.xlane.xlu0 %2838
  %v2840 = vsel %vm31, %v2824, 0.0
  %2841 = vadd.xlane.f32.xlu0 %v2840
  %v2842 = vpop.xlane.xlu0 %2841
  %v2843 = vsel %vm31, %v2825, 0.0
  %2844 = vadd.xlane.f32.xlu0 %v2843
  %v2845 = vpop.xlane.xlu0 %2844
  %v2846 = vsel %vm31, %v2826, 0.0
  %2847 = vadd.xlane.f32.xlu0 %v2846
  %v2848 = vpop.xlane.xlu0 %2847
  %v2849 = vsel %vm31, %v2827, 0.0
  %2850 = vadd.xlane.f32.xlu0 %v2849
  %v2851 = vpop.xlane.xlu0 %2850
  %v2852 = vmul.f32 %v2830, %v56
  %v2853 = vmul.f32 %v2833, %v56
  %v2854 = vmul.f32 %v2836, %v56
  %v2855 = vmul.f32 %v2839, %v56
  %v2856 = vmul.f32 %v2842, %v56
  %v2857 = vmul.f32 %v2845, %v56
  %v2858 = vmul.f32 %v2848, %v56
  %v2859 = vmul.f32 %v2851, %v56
  %v2860 = vadd.f32 %v2852, 1e-05
  %v2861 = vadd.f32 %v2853, 1e-05
  %v2862 = vadd.f32 %v2854, 1e-05
  %v2863 = vadd.f32 %v2855, 1e-05
  %v2864 = vadd.f32 %v2856, 1e-05
  %v2865 = vadd.f32 %v2857, 1e-05
  %v2866 = vadd.f32 %v2858, 1e-05
  %v2867 = vadd.f32 %v2859, 1e-05
  %v2868 = vrsqrt.pop %v2860
  %v2869 = vrsqrt.pop %v2861
  %v2870 = vrsqrt.pop %v2862
  %v2871 = vrsqrt.pop %v2863
  %v2872 = vrsqrt.pop %v2864
  %v2873 = vrsqrt.pop %v2865
  %v2874 = vrsqrt.pop %v2866
  %v2875 = vrsqrt.pop %v2867
  %v2876 = vmul.f32 %v2812, %v2868
  %v2877 = vmul.f32 %v2813, %v2869
  %v2878 = vmul.f32 %v2814, %v2870
  %v2879 = vmul.f32 %v2815, %v2871
  %v2880 = vmul.f32 %v2816, %v2872
  %v2881 = vmul.f32 %v2817, %v2873
  %v2882 = vmul.f32 %v2818, %v2874
  %v2883 = vmul.f32 %v2819, %v2875
  %v2884 = vlaneseq
  %v2885 = vshrl.u32 %v2884, 7
  %v2886 = vsub.s32 6, %v2885
  %v2887 = vrot.slane %v212, %v2886
  %v2888 = vmul.f32 %v2876, %v2887
  %v2889 = vmul.f32 %v2877, %v2887
  %v2890 = vmul.f32 %v2878, %v2887
  %v2891 = vmul.f32 %v2879, %v2887
  %v2892 = vmul.f32 %v2880, %v2887
  %v2893 = vmul.f32 %v2881, %v2887
  %v2894 = vmul.f32 %v2882, %v2887
  %v2895 = vmul.f32 %v2883, %v2887
  %v2896 = vlaneseq
  %v2897 = vshrl.u32 %v2896, 7
  %v2898 = vsub.s32 7, %v2897
  %v2899 = vrot.slane %v212, %v2898
  %v2900 = vadd.f32 %v2888, %v2899
  %v2901 = vadd.f32 %v2889, %v2899
  %v2902 = vadd.f32 %v2890, %v2899
  %v2903 = vadd.f32 %v2891, %v2899
  %v2904 = vadd.f32 %v2892, %v2899
  %v2905 = vadd.f32 %v2893, %v2899
  %v2906 = vadd.f32 %v2894, %v2899
  %v2907 = vadd.f32 %v2895, %v2899
  %s2908 = scalar_lea.vmem %s3, 8
  %v2909 = vld [vmem:[%s2908] sm:$0xff]
  %s2910 = scalar_lea.vmem %s2, 64
  %v2911 = vld [vmem:[%s2910] sm:$0xf]
  %v2912 = vld [vmem:[%s2910 + $0x8] sm:$0xf]
  %v2913 = vld [vmem:[%s2910 + $0x10] sm:$0xf]
  %v2914 = vld [vmem:[%s2910 + $0x18] sm:$0xf]
  %v2915 = vpack.c.bf16 %v2901, %v2900
  %v2916 = vpack.c.bf16 %v2903, %v2902
  %v2917 = vpack.c.bf16 %v2905, %v2904
  %v2918 = vpack.c.bf16 %v2907, %v2906
  %v2919 = vlaneseq
  %v2920 = vshrl.u32 %v2919, 7
  %v2921 = vsub.s32 0, %v2920
  %v2922 = vrot.slane %v2909, %v2921
  %v2927 = vunpack.c.l.b16 %v2911
  %v2928 = vunpack.c.l.b16 %v2912
  %v2929 = vunpack.c.l.b16 %v2913
  %v2930 = vunpack.c.l.b16 %v2914
  %v2931 = vpack.c.b16 %v2928, %v2927
  %v2932 = vpack.c.b16 %v2930, %v2929
  %v2936 = vsel %vm31, %v2915, 0
  %v2939 = vsel %vm31, %v2916, 0
  %v2942 = vsel %vm31, %v2917, 0
  %v2945 = vsel %vm31, %v2918, 0
  %2947 = vmatprep.subr.bf16.mxu0 0
  %2948 = vmatpush1.bf16.msra.mxu0 0
  %2949 = vmatprep.subr.bf16.mxu0 0
  %2950 = vmatpush1.bf16.msra.mxu0 0
  %2951 = vmatprep.subr.bf16.mxu0 0
  %2952 = vmatpush1.bf16.msra.mxu0 0
  %2953 = vmatprep.subr.bf16.mxu0 0
  %2954 = vmatpush1.bf16.msra.mxu0 0
  %2955 = vmatprep.subr.bf16.mxu0 0
  %2956 = vmatpush1.bf16.msra.mxu0 0
  %2957 = vmatprep.subr.bf16.mxu0 0
  %2958 = vmatpush1.bf16.msra.mxu0 0
  %2959 = vmatprep.subr.bf16.mxu0 0
  %2960 = vmatpush1.bf16.msra.mxu0 %v2932
  %2961 = vmatprep.subr.bf16.mxu0 0
  %2962 = vmatpush1.bf16.msra.mxu0 %v2931
  %2963 = vmatprep.subr.bf16.mxu0 0
  %2964 = vmatpush2.bf16.msra.mxu0 0
  %2965 = vmatprep.subr.bf16.mxu0 0
  %2966 = vmatpush2.bf16.msra.mxu0 0
  %2967 = vmatprep.subr.bf16.mxu0 0
  %2968 = vmatpush2.bf16.msra.mxu0 0
  %2969 = vmatprep.subr.bf16.mxu0 0
  %2970 = vmatpush2.bf16.msra.mxu0 0
  %2971 = vmatprep.subr.bf16.mxu0 0
  %2972 = vmatpush2.bf16.msra.mxu0 0
  %2973 = vmatprep.subr.bf16.mxu0 0
  %2974 = vmatpush2.bf16.msra.mxu0 0
  %2975 = vmatprep.subr.bf16.mxu0 0
  %2976 = vmatpush2.bf16.msra.mxu0 0
  %2977 = vmatprep.subr.bf16.mxu0 0
  %2978 = vmatpush2.bf16.msra.mxu0 0
  %2979 = vmatprep.mubr.bf16.mxu0 0
  %2980 = vmatmul.mubr.bf16.gmra.mxu0 %v2936
  %v2981 = vpop.f32.mrf.mxu0
  %v2982 = vadd.f32 %v2922, %v2981
  %v2983 = vpop.f32.mrf.mxu0
  %v2984 = vpop.f32.mrf.mxu0
  %v2985 = vadd.f32 %v2922, %v2984
  %v2986 = vpop.f32.mrf.mxu0
  %2987 = vmatprep.mubr.bf16.mxu0 0
  %2988 = vmatmul.mubr.bf16.gmra.mxu0 %v2939
  %v2989 = vpop.f32.mrf.mxu0
  %v2990 = vadd.f32 %v2922, %v2989
  %v2991 = vpop.f32.mrf.mxu0
  %v2992 = vpop.f32.mrf.mxu0
  %v2993 = vadd.f32 %v2922, %v2992
  %v2994 = vpop.f32.mrf.mxu0
  %2995 = vmatprep.mubr.bf16.mxu0 0
  %2996 = vmatmul.mubr.bf16.gmra.mxu0 %v2942
  %v2997 = vpop.f32.mrf.mxu0
  %v2998 = vadd.f32 %v2922, %v2997
  %v2999 = vpop.f32.mrf.mxu0
  %v3000 = vpop.f32.mrf.mxu0
  %v3001 = vadd.f32 %v2922, %v3000
  %v3002 = vpop.f32.mrf.mxu0
  %3003 = vmatprep.mubr.bf16.mxu0 0
  %3004 = vmatmul.mubr.bf16.gmra.mxu0 %v2945
  %v3005 = vpop.f32.mrf.mxu0
  %v3006 = vadd.f32 %v2922, %v3005
  %v3007 = vpop.f32.mrf.mxu0
  %v3008 = vpop.f32.mrf.mxu0
  %v3009 = vadd.f32 %v2922, %v3008
  %v3010 = vpop.f32.mrf.mxu0
  %3011 = vdwg.mxu0
  %v3012 = vpack.c.bf16 %v2982, %v2982
  %v3013 = vpack.c.bf16 %v2985, %v2985
  %v3014 = vpack.c.bf16 %v2990, %v2990
  %v3015 = vpack.c.bf16 %v2993, %v2993
  %v3016 = vpack.c.bf16 %v2998, %v2998
  %v3017 = vpack.c.bf16 %v3001, %v3001
  %v3018 = vpack.c.bf16 %v3006, %v3006
  %v3019 = vpack.c.bf16 %v3009, %v3009
  %3021 = vrot.lane.b32.xlu0 %v3012, 96
  %v3022 = vpop.permute.xlu0 %3021
  %v3024 = vsel %vm325, %v3012, 0
  %v3027 = vsel %vm325, %v3022, 0
  %3029 = vmatprep.subr.bf16.mxu0 0
  %3030 = vmatpush1.bf16.xpose.msra.mxu0 0
  %3031 = vmatprep.subr.bf16.mxu0 0
  %3032 = vmatpush1.bf16.xpose.msra.mxu0 0
  %3033 = vmatprep.subr.bf16.mxu0 0
  %3034 = vmatpush1.bf16.xpose.msra.mxu0 0
  %3035 = vmatprep.subr.bf16.mxu0 0
  %3036 = vmatpush1.bf16.xpose.msra.mxu0 0
  %3037 = vmatprep.subr.bf16.mxu0 0
  %3038 = vmatpush1.bf16.xpose.msra.mxu0 0
  %3039 = vmatprep.subr.bf16.mxu0 0
  %3040 = vmatpush1.bf16.xpose.msra.mxu0 0
  %3041 = vmatprep.subr.bf16.mxu0 0
  %3042 = vmatpush1.bf16.xpose.msra.mxu0 0
  %3043 = vmatprep.subr.bf16.mxu0 0
  %3044 = vmatpush1.bf16.xpose.msra.mxu0 %v3027
  %3045 = vmatprep.subr.bf16.mxu0 0
  %3046 = vmatpush2.bf16.xpose.msra.mxu0 0
  %3047 = vmatprep.subr.bf16.mxu0 0
  %3048 = vmatpush2.bf16.xpose.msra.mxu0 0
  %3049 = vmatprep.subr.bf16.mxu0 0
  %3050 = vmatpush2.bf16.xpose.msra.mxu0 0
  %3051 = vmatprep.subr.bf16.mxu0 0
  %3052 = vmatpush2.bf16.xpose.msra.mxu0 0
  %3053 = vmatprep.subr.bf16.mxu0 0
  %3054 = vmatpush2.bf16.xpose.msra.mxu0 0
  %3055 = vmatprep.subr.bf16.mxu0 0
  %3056 = vmatpush2.bf16.xpose.msra.mxu0 0
  %3057 = vmatprep.subr.bf16.mxu0 0
  %3058 = vmatpush2.bf16.xpose.msra.mxu0 0
  %3059 = vmatprep.subr.bf16.mxu0 0
  %3060 = vmatpush2.bf16.xpose.msra.mxu0 0
  %3061 = vmatprep.mubr.bf16.mxu0 0
  %3062 = vmatmul.mubr.bf16.gmra.mxu0 %v3024
  %v3063 = vpop.f32.mrf.mxu0
  %v3064 = vadd.f32 0.0, %v3063
  %v3065 = vpop.f32.mrf.mxu0
  %v3066 = vpop.f32.mrf.mxu0
  %v3067 = vpop.f32.mrf.mxu0
  %3068 = vdwg.mxu0
  %3070 = vrot.lane.b32.xlu0 %v3013, 96
  %v3071 = vpop.permute.xlu0 %3070
  %v3073 = vsel %vm325, %v3013, 0
  %v3076 = vsel %vm325, %v3071, 0
  %3078 = vmatprep.subr.bf16.mxu0 0
  %3079 = vmatpush1.bf16.xpose.msra.mxu0 0
  %3080 = vmatprep.subr.bf16.mxu0 0
  %3081 = vmatpush1.bf16.xpose.msra.mxu0 0
  %3082 = vmatprep.subr.bf16.mxu0 0
  %3083 = vmatpush1.bf16.xpose.msra.mxu0 0
  %3084 = vmatprep.subr.bf16.mxu0 0
  %3085 = vmatpush1.bf16.xpose.msra.mxu0 0
  %3086 = vmatprep.subr.bf16.mxu0 0
  %3087 = vmatpush1.bf16.xpose.msra.mxu0 0
  %3088 = vmatprep.subr.bf16.mxu0 0
  %3089 = vmatpush1.bf16.xpose.msra.mxu0 0
  %3090 = vmatprep.subr.bf16.mxu0 0
  %3091 = vmatpush1.bf16.xpose.msra.mxu0 0
  %3092 = vmatprep.subr.bf16.mxu0 0
  %3093 = vmatpush1.bf16.xpose.msra.mxu0 %v3076
  %3094 = vmatprep.subr.bf16.mxu0 0
  %3095 = vmatpush2.bf16.xpose.msra.mxu0 0
  %3096 = vmatprep.subr.bf16.mxu0 0
  %3097 = vmatpush2.bf16.xpose.msra.mxu0 0
  %3098 = vmatprep.subr.bf16.mxu0 0
  %3099 = vmatpush2.bf16.xpose.msra.mxu0 0
  %3100 = vmatprep.subr.bf16.mxu0 0
  %3101 = vmatpush2.bf16.xpose.msra.mxu0 0
  %3102 = vmatprep.subr.bf16.mxu0 0
  %3103 = vmatpush2.bf16.xpose.msra.mxu0 0
  %3104 = vmatprep.subr.bf16.mxu0 0
  %3105 = vmatpush2.bf16.xpose.msra.mxu0 0
  %3106 = vmatprep.subr.bf16.mxu0 0
  %3107 = vmatpush2.bf16.xpose.msra.mxu0 0
  %3108 = vmatprep.subr.bf16.mxu0 0
  %3109 = vmatpush2.bf16.xpose.msra.mxu0 0
  %3110 = vmatprep.mubr.bf16.mxu0 0
  %3111 = vmatmul.mubr.bf16.gmra.mxu0 %v3073
  %v3112 = vpop.f32.mrf.mxu0
  %v3113 = vadd.f32 0.0, %v3112
  %v3114 = vpop.f32.mrf.mxu0
  %v3115 = vpop.f32.mrf.mxu0
  %v3116 = vpop.f32.mrf.mxu0
  %3117 = vdwg.mxu0
  %3119 = vrot.lane.b32.xlu0 %v3014, 96
  %v3120 = vpop.permute.xlu0 %3119
  %v3122 = vsel %vm325, %v3014, 0
  %v3125 = vsel %vm325, %v3120, 0
  %3127 = vmatprep.subr.bf16.mxu0 0
  %3128 = vmatpush1.bf16.xpose.msra.mxu0 0
  %3129 = vmatprep.subr.bf16.mxu0 0
  %3130 = vmatpush1.bf16.xpose.msra.mxu0 0
  %3131 = vmatprep.subr.bf16.mxu0 0
  %3132 = vmatpush1.bf16.xpose.msra.mxu0 0
  %3133 = vmatprep.subr.bf16.mxu0 0
  %3134 = vmatpush1.bf16.xpose.msra.mxu0 0
  %3135 = vmatprep.subr.bf16.mxu0 0
  %3136 = vmatpush1.bf16.xpose.msra.mxu0 0
  %3137 = vmatprep.subr.bf16.mxu0 0
  %3138 = vmatpush1.bf16.xpose.msra.mxu0 0
  %3139 = vmatprep.subr.bf16.mxu0 0
  %3140 = vmatpush1.bf16.xpose.msra.mxu0 0
  %3141 = vmatprep.subr.bf16.mxu0 0
  %3142 = vmatpush1.bf16.xpose.msra.mxu0 %v3125
  %3143 = vmatprep.subr.bf16.mxu0 0
  %3144 = vmatpush2.bf16.xpose.msra.mxu0 0
  %3145 = vmatprep.subr.bf16.mxu0 0
  %3146 = vmatpush2.bf16.xpose.msra.mxu0 0
  %3147 = vmatprep.subr.bf16.mxu0 0
  %3148 = vmatpush2.bf16.xpose.msra.mxu0 0
  %3149 = vmatprep.subr.bf16.mxu0 0
  %3150 = vmatpush2.bf16.xpose.msra.mxu0 0
  %3151 = vmatprep.subr.bf16.mxu0 0
  %3152 = vmatpush2.bf16.xpose.msra.mxu0 0
  %3153 = vmatprep.subr.bf16.mxu0 0
  %3154 = vmatpush2.bf16.xpose.msra.mxu0 0
  %3155 = vmatprep.subr.bf16.mxu0 0
  %3156 = vmatpush2.bf16.xpose.msra.mxu0 0
  %3157 = vmatprep.subr.bf16.mxu0 0
  %3158 = vmatpush2.bf16.xpose.msra.mxu0 0
  %3159 = vmatprep.mubr.bf16.mxu0 0
  %3160 = vmatmul.mubr.bf16.gmra.mxu0 %v3122
  %v3161 = vpop.f32.mrf.mxu0
  %v3162 = vadd.f32 0.0, %v3161
  %v3163 = vpop.f32.mrf.mxu0
  %v3164 = vpop.f32.mrf.mxu0
  %v3165 = vpop.f32.mrf.mxu0
  %3166 = vdwg.mxu0
  %3168 = vrot.lane.b32.xlu0 %v3015, 96
  %v3169 = vpop.permute.xlu0 %3168
  %v3171 = vsel %vm325, %v3015, 0
  %v3174 = vsel %vm325, %v3169, 0
  %3176 = vmatprep.subr.bf16.mxu0 0
  %3177 = vmatpush1.bf16.xpose.msra.mxu0 0
  %3178 = vmatprep.subr.bf16.mxu0 0
  %3179 = vmatpush1.bf16.xpose.msra.mxu0 0
  %3180 = vmatprep.subr.bf16.mxu0 0
  %3181 = vmatpush1.bf16.xpose.msra.mxu0 0
  %3182 = vmatprep.subr.bf16.mxu0 0
  %3183 = vmatpush1.bf16.xpose.msra.mxu0 0
  %3184 = vmatprep.subr.bf16.mxu0 0
  %3185 = vmatpush1.bf16.xpose.msra.mxu0 0
  %3186 = vmatprep.subr.bf16.mxu0 0
  %3187 = vmatpush1.bf16.xpose.msra.mxu0 0
  %3188 = vmatprep.subr.bf16.mxu0 0
  %3189 = vmatpush1.bf16.xpose.msra.mxu0 0
  %3190 = vmatprep.subr.bf16.mxu0 0
  %3191 = vmatpush1.bf16.xpose.msra.mxu0 %v3174
  %3192 = vmatprep.subr.bf16.mxu0 0
  %3193 = vmatpush2.bf16.xpose.msra.mxu0 0
  %3194 = vmatprep.subr.bf16.mxu0 0
  %3195 = vmatpush2.bf16.xpose.msra.mxu0 0
  %3196 = vmatprep.subr.bf16.mxu0 0
  %3197 = vmatpush2.bf16.xpose.msra.mxu0 0
  %3198 = vmatprep.subr.bf16.mxu0 0
  %3199 = vmatpush2.bf16.xpose.msra.mxu0 0
  %3200 = vmatprep.subr.bf16.mxu0 0
  %3201 = vmatpush2.bf16.xpose.msra.mxu0 0
  %3202 = vmatprep.subr.bf16.mxu0 0
  %3203 = vmatpush2.bf16.xpose.msra.mxu0 0
  %3204 = vmatprep.subr.bf16.mxu0 0
  %3205 = vmatpush2.bf16.xpose.msra.mxu0 0
  %3206 = vmatprep.subr.bf16.mxu0 0
  %3207 = vmatpush2.bf16.xpose.msra.mxu0 0
  %3208 = vmatprep.mubr.bf16.mxu0 0
  %3209 = vmatmul.mubr.bf16.gmra.mxu0 %v3171
  %v3210 = vpop.f32.mrf.mxu0
  %v3211 = vadd.f32 0.0, %v3210
  %v3212 = vpop.f32.mrf.mxu0
  %v3213 = vpop.f32.mrf.mxu0
  %v3214 = vpop.f32.mrf.mxu0
  %3215 = vdwg.mxu0
  %3217 = vrot.lane.b32.xlu0 %v3016, 96
  %v3218 = vpop.permute.xlu0 %3217
  %v3220 = vsel %vm325, %v3016, 0
  %v3223 = vsel %vm325, %v3218, 0
  %3225 = vmatprep.subr.bf16.mxu0 0
  %3226 = vmatpush1.bf16.xpose.msra.mxu0 0
  %3227 = vmatprep.subr.bf16.mxu0 0
  %3228 = vmatpush1.bf16.xpose.msra.mxu0 0
  %3229 = vmatprep.subr.bf16.mxu0 0
  %3230 = vmatpush1.bf16.xpose.msra.mxu0 0
  %3231 = vmatprep.subr.bf16.mxu0 0
  %3232 = vmatpush1.bf16.xpose.msra.mxu0 0
  %3233 = vmatprep.subr.bf16.mxu0 0
  %3234 = vmatpush1.bf16.xpose.msra.mxu0 0
  %3235 = vmatprep.subr.bf16.mxu0 0
  %3236 = vmatpush1.bf16.xpose.msra.mxu0 0
  %3237 = vmatprep.subr.bf16.mxu0 0
  %3238 = vmatpush1.bf16.xpose.msra.mxu0 0
  %3239 = vmatprep.subr.bf16.mxu0 0
  %3240 = vmatpush1.bf16.xpose.msra.mxu0 %v3223
  %3241 = vmatprep.subr.bf16.mxu0 0
  %3242 = vmatpush2.bf16.xpose.msra.mxu0 0
  %3243 = vmatprep.subr.bf16.mxu0 0
  %3244 = vmatpush2.bf16.xpose.msra.mxu0 0
  %3245 = vmatprep.subr.bf16.mxu0 0
  %3246 = vmatpush2.bf16.xpose.msra.mxu0 0
  %3247 = vmatprep.subr.bf16.mxu0 0
  %3248 = vmatpush2.bf16.xpose.msra.mxu0 0
  %3249 = vmatprep.subr.bf16.mxu0 0
  %3250 = vmatpush2.bf16.xpose.msra.mxu0 0
  %3251 = vmatprep.subr.bf16.mxu0 0
  %3252 = vmatpush2.bf16.xpose.msra.mxu0 0
  %3253 = vmatprep.subr.bf16.mxu0 0
  %3254 = vmatpush2.bf16.xpose.msra.mxu0 0
  %3255 = vmatprep.subr.bf16.mxu0 0
  %3256 = vmatpush2.bf16.xpose.msra.mxu0 0
  %3257 = vmatprep.mubr.bf16.mxu0 0
  %3258 = vmatmul.mubr.bf16.gmra.mxu0 %v3220
  %v3259 = vpop.f32.mrf.mxu0
  %v3260 = vadd.f32 0.0, %v3259
  %v3261 = vpop.f32.mrf.mxu0
  %v3262 = vpop.f32.mrf.mxu0
  %v3263 = vpop.f32.mrf.mxu0
  %3264 = vdwg.mxu0
  %3266 = vrot.lane.b32.xlu0 %v3017, 96
  %v3267 = vpop.permute.xlu0 %3266
  %v3269 = vsel %vm325, %v3017, 0
  %v3272 = vsel %vm325, %v3267, 0
  %3274 = vmatprep.subr.bf16.mxu0 0
  %3275 = vmatpush1.bf16.xpose.msra.mxu0 0
  %3276 = vmatprep.subr.bf16.mxu0 0
  %3277 = vmatpush1.bf16.xpose.msra.mxu0 0
  %3278 = vmatprep.subr.bf16.mxu0 0
  %3279 = vmatpush1.bf16.xpose.msra.mxu0 0
  %3280 = vmatprep.subr.bf16.mxu0 0
  %3281 = vmatpush1.bf16.xpose.msra.mxu0 0
  %3282 = vmatprep.subr.bf16.mxu0 0
  %3283 = vmatpush1.bf16.xpose.msra.mxu0 0
  %3284 = vmatprep.subr.bf16.mxu0 0
  %3285 = vmatpush1.bf16.xpose.msra.mxu0 0
  %3286 = vmatprep.subr.bf16.mxu0 0
  %3287 = vmatpush1.bf16.xpose.msra.mxu0 0
  %3288 = vmatprep.subr.bf16.mxu0 0
  %3289 = vmatpush1.bf16.xpose.msra.mxu0 %v3272
  %3290 = vmatprep.subr.bf16.mxu0 0
  %3291 = vmatpush2.bf16.xpose.msra.mxu0 0
  %3292 = vmatprep.subr.bf16.mxu0 0
  %3293 = vmatpush2.bf16.xpose.msra.mxu0 0
  %3294 = vmatprep.subr.bf16.mxu0 0
  %3295 = vmatpush2.bf16.xpose.msra.mxu0 0
  %3296 = vmatprep.subr.bf16.mxu0 0
  %3297 = vmatpush2.bf16.xpose.msra.mxu0 0
  %3298 = vmatprep.subr.bf16.mxu0 0
  %3299 = vmatpush2.bf16.xpose.msra.mxu0 0
  %3300 = vmatprep.subr.bf16.mxu0 0
  %3301 = vmatpush2.bf16.xpose.msra.mxu0 0
  %3302 = vmatprep.subr.bf16.mxu0 0
  %3303 = vmatpush2.bf16.xpose.msra.mxu0 0
  %3304 = vmatprep.subr.bf16.mxu0 0
  %3305 = vmatpush2.bf16.xpose.msra.mxu0 0
  %3306 = vmatprep.mubr.bf16.mxu0 0
  %3307 = vmatmul.mubr.bf16.gmra.mxu0 %v3269
  %v3308 = vpop.f32.mrf.mxu0
  %v3309 = vadd.f32 0.0, %v3308
  %v3310 = vpop.f32.mrf.mxu0
  %v3311 = vpop.f32.mrf.mxu0
  %v3312 = vpop.f32.mrf.mxu0
  %3313 = vdwg.mxu0
  %3315 = vrot.lane.b32.xlu0 %v3018, 96
  %v3316 = vpop.permute.xlu0 %3315
  %v3318 = vsel %vm325, %v3018, 0
  %v3321 = vsel %vm325, %v3316, 0
  %3323 = vmatprep.subr.bf16.mxu0 0
  %3324 = vmatpush1.bf16.xpose.msra.mxu0 0
  %3325 = vmatprep.subr.bf16.mxu0 0
  %3326 = vmatpush1.bf16.xpose.msra.mxu0 0
  %3327 = vmatprep.subr.bf16.mxu0 0
  %3328 = vmatpush1.bf16.xpose.msra.mxu0 0
  %3329 = vmatprep.subr.bf16.mxu0 0
  %3330 = vmatpush1.bf16.xpose.msra.mxu0 0
  %3331 = vmatprep.subr.bf16.mxu0 0
  %3332 = vmatpush1.bf16.xpose.msra.mxu0 0
  %3333 = vmatprep.subr.bf16.mxu0 0
  %3334 = vmatpush1.bf16.xpose.msra.mxu0 0
  %3335 = vmatprep.subr.bf16.mxu0 0
  %3336 = vmatpush1.bf16.xpose.msra.mxu0 0
  %3337 = vmatprep.subr.bf16.mxu0 0
  %3338 = vmatpush1.bf16.xpose.msra.mxu0 %v3321
  %3339 = vmatprep.subr.bf16.mxu0 0
  %3340 = vmatpush2.bf16.xpose.msra.mxu0 0
  %3341 = vmatprep.subr.bf16.mxu0 0
  %3342 = vmatpush2.bf16.xpose.msra.mxu0 0
  %3343 = vmatprep.subr.bf16.mxu0 0
  %3344 = vmatpush2.bf16.xpose.msra.mxu0 0
  %3345 = vmatprep.subr.bf16.mxu0 0
  %3346 = vmatpush2.bf16.xpose.msra.mxu0 0
  %3347 = vmatprep.subr.bf16.mxu0 0
  %3348 = vmatpush2.bf16.xpose.msra.mxu0 0
  %3349 = vmatprep.subr.bf16.mxu0 0
  %3350 = vmatpush2.bf16.xpose.msra.mxu0 0
  %3351 = vmatprep.subr.bf16.mxu0 0
  %3352 = vmatpush2.bf16.xpose.msra.mxu0 0
  %3353 = vmatprep.subr.bf16.mxu0 0
  %3354 = vmatpush2.bf16.xpose.msra.mxu0 0
  %3355 = vmatprep.mubr.bf16.mxu0 0
  %3356 = vmatmul.mubr.bf16.gmra.mxu0 %v3318
  %v3357 = vpop.f32.mrf.mxu0
  %v3358 = vadd.f32 0.0, %v3357
  %v3359 = vpop.f32.mrf.mxu0
  %v3360 = vpop.f32.mrf.mxu0
  %v3361 = vpop.f32.mrf.mxu0
  %3362 = vdwg.mxu0
  %3364 = vrot.lane.b32.xlu0 %v3019, 96
  %v3365 = vpop.permute.xlu0 %3364
  %v3367 = vsel %vm325, %v3019, 0
  %v3370 = vsel %vm325, %v3365, 0
  %3372 = vmatprep.subr.bf16.mxu0 0
  %3373 = vmatpush1.bf16.xpose.msra.mxu0 0
  %3374 = vmatprep.subr.bf16.mxu0 0
  %3375 = vmatpush1.bf16.xpose.msra.mxu0 0
  %3376 = vmatprep.subr.bf16.mxu0 0
  %3377 = vmatpush1.bf16.xpose.msra.mxu0 0
  %3378 = vmatprep.subr.bf16.mxu0 0
  %3379 = vmatpush1.bf16.xpose.msra.mxu0 0
  %3380 = vmatprep.subr.bf16.mxu0 0
  %3381 = vmatpush1.bf16.xpose.msra.mxu0 0
  %3382 = vmatprep.subr.bf16.mxu0 0
  %3383 = vmatpush1.bf16.xpose.msra.mxu0 0
  %3384 = vmatprep.subr.bf16.mxu0 0
  %3385 = vmatpush1.bf16.xpose.msra.mxu0 0
  %3386 = vmatprep.subr.bf16.mxu0 0
  %3387 = vmatpush1.bf16.xpose.msra.mxu0 %v3370
  %3388 = vmatprep.subr.bf16.mxu0 0
  %3389 = vmatpush2.bf16.xpose.msra.mxu0 0
  %3390 = vmatprep.subr.bf16.mxu0 0
  %3391 = vmatpush2.bf16.xpose.msra.mxu0 0
  %3392 = vmatprep.subr.bf16.mxu0 0
  %3393 = vmatpush2.bf16.xpose.msra.mxu0 0
  %3394 = vmatprep.subr.bf16.mxu0 0
  %3395 = vmatpush2.bf16.xpose.msra.mxu0 0
  %3396 = vmatprep.subr.bf16.mxu0 0
  %3397 = vmatpush2.bf16.xpose.msra.mxu0 0
  %3398 = vmatprep.subr.bf16.mxu0 0
  %3399 = vmatpush2.bf16.xpose.msra.mxu0 0
  %3400 = vmatprep.subr.bf16.mxu0 0
  %3401 = vmatpush2.bf16.xpose.msra.mxu0 0
  %3402 = vmatprep.subr.bf16.mxu0 0
  %3403 = vmatpush2.bf16.xpose.msra.mxu0 0
  %3404 = vmatprep.mubr.bf16.mxu0 0
  %3405 = vmatmul.mubr.bf16.gmra.mxu0 %v3367
  %v3406 = vpop.f32.mrf.mxu0
  %v3407 = vadd.f32 0.0, %v3406
  %v3408 = vpop.f32.mrf.mxu0
  %v3409 = vpop.f32.mrf.mxu0
  %v3410 = vpop.f32.mrf.mxu0
  %3411 = vdwg.mxu0
  %v3412 = vmul.f32 %v3064, 0.25
  %v3413 = vmul.f32 %v3113, 0.25
  %v3414 = vmul.f32 %v3162, 0.25
  %v3415 = vmul.f32 %v3211, 0.25
  %v3416 = vmul.f32 %v3260, 0.25
  %v3417 = vmul.f32 %v3309, 0.25
  %v3418 = vmul.f32 %v3358, 0.25
  %v3419 = vmul.f32 %v3407, 0.25
  %v3420 = vadd.f32 %v3412, %v726
  %v3421 = vadd.f32 %v3413, %v730
  %v3422 = vadd.f32 %v3414, %v734
  %v3423 = vadd.f32 %v3415, %v738
  %v3424 = vadd.f32 %v3416, %v742
  %v3425 = vadd.f32 %v3417, %v746
  %v3426 = vadd.f32 %v3418, %v750
  %v3427 = vadd.f32 %v3419, %v754
  %v3428 = vsel %vm771, %v3420, -inf
  %3429 = vmax.xlane.f32.xlu0 %v3428
  %v3430 = vpop.xlane.xlu0 %3429
  %v3431 = vsel %vm771, %v3421, -inf
  %3432 = vmax.xlane.f32.xlu0 %v3431
  %v3433 = vpop.xlane.xlu0 %3432
  %v3434 = vsel %vm771, %v3422, -inf
  %3435 = vmax.xlane.f32.xlu0 %v3434
  %v3436 = vpop.xlane.xlu0 %3435
  %v3437 = vsel %vm771, %v3423, -inf
  %3438 = vmax.xlane.f32.xlu0 %v3437
  %v3439 = vpop.xlane.xlu0 %3438
  %v3440 = vsel %vm771, %v3424, -inf
  %3441 = vmax.xlane.f32.xlu0 %v3440
  %v3442 = vpop.xlane.xlu0 %3441
  %v3443 = vsel %vm771, %v3425, -inf
  %3444 = vmax.xlane.f32.xlu0 %v3443
  %v3445 = vpop.xlane.xlu0 %3444
  %v3446 = vsel %vm771, %v3426, -inf
  %3447 = vmax.xlane.f32.xlu0 %v3446
  %v3448 = vpop.xlane.xlu0 %3447
  %v3449 = vsel %vm771, %v3427, -inf
  %3450 = vmax.xlane.f32.xlu0 %v3449
  %v3451 = vpop.xlane.xlu0 %3450
  %v3452 = vsub.f32 %v3420, %v3430
  %v3453 = vsub.f32 %v3421, %v3433
  %v3454 = vsub.f32 %v3422, %v3436
  %v3455 = vsub.f32 %v3423, %v3439
  %v3456 = vsub.f32 %v3424, %v3442
  %v3457 = vsub.f32 %v3425, %v3445
  %v3458 = vsub.f32 %v3426, %v3448
  %v3459 = vsub.f32 %v3427, %v3451
  %v3460 = vmul.f32 %v3452, 1.442695
  %v3461 = vpow.pop %v3460
  %v3462 = vmul.f32 %v3453, 1.442695
  %v3463 = vpow.pop %v3462
  %v3464 = vmul.f32 %v3454, 1.442695
  %v3465 = vpow.pop %v3464
  %v3466 = vmul.f32 %v3455, 1.442695
  %v3467 = vpow.pop %v3466
  %v3468 = vmul.f32 %v3456, 1.442695
  %v3469 = vpow.pop %v3468
  %v3470 = vmul.f32 %v3457, 1.442695
  %v3471 = vpow.pop %v3470
  %v3472 = vmul.f32 %v3458, 1.442695
  %v3473 = vpow.pop %v3472
  %v3474 = vmul.f32 %v3459, 1.442695
  %v3475 = vpow.pop %v3474
  %v3476 = vsel %vm771, %v3461, 0.0
  %3477 = vadd.xlane.f32.xlu0 %v3476
  %v3478 = vpop.xlane.xlu0 %3477
  %v3479 = vsel %vm771, %v3463, 0.0
  %3480 = vadd.xlane.f32.xlu0 %v3479
  %v3481 = vpop.xlane.xlu0 %3480
  %v3482 = vsel %vm771, %v3465, 0.0
  %3483 = vadd.xlane.f32.xlu0 %v3482
  %v3484 = vpop.xlane.xlu0 %3483
  %v3485 = vsel %vm771, %v3467, 0.0
  %3486 = vadd.xlane.f32.xlu0 %v3485
  %v3487 = vpop.xlane.xlu0 %3486
  %v3488 = vsel %vm771, %v3469, 0.0
  %3489 = vadd.xlane.f32.xlu0 %v3488
  %v3490 = vpop.xlane.xlu0 %3489
  %v3491 = vsel %vm771, %v3471, 0.0
  %3492 = vadd.xlane.f32.xlu0 %v3491
  %v3493 = vpop.xlane.xlu0 %3492
  %v3494 = vsel %vm771, %v3473, 0.0
  %3495 = vadd.xlane.f32.xlu0 %v3494
  %v3496 = vpop.xlane.xlu0 %3495
  %v3497 = vsel %vm771, %v3475, 0.0
  %3498 = vadd.xlane.f32.xlu0 %v3497
  %v3499 = vpop.xlane.xlu0 %3498
  %v3500 = vrcp.pop %v3478
  %v3501 = vrcp.pop %v3481
  %v3502 = vrcp.pop %v3484
  %v3503 = vrcp.pop %v3487
  %v3504 = vrcp.pop %v3490
  %v3505 = vrcp.pop %v3493
  %v3506 = vrcp.pop %v3496
  %v3507 = vrcp.pop %v3499
  %v3508 = vmul.f32 %v3461, %v3500
  %v3509 = vmul.f32 %v3463, %v3501
  %v3510 = vmul.f32 %v3465, %v3502
  %v3511 = vmul.f32 %v3467, %v3503
  %v3512 = vmul.f32 %v3469, %v3504
  %v3513 = vmul.f32 %v3471, %v3505
  %v3514 = vmul.f32 %v3473, %v3506
  %v3515 = vmul.f32 %v3475, %v3507
  %v3516 = vpack.c.bf16 %v3508, %v3508
  %v3517 = vpack.c.bf16 %v3509, %v3509
  %v3518 = vpack.c.bf16 %v3510, %v3510
  %v3519 = vpack.c.bf16 %v3511, %v3511
  %v3520 = vpack.c.bf16 %v3512, %v3512
  %v3521 = vpack.c.bf16 %v3513, %v3513
  %v3522 = vpack.c.bf16 %v3514, %v3514
  %v3523 = vpack.c.bf16 %v3515, %v3515
  %3524 = vrot.lane.b32.xlu0 %v3012, 64
  %v3525 = vpop.permute.xlu0 %3524
  %v3527 = vsel %vm771, %v3516, 0
  %v3530 = vsel %vm873, %v3525, 0
  %3532 = vmatprep.subr.bf16.mxu0 0
  %3533 = vmatpush1.bf16.msra.mxu0 0
  %3534 = vmatprep.subr.bf16.mxu0 0
  %3535 = vmatpush1.bf16.msra.mxu0 0
  %3536 = vmatprep.subr.bf16.mxu0 0
  %3537 = vmatpush1.bf16.msra.mxu0 0
  %3538 = vmatprep.subr.bf16.mxu0 0
  %3539 = vmatpush1.bf16.msra.mxu0 0
  %3540 = vmatprep.subr.bf16.mxu0 0
  %3541 = vmatpush1.bf16.msra.mxu0 0
  %3542 = vmatprep.subr.bf16.mxu0 0
  %3543 = vmatpush1.bf16.msra.mxu0 0
  %3544 = vmatprep.subr.bf16.mxu0 0
  %3545 = vmatpush1.bf16.msra.mxu0 0
  %3546 = vmatprep.subr.bf16.mxu0 0
  %3547 = vmatpush1.bf16.msra.mxu0 %v3530
  %3548 = vmatprep.subr.bf16.mxu0 0
  %3549 = vmatpush2.bf16.msra.mxu0 0
  %3550 = vmatprep.subr.bf16.mxu0 0
  %3551 = vmatpush2.bf16.msra.mxu0 0
  %3552 = vmatprep.subr.bf16.mxu0 0
  %3553 = vmatpush2.bf16.msra.mxu0 0
  %3554 = vmatprep.subr.bf16.mxu0 0
  %3555 = vmatpush2.bf16.msra.mxu0 0
  %3556 = vmatprep.subr.bf16.mxu0 0
  %3557 = vmatpush2.bf16.msra.mxu0 0
  %3558 = vmatprep.subr.bf16.mxu0 0
  %3559 = vmatpush2.bf16.msra.mxu0 0
  %3560 = vmatprep.subr.bf16.mxu0 0
  %3561 = vmatpush2.bf16.msra.mxu0 0
  %3562 = vmatprep.subr.bf16.mxu0 0
  %3563 = vmatpush2.bf16.msra.mxu0 0
  %3564 = vmatprep.mubr.bf16.mxu0 0
  %3565 = vmatmul.mubr.bf16.gmra.mxu0 %v3527
  %v3566 = vpop.f32.mrf.mxu0
  %v3567 = vadd.f32 0.0, %v3566
  %v3568 = vpop.f32.mrf.mxu0
  %v3569 = vpop.f32.mrf.mxu0
  %v3570 = vpop.f32.mrf.mxu0
  %3571 = vdwg.mxu0
  %3572 = vrot.lane.b32.xlu0 %v3013, 64
  %v3573 = vpop.permute.xlu0 %3572
  %v3575 = vsel %vm771, %v3517, 0
  %v3578 = vsel %vm873, %v3573, 0
  %3580 = vmatprep.subr.bf16.mxu0 0
  %3581 = vmatpush1.bf16.msra.mxu0 0
  %3582 = vmatprep.subr.bf16.mxu0 0
  %3583 = vmatpush1.bf16.msra.mxu0 0
  %3584 = vmatprep.subr.bf16.mxu0 0
  %3585 = vmatpush1.bf16.msra.mxu0 0
  %3586 = vmatprep.subr.bf16.mxu0 0
  %3587 = vmatpush1.bf16.msra.mxu0 0
  %3588 = vmatprep.subr.bf16.mxu0 0
  %3589 = vmatpush1.bf16.msra.mxu0 0
  %3590 = vmatprep.subr.bf16.mxu0 0
  %3591 = vmatpush1.bf16.msra.mxu0 0
  %3592 = vmatprep.subr.bf16.mxu0 0
  %3593 = vmatpush1.bf16.msra.mxu0 0
  %3594 = vmatprep.subr.bf16.mxu0 0
  %3595 = vmatpush1.bf16.msra.mxu0 %v3578
  %3596 = vmatprep.subr.bf16.mxu0 0
  %3597 = vmatpush2.bf16.msra.mxu0 0
  %3598 = vmatprep.subr.bf16.mxu0 0
  %3599 = vmatpush2.bf16.msra.mxu0 0
  %3600 = vmatprep.subr.bf16.mxu0 0
  %3601 = vmatpush2.bf16.msra.mxu0 0
  %3602 = vmatprep.subr.bf16.mxu0 0
  %3603 = vmatpush2.bf16.msra.mxu0 0
  %3604 = vmatprep.subr.bf16.mxu0 0
  %3605 = vmatpush2.bf16.msra.mxu0 0
  %3606 = vmatprep.subr.bf16.mxu0 0
  %3607 = vmatpush2.bf16.msra.mxu0 0
  %3608 = vmatprep.subr.bf16.mxu0 0
  %3609 = vmatpush2.bf16.msra.mxu0 0
  %3610 = vmatprep.subr.bf16.mxu0 0
  %3611 = vmatpush2.bf16.msra.mxu0 0
  %3612 = vmatprep.mubr.bf16.mxu0 0
  %3613 = vmatmul.mubr.bf16.gmra.mxu0 %v3575
  %v3614 = vpop.f32.mrf.mxu0
  %v3615 = vadd.f32 0.0, %v3614
  %v3616 = vpop.f32.mrf.mxu0
  %v3617 = vpop.f32.mrf.mxu0
  %v3618 = vpop.f32.mrf.mxu0
  %3619 = vdwg.mxu0
  %3620 = vrot.lane.b32.xlu0 %v3014, 64
  %v3621 = vpop.permute.xlu0 %3620
  %v3623 = vsel %vm771, %v3518, 0
  %v3626 = vsel %vm873, %v3621, 0
  %3628 = vmatprep.subr.bf16.mxu0 0
  %3629 = vmatpush1.bf16.msra.mxu0 0
  %3630 = vmatprep.subr.bf16.mxu0 0
  %3631 = vmatpush1.bf16.msra.mxu0 0
  %3632 = vmatprep.subr.bf16.mxu0 0
  %3633 = vmatpush1.bf16.msra.mxu0 0
  %3634 = vmatprep.subr.bf16.mxu0 0
  %3635 = vmatpush1.bf16.msra.mxu0 0
  %3636 = vmatprep.subr.bf16.mxu0 0
  %3637 = vmatpush1.bf16.msra.mxu0 0
  %3638 = vmatprep.subr.bf16.mxu0 0
  %3639 = vmatpush1.bf16.msra.mxu0 0
  %3640 = vmatprep.subr.bf16.mxu0 0
  %3641 = vmatpush1.bf16.msra.mxu0 0
  %3642 = vmatprep.subr.bf16.mxu0 0
  %3643 = vmatpush1.bf16.msra.mxu0 %v3626
  %3644 = vmatprep.subr.bf16.mxu0 0
  %3645 = vmatpush2.bf16.msra.mxu0 0
  %3646 = vmatprep.subr.bf16.mxu0 0
  %3647 = vmatpush2.bf16.msra.mxu0 0
  %3648 = vmatprep.subr.bf16.mxu0 0
  %3649 = vmatpush2.bf16.msra.mxu0 0
  %3650 = vmatprep.subr.bf16.mxu0 0
  %3651 = vmatpush2.bf16.msra.mxu0 0
  %3652 = vmatprep.subr.bf16.mxu0 0
  %3653 = vmatpush2.bf16.msra.mxu0 0
  %3654 = vmatprep.subr.bf16.mxu0 0
  %3655 = vmatpush2.bf16.msra.mxu0 0
  %3656 = vmatprep.subr.bf16.mxu0 0
  %3657 = vmatpush2.bf16.msra.mxu0 0
  %3658 = vmatprep.subr.bf16.mxu0 0
  %3659 = vmatpush2.bf16.msra.mxu0 0
  %3660 = vmatprep.mubr.bf16.mxu0 0
  %3661 = vmatmul.mubr.bf16.gmra.mxu0 %v3623
  %v3662 = vpop.f32.mrf.mxu0
  %v3663 = vadd.f32 0.0, %v3662
  %v3664 = vpop.f32.mrf.mxu0
  %v3665 = vpop.f32.mrf.mxu0
  %v3666 = vpop.f32.mrf.mxu0
  %3667 = vdwg.mxu0
  %3668 = vrot.lane.b32.xlu0 %v3015, 64
  %v3669 = vpop.permute.xlu0 %3668
  %v3671 = vsel %vm771, %v3519, 0
  %v3674 = vsel %vm873, %v3669, 0
  %3676 = vmatprep.subr.bf16.mxu0 0
  %3677 = vmatpush1.bf16.msra.mxu0 0
  %3678 = vmatprep.subr.bf16.mxu0 0
  %3679 = vmatpush1.bf16.msra.mxu0 0
  %3680 = vmatprep.subr.bf16.mxu0 0
  %3681 = vmatpush1.bf16.msra.mxu0 0
  %3682 = vmatprep.subr.bf16.mxu0 0
  %3683 = vmatpush1.bf16.msra.mxu0 0
  %3684 = vmatprep.subr.bf16.mxu0 0
  %3685 = vmatpush1.bf16.msra.mxu0 0
  %3686 = vmatprep.subr.bf16.mxu0 0
  %3687 = vmatpush1.bf16.msra.mxu0 0
  %3688 = vmatprep.subr.bf16.mxu0 0
  %3689 = vmatpush1.bf16.msra.mxu0 0
  %3690 = vmatprep.subr.bf16.mxu0 0
  %3691 = vmatpush1.bf16.msra.mxu0 %v3674
  %3692 = vmatprep.subr.bf16.mxu0 0
  %3693 = vmatpush2.bf16.msra.mxu0 0
  %3694 = vmatprep.subr.bf16.mxu0 0
  %3695 = vmatpush2.bf16.msra.mxu0 0
  %3696 = vmatprep.subr.bf16.mxu0 0
  %3697 = vmatpush2.bf16.msra.mxu0 0
  %3698 = vmatprep.subr.bf16.mxu0 0
  %3699 = vmatpush2.bf16.msra.mxu0 0
  %3700 = vmatprep.subr.bf16.mxu0 0
  %3701 = vmatpush2.bf16.msra.mxu0 0
  %3702 = vmatprep.subr.bf16.mxu0 0
  %3703 = vmatpush2.bf16.msra.mxu0 0
  %3704 = vmatprep.subr.bf16.mxu0 0
  %3705 = vmatpush2.bf16.msra.mxu0 0
  %3706 = vmatprep.subr.bf16.mxu0 0
  %3707 = vmatpush2.bf16.msra.mxu0 0
  %3708 = vmatprep.mubr.bf16.mxu0 0
  %3709 = vmatmul.mubr.bf16.gmra.mxu0 %v3671
  %v3710 = vpop.f32.mrf.mxu0
  %v3711 = vadd.f32 0.0, %v3710
  %v3712 = vpop.f32.mrf.mxu0
  %v3713 = vpop.f32.mrf.mxu0
  %v3714 = vpop.f32.mrf.mxu0
  %3715 = vdwg.mxu0
  %3716 = vrot.lane.b32.xlu0 %v3016, 64
  %v3717 = vpop.permute.xlu0 %3716
  %v3719 = vsel %vm771, %v3520, 0
  %v3722 = vsel %vm873, %v3717, 0
  %3724 = vmatprep.subr.bf16.mxu0 0
  %3725 = vmatpush1.bf16.msra.mxu0 0
  %3726 = vmatprep.subr.bf16.mxu0 0
  %3727 = vmatpush1.bf16.msra.mxu0 0
  %3728 = vmatprep.subr.bf16.mxu0 0
  %3729 = vmatpush1.bf16.msra.mxu0 0
  %3730 = vmatprep.subr.bf16.mxu0 0
  %3731 = vmatpush1.bf16.msra.mxu0 0
  %3732 = vmatprep.subr.bf16.mxu0 0
  %3733 = vmatpush1.bf16.msra.mxu0 0
  %3734 = vmatprep.subr.bf16.mxu0 0
  %3735 = vmatpush1.bf16.msra.mxu0 0
  %3736 = vmatprep.subr.bf16.mxu0 0
  %3737 = vmatpush1.bf16.msra.mxu0 0
  %3738 = vmatprep.subr.bf16.mxu0 0
  %3739 = vmatpush1.bf16.msra.mxu0 %v3722
  %3740 = vmatprep.subr.bf16.mxu0 0
  %3741 = vmatpush2.bf16.msra.mxu0 0
  %3742 = vmatprep.subr.bf16.mxu0 0
  %3743 = vmatpush2.bf16.msra.mxu0 0
  %3744 = vmatprep.subr.bf16.mxu0 0
  %3745 = vmatpush2.bf16.msra.mxu0 0
  %3746 = vmatprep.subr.bf16.mxu0 0
  %3747 = vmatpush2.bf16.msra.mxu0 0
  %3748 = vmatprep.subr.bf16.mxu0 0
  %3749 = vmatpush2.bf16.msra.mxu0 0
  %3750 = vmatprep.subr.bf16.mxu0 0
  %3751 = vmatpush2.bf16.msra.mxu0 0
  %3752 = vmatprep.subr.bf16.mxu0 0
  %3753 = vmatpush2.bf16.msra.mxu0 0
  %3754 = vmatprep.subr.bf16.mxu0 0
  %3755 = vmatpush2.bf16.msra.mxu0 0
  %3756 = vmatprep.mubr.bf16.mxu0 0
  %3757 = vmatmul.mubr.bf16.gmra.mxu0 %v3719
  %v3758 = vpop.f32.mrf.mxu0
  %v3759 = vadd.f32 0.0, %v3758
  %v3760 = vpop.f32.mrf.mxu0
  %v3761 = vpop.f32.mrf.mxu0
  %v3762 = vpop.f32.mrf.mxu0
  %3763 = vdwg.mxu0
  %3764 = vrot.lane.b32.xlu0 %v3017, 64
  %v3765 = vpop.permute.xlu0 %3764
  %v3767 = vsel %vm771, %v3521, 0
  %v3770 = vsel %vm873, %v3765, 0
  %3772 = vmatprep.subr.bf16.mxu0 0
  %3773 = vmatpush1.bf16.msra.mxu0 0
  %3774 = vmatprep.subr.bf16.mxu0 0
  %3775 = vmatpush1.bf16.msra.mxu0 0
  %3776 = vmatprep.subr.bf16.mxu0 0
  %3777 = vmatpush1.bf16.msra.mxu0 0
  %3778 = vmatprep.subr.bf16.mxu0 0
  %3779 = vmatpush1.bf16.msra.mxu0 0
  %3780 = vmatprep.subr.bf16.mxu0 0
  %3781 = vmatpush1.bf16.msra.mxu0 0
  %3782 = vmatprep.subr.bf16.mxu0 0
  %3783 = vmatpush1.bf16.msra.mxu0 0
  %3784 = vmatprep.subr.bf16.mxu0 0
  %3785 = vmatpush1.bf16.msra.mxu0 0
  %3786 = vmatprep.subr.bf16.mxu0 0
  %3787 = vmatpush1.bf16.msra.mxu0 %v3770
  %3788 = vmatprep.subr.bf16.mxu0 0
  %3789 = vmatpush2.bf16.msra.mxu0 0
  %3790 = vmatprep.subr.bf16.mxu0 0
  %3791 = vmatpush2.bf16.msra.mxu0 0
  %3792 = vmatprep.subr.bf16.mxu0 0
  %3793 = vmatpush2.bf16.msra.mxu0 0
  %3794 = vmatprep.subr.bf16.mxu0 0
  %3795 = vmatpush2.bf16.msra.mxu0 0
  %3796 = vmatprep.subr.bf16.mxu0 0
  %3797 = vmatpush2.bf16.msra.mxu0 0
  %3798 = vmatprep.subr.bf16.mxu0 0
  %3799 = vmatpush2.bf16.msra.mxu0 0
  %3800 = vmatprep.subr.bf16.mxu0 0
  %3801 = vmatpush2.bf16.msra.mxu0 0
  %3802 = vmatprep.subr.bf16.mxu0 0
  %3803 = vmatpush2.bf16.msra.mxu0 0
  %3804 = vmatprep.mubr.bf16.mxu0 0
  %3805 = vmatmul.mubr.bf16.gmra.mxu0 %v3767
  %v3806 = vpop.f32.mrf.mxu0
  %v3807 = vadd.f32 0.0, %v3806
  %v3808 = vpop.f32.mrf.mxu0
  %v3809 = vpop.f32.mrf.mxu0
  %v3810 = vpop.f32.mrf.mxu0
  %3811 = vdwg.mxu0
  %3812 = vrot.lane.b32.xlu0 %v3018, 64
  %v3813 = vpop.permute.xlu0 %3812
  %v3815 = vsel %vm771, %v3522, 0
  %v3818 = vsel %vm873, %v3813, 0
  %3820 = vmatprep.subr.bf16.mxu0 0
  %3821 = vmatpush1.bf16.msra.mxu0 0
  %3822 = vmatprep.subr.bf16.mxu0 0
  %3823 = vmatpush1.bf16.msra.mxu0 0
  %3824 = vmatprep.subr.bf16.mxu0 0
  %3825 = vmatpush1.bf16.msra.mxu0 0
  %3826 = vmatprep.subr.bf16.mxu0 0
  %3827 = vmatpush1.bf16.msra.mxu0 0
  %3828 = vmatprep.subr.bf16.mxu0 0
  %3829 = vmatpush1.bf16.msra.mxu0 0
  %3830 = vmatprep.subr.bf16.mxu0 0
  %3831 = vmatpush1.bf16.msra.mxu0 0
  %3832 = vmatprep.subr.bf16.mxu0 0
  %3833 = vmatpush1.bf16.msra.mxu0 0
  %3834 = vmatprep.subr.bf16.mxu0 0
  %3835 = vmatpush1.bf16.msra.mxu0 %v3818
  %3836 = vmatprep.subr.bf16.mxu0 0
  %3837 = vmatpush2.bf16.msra.mxu0 0
  %3838 = vmatprep.subr.bf16.mxu0 0
  %3839 = vmatpush2.bf16.msra.mxu0 0
  %3840 = vmatprep.subr.bf16.mxu0 0
  %3841 = vmatpush2.bf16.msra.mxu0 0
  %3842 = vmatprep.subr.bf16.mxu0 0
  %3843 = vmatpush2.bf16.msra.mxu0 0
  %3844 = vmatprep.subr.bf16.mxu0 0
  %3845 = vmatpush2.bf16.msra.mxu0 0
  %3846 = vmatprep.subr.bf16.mxu0 0
  %3847 = vmatpush2.bf16.msra.mxu0 0
  %3848 = vmatprep.subr.bf16.mxu0 0
  %3849 = vmatpush2.bf16.msra.mxu0 0
  %3850 = vmatprep.subr.bf16.mxu0 0
  %3851 = vmatpush2.bf16.msra.mxu0 0
  %3852 = vmatprep.mubr.bf16.mxu0 0
  %3853 = vmatmul.mubr.bf16.gmra.mxu0 %v3815
  %v3854 = vpop.f32.mrf.mxu0
  %v3855 = vadd.f32 0.0, %v3854
  %v3856 = vpop.f32.mrf.mxu0
  %v3857 = vpop.f32.mrf.mxu0
  %v3858 = vpop.f32.mrf.mxu0
  %3859 = vdwg.mxu0
  %3860 = vrot.lane.b32.xlu0 %v3019, 64
  %v3861 = vpop.permute.xlu0 %3860
  %v3863 = vsel %vm771, %v3523, 0
  %v3866 = vsel %vm873, %v3861, 0
  %3868 = vmatprep.subr.bf16.mxu0 0
  %3869 = vmatpush1.bf16.msra.mxu0 0
  %3870 = vmatprep.subr.bf16.mxu0 0
  %3871 = vmatpush1.bf16.msra.mxu0 0
  %3872 = vmatprep.subr.bf16.mxu0 0
  %3873 = vmatpush1.bf16.msra.mxu0 0
  %3874 = vmatprep.subr.bf16.mxu0 0
  %3875 = vmatpush1.bf16.msra.mxu0 0
  %3876 = vmatprep.subr.bf16.mxu0 0
  %3877 = vmatpush1.bf16.msra.mxu0 0
  %3878 = vmatprep.subr.bf16.mxu0 0
  %3879 = vmatpush1.bf16.msra.mxu0 0
  %3880 = vmatprep.subr.bf16.mxu0 0
  %3881 = vmatpush1.bf16.msra.mxu0 0
  %3882 = vmatprep.subr.bf16.mxu0 0
  %3883 = vmatpush1.bf16.msra.mxu0 %v3866
  %3884 = vmatprep.subr.bf16.mxu0 0
  %3885 = vmatpush2.bf16.msra.mxu0 0
  %3886 = vmatprep.subr.bf16.mxu0 0
  %3887 = vmatpush2.bf16.msra.mxu0 0
  %3888 = vmatprep.subr.bf16.mxu0 0
  %3889 = vmatpush2.bf16.msra.mxu0 0
  %3890 = vmatprep.subr.bf16.mxu0 0
  %3891 = vmatpush2.bf16.msra.mxu0 0
  %3892 = vmatprep.subr.bf16.mxu0 0
  %3893 = vmatpush2.bf16.msra.mxu0 0
  %3894 = vmatprep.subr.bf16.mxu0 0
  %3895 = vmatpush2.bf16.msra.mxu0 0
  %3896 = vmatprep.subr.bf16.mxu0 0
  %3897 = vmatpush2.bf16.msra.mxu0 0
  %3898 = vmatprep.subr.bf16.mxu0 0
  %3899 = vmatpush2.bf16.msra.mxu0 0
  %3900 = vmatprep.mubr.bf16.mxu0 0
  %3901 = vmatmul.mubr.bf16.gmra.mxu0 %v3863
  %v3902 = vpop.f32.mrf.mxu0
  %v3903 = vadd.f32 0.0, %v3902
  %v3904 = vpop.f32.mrf.mxu0
  %v3905 = vpop.f32.mrf.mxu0
  %v3906 = vpop.f32.mrf.mxu0
  %3907 = vdwg.mxu0
  %v3908 = vld [vmem:[%s2910] sm:$0xf]
  %v3909 = vld [vmem:[%s2910 + $0x8] sm:$0xf]
  %v3910 = vpack.c.bf16 %v3615, %v3567
  %v3911 = vpack.c.bf16 %v3711, %v3663
  %v3912 = vpack.c.bf16 %v3807, %v3759
  %v3913 = vpack.c.bf16 %v3903, %v3855
  %v3916 = vunpack.c.l.b16 %v3908
  %v3917 = vunpack.c.l.b16 %v3909
  %v3918 = vpack.c.b16 %v3917, %v3916
  %3919 = vrot.lane.b32.xlu0 %v3918, 32
  %v3920 = vpop.permute.xlu0 %3919
  %v3923 = vsel %vm325, %v3910, 0
  %v3926 = vsel %vm325, %v3911, 0
  %v3929 = vsel %vm325, %v3912, 0
  %v3932 = vsel %vm325, %v3913, 0
  %3934 = vmatprep.subr.bf16.mxu0 0
  %3935 = vmatpush1.bf16.msra.mxu0 0
  %3936 = vmatprep.subr.bf16.mxu0 0
  %3937 = vmatpush1.bf16.msra.mxu0 0
  %3938 = vmatprep.subr.bf16.mxu0 0
  %3939 = vmatpush1.bf16.msra.mxu0 0
  %3940 = vmatprep.subr.bf16.mxu0 0
  %3941 = vmatpush1.bf16.msra.mxu0 0
  %3942 = vmatprep.subr.bf16.mxu0 0
  %3943 = vmatpush1.bf16.msra.mxu0 0
  %3944 = vmatprep.subr.bf16.mxu0 0
  %3945 = vmatpush1.bf16.msra.mxu0 0
  %3946 = vmatprep.subr.bf16.mxu0 0
  %3947 = vmatpush1.bf16.msra.mxu0 0
  %3948 = vmatprep.subr.bf16.mxu0 0
  %3949 = vmatpush1.bf16.msra.mxu0 %v3920
  %3950 = vmatprep.subr.bf16.mxu0 0
  %3951 = vmatpush2.bf16.msra.mxu0 0
  %3952 = vmatprep.subr.bf16.mxu0 0
  %3953 = vmatpush2.bf16.msra.mxu0 0
  %3954 = vmatprep.subr.bf16.mxu0 0
  %3955 = vmatpush2.bf16.msra.mxu0 0
  %3956 = vmatprep.subr.bf16.mxu0 0
  %3957 = vmatpush2.bf16.msra.mxu0 0
  %3958 = vmatprep.subr.bf16.mxu0 0
  %3959 = vmatpush2.bf16.msra.mxu0 0
  %3960 = vmatprep.subr.bf16.mxu0 0
  %3961 = vmatpush2.bf16.msra.mxu0 0
  %3962 = vmatprep.subr.bf16.mxu0 0
  %3963 = vmatpush2.bf16.msra.mxu0 0
  %3964 = vmatprep.subr.bf16.mxu0 0
  %3965 = vmatpush2.bf16.msra.mxu0 0
  %3966 = vmatprep.mubr.bf16.mxu0 0
  %3967 = vmatmul.mubr.bf16.gmra.mxu0 %v3923
  %v3968 = vpop.f32.mrf.mxu0
  %v3969 = vadd.f32 0.0, %v3968
  %v3970 = vpop.f32.mrf.mxu0
  %v3971 = vpop.f32.mrf.mxu0
  %v3972 = vadd.f32 0.0, %v3971
  %v3973 = vpop.f32.mrf.mxu0
  %3974 = vmatprep.mubr.bf16.mxu0 0
  %3975 = vmatmul.mubr.bf16.gmra.mxu0 %v3926
  %v3976 = vpop.f32.mrf.mxu0
  %v3977 = vadd.f32 0.0, %v3976
  %v3978 = vpop.f32.mrf.mxu0
  %v3979 = vpop.f32.mrf.mxu0
  %v3980 = vadd.f32 0.0, %v3979
  %v3981 = vpop.f32.mrf.mxu0
  %3982 = vmatprep.mubr.bf16.mxu0 0
  %3983 = vmatmul.mubr.bf16.gmra.mxu0 %v3929
  %v3984 = vpop.f32.mrf.mxu0
  %v3985 = vadd.f32 0.0, %v3984
  %v3986 = vpop.f32.mrf.mxu0
  %v3987 = vpop.f32.mrf.mxu0
  %v3988 = vadd.f32 0.0, %v3987
  %v3989 = vpop.f32.mrf.mxu0
  %3990 = vmatprep.mubr.bf16.mxu0 0
  %3991 = vmatmul.mubr.bf16.gmra.mxu0 %v3932
  %v3992 = vpop.f32.mrf.mxu0
  %v3993 = vadd.f32 0.0, %v3992
  %v3994 = vpop.f32.mrf.mxu0
  %v3995 = vpop.f32.mrf.mxu0
  %v3996 = vadd.f32 0.0, %v3995
  %v3997 = vpop.f32.mrf.mxu0
  %3998 = vdwg.mxu0
  %v3999 = vlaneseq
  %v4000 = vshrl.u32 %v3999, 7
  %v4001 = vsub.s32 1, %v4000
  %v4002 = vrot.slane %v2909, %v4001
  %v4003 = vadd.f32 %v4002, %v3969
  %v4004 = vadd.f32 %v4002, %v3972
  %v4005 = vadd.f32 %v4002, %v3977
  %v4006 = vadd.f32 %v4002, %v3980
  %v4007 = vadd.f32 %v4002, %v3985
  %v4008 = vadd.f32 %v4002, %v3988
  %v4009 = vadd.f32 %v4002, %v3993
  %v4010 = vadd.f32 %v4002, %v3996
  %4011 = vrot.lane.b32.xlu0 %v3012, 112
  %v4012 = vpop.permute.xlu0 %4011
  %4013 = vrot.lane.b32.xlu0 %v3012, 80
  %v4014 = vpop.permute.xlu0 %4013
  %v4016 = vsel %vm325, %v4012, 0
  %v4019 = vsel %vm325, %v4014, 0
  %4021 = vmatprep.subr.bf16.mxu0 0
  %4022 = vmatpush1.bf16.xpose.msra.mxu0 0
  %4023 = vmatprep.subr.bf16.mxu0 0
  %4024 = vmatpush1.bf16.xpose.msra.mxu0 0
  %4025 = vmatprep.subr.bf16.mxu0 0
  %4026 = vmatpush1.bf16.xpose.msra.mxu0 0
  %4027 = vmatprep.subr.bf16.mxu0 0
  %4028 = vmatpush1.bf16.xpose.msra.mxu0 0
  %4029 = vmatprep.subr.bf16.mxu0 0
  %4030 = vmatpush1.bf16.xpose.msra.mxu0 0
  %4031 = vmatprep.subr.bf16.mxu0 0
  %4032 = vmatpush1.bf16.xpose.msra.mxu0 0
  %4033 = vmatprep.subr.bf16.mxu0 0
  %4034 = vmatpush1.bf16.xpose.msra.mxu0 0
  %4035 = vmatprep.subr.bf16.mxu0 0
  %4036 = vmatpush1.bf16.xpose.msra.mxu0 %v4019
  %4037 = vmatprep.subr.bf16.mxu0 0
  %4038 = vmatpush2.bf16.xpose.msra.mxu0 0
  %4039 = vmatprep.subr.bf16.mxu0 0
  %4040 = vmatpush2.bf16.xpose.msra.mxu0 0
  %4041 = vmatprep.subr.bf16.mxu0 0
  %4042 = vmatpush2.bf16.xpose.msra.mxu0 0
  %4043 = vmatprep.subr.bf16.mxu0 0
  %4044 = vmatpush2.bf16.xpose.msra.mxu0 0
  %4045 = vmatprep.subr.bf16.mxu0 0
  %4046 = vmatpush2.bf16.xpose.msra.mxu0 0
  %4047 = vmatprep.subr.bf16.mxu0 0
  %4048 = vmatpush2.bf16.xpose.msra.mxu0 0
  %4049 = vmatprep.subr.bf16.mxu0 0
  %4050 = vmatpush2.bf16.xpose.msra.mxu0 0
  %4051 = vmatprep.subr.bf16.mxu0 0
  %4052 = vmatpush2.bf16.xpose.msra.mxu0 0
  %4053 = vmatprep.mubr.bf16.mxu0 0
  %4054 = vmatmul.mubr.bf16.gmra.mxu0 %v4016
  %v4055 = vpop.f32.mrf.mxu0
  %v4056 = vadd.f32 0.0, %v4055
  %v4057 = vpop.f32.mrf.mxu0
  %v4058 = vpop.f32.mrf.mxu0
  %v4059 = vpop.f32.mrf.mxu0
  %4060 = vdwg.mxu0
  %4061 = vrot.lane.b32.xlu0 %v3013, 112
  %v4062 = vpop.permute.xlu0 %4061
  %4063 = vrot.lane.b32.xlu0 %v3013, 80
  %v4064 = vpop.permute.xlu0 %4063
  %v4066 = vsel %vm325, %v4062, 0
  %v4069 = vsel %vm325, %v4064, 0
  %4071 = vmatprep.subr.bf16.mxu0 0
  %4072 = vmatpush1.bf16.xpose.msra.mxu0 0
  %4073 = vmatprep.subr.bf16.mxu0 0
  %4074 = vmatpush1.bf16.xpose.msra.mxu0 0
  %4075 = vmatprep.subr.bf16.mxu0 0
  %4076 = vmatpush1.bf16.xpose.msra.mxu0 0
  %4077 = vmatprep.subr.bf16.mxu0 0
  %4078 = vmatpush1.bf16.xpose.msra.mxu0 0
  %4079 = vmatprep.subr.bf16.mxu0 0
  %4080 = vmatpush1.bf16.xpose.msra.mxu0 0
  %4081 = vmatprep.subr.bf16.mxu0 0
  %4082 = vmatpush1.bf16.xpose.msra.mxu0 0
  %4083 = vmatprep.subr.bf16.mxu0 0
  %4084 = vmatpush1.bf16.xpose.msra.mxu0 0
  %4085 = vmatprep.subr.bf16.mxu0 0
  %4086 = vmatpush1.bf16.xpose.msra.mxu0 %v4069
  %4087 = vmatprep.subr.bf16.mxu0 0
  %4088 = vmatpush2.bf16.xpose.msra.mxu0 0
  %4089 = vmatprep.subr.bf16.mxu0 0
  %4090 = vmatpush2.bf16.xpose.msra.mxu0 0
  %4091 = vmatprep.subr.bf16.mxu0 0
  %4092 = vmatpush2.bf16.xpose.msra.mxu0 0
  %4093 = vmatprep.subr.bf16.mxu0 0
  %4094 = vmatpush2.bf16.xpose.msra.mxu0 0
  %4095 = vmatprep.subr.bf16.mxu0 0
  %4096 = vmatpush2.bf16.xpose.msra.mxu0 0
  %4097 = vmatprep.subr.bf16.mxu0 0
  %4098 = vmatpush2.bf16.xpose.msra.mxu0 0
  %4099 = vmatprep.subr.bf16.mxu0 0
  %4100 = vmatpush2.bf16.xpose.msra.mxu0 0
  %4101 = vmatprep.subr.bf16.mxu0 0
  %4102 = vmatpush2.bf16.xpose.msra.mxu0 0
  %4103 = vmatprep.mubr.bf16.mxu0 0
  %4104 = vmatmul.mubr.bf16.gmra.mxu0 %v4066
  %v4105 = vpop.f32.mrf.mxu0
  %v4106 = vadd.f32 0.0, %v4105
  %v4107 = vpop.f32.mrf.mxu0
  %v4108 = vpop.f32.mrf.mxu0
  %v4109 = vpop.f32.mrf.mxu0
  %4110 = vdwg.mxu0
  %4111 = vrot.lane.b32.xlu0 %v3014, 112
  %v4112 = vpop.permute.xlu0 %4111
  %4113 = vrot.lane.b32.xlu0 %v3014, 80
  %v4114 = vpop.permute.xlu0 %4113
  %v4116 = vsel %vm325, %v4112, 0
  %v4119 = vsel %vm325, %v4114, 0
  %4121 = vmatprep.subr.bf16.mxu0 0
  %4122 = vmatpush1.bf16.xpose.msra.mxu0 0
  %4123 = vmatprep.subr.bf16.mxu0 0
  %4124 = vmatpush1.bf16.xpose.msra.mxu0 0
  %4125 = vmatprep.subr.bf16.mxu0 0
  %4126 = vmatpush1.bf16.xpose.msra.mxu0 0
  %4127 = vmatprep.subr.bf16.mxu0 0
  %4128 = vmatpush1.bf16.xpose.msra.mxu0 0
  %4129 = vmatprep.subr.bf16.mxu0 0
  %4130 = vmatpush1.bf16.xpose.msra.mxu0 0
  %4131 = vmatprep.subr.bf16.mxu0 0
  %4132 = vmatpush1.bf16.xpose.msra.mxu0 0
  %4133 = vmatprep.subr.bf16.mxu0 0
  %4134 = vmatpush1.bf16.xpose.msra.mxu0 0
  %4135 = vmatprep.subr.bf16.mxu0 0
  %4136 = vmatpush1.bf16.xpose.msra.mxu0 %v4119
  %4137 = vmatprep.subr.bf16.mxu0 0
  %4138 = vmatpush2.bf16.xpose.msra.mxu0 0
  %4139 = vmatprep.subr.bf16.mxu0 0
  %4140 = vmatpush2.bf16.xpose.msra.mxu0 0
  %4141 = vmatprep.subr.bf16.mxu0 0
  %4142 = vmatpush2.bf16.xpose.msra.mxu0 0
  %4143 = vmatprep.subr.bf16.mxu0 0
  %4144 = vmatpush2.bf16.xpose.msra.mxu0 0
  %4145 = vmatprep.subr.bf16.mxu0 0
  %4146 = vmatpush2.bf16.xpose.msra.mxu0 0
  %4147 = vmatprep.subr.bf16.mxu0 0
  %4148 = vmatpush2.bf16.xpose.msra.mxu0 0
  %4149 = vmatprep.subr.bf16.mxu0 0
  %4150 = vmatpush2.bf16.xpose.msra.mxu0 0
  %4151 = vmatprep.subr.bf16.mxu0 0
  %4152 = vmatpush2.bf16.xpose.msra.mxu0 0
  %4153 = vmatprep.mubr.bf16.mxu0 0
  %4154 = vmatmul.mubr.bf16.gmra.mxu0 %v4116
  %v4155 = vpop.f32.mrf.mxu0
  %v4156 = vadd.f32 0.0, %v4155
  %v4157 = vpop.f32.mrf.mxu0
  %v4158 = vpop.f32.mrf.mxu0
  %v4159 = vpop.f32.mrf.mxu0
  %4160 = vdwg.mxu0
  %4161 = vrot.lane.b32.xlu0 %v3015, 112
  %v4162 = vpop.permute.xlu0 %4161
  %4163 = vrot.lane.b32.xlu0 %v3015, 80
  %v4164 = vpop.permute.xlu0 %4163
  %v4166 = vsel %vm325, %v4162, 0
  %v4169 = vsel %vm325, %v4164, 0
  %4171 = vmatprep.subr.bf16.mxu0 0
  %4172 = vmatpush1.bf16.xpose.msra.mxu0 0
  %4173 = vmatprep.subr.bf16.mxu0 0
  %4174 = vmatpush1.bf16.xpose.msra.mxu0 0
  %4175 = vmatprep.subr.bf16.mxu0 0
  %4176 = vmatpush1.bf16.xpose.msra.mxu0 0
  %4177 = vmatprep.subr.bf16.mxu0 0
  %4178 = vmatpush1.bf16.xpose.msra.mxu0 0
  %4179 = vmatprep.subr.bf16.mxu0 0
  %4180 = vmatpush1.bf16.xpose.msra.mxu0 0
  %4181 = vmatprep.subr.bf16.mxu0 0
  %4182 = vmatpush1.bf16.xpose.msra.mxu0 0
  %4183 = vmatprep.subr.bf16.mxu0 0
  %4184 = vmatpush1.bf16.xpose.msra.mxu0 0
  %4185 = vmatprep.subr.bf16.mxu0 0
  %4186 = vmatpush1.bf16.xpose.msra.mxu0 %v4169
  %4187 = vmatprep.subr.bf16.mxu0 0
  %4188 = vmatpush2.bf16.xpose.msra.mxu0 0
  %4189 = vmatprep.subr.bf16.mxu0 0
  %4190 = vmatpush2.bf16.xpose.msra.mxu0 0
  %4191 = vmatprep.subr.bf16.mxu0 0
  %4192 = vmatpush2.bf16.xpose.msra.mxu0 0
  %4193 = vmatprep.subr.bf16.mxu0 0
  %4194 = vmatpush2.bf16.xpose.msra.mxu0 0
  %4195 = vmatprep.subr.bf16.mxu0 0
  %4196 = vmatpush2.bf16.xpose.msra.mxu0 0
  %4197 = vmatprep.subr.bf16.mxu0 0
  %4198 = vmatpush2.bf16.xpose.msra.mxu0 0
  %4199 = vmatprep.subr.bf16.mxu0 0
  %4200 = vmatpush2.bf16.xpose.msra.mxu0 0
  %4201 = vmatprep.subr.bf16.mxu0 0
  %4202 = vmatpush2.bf16.xpose.msra.mxu0 0
  %4203 = vmatprep.mubr.bf16.mxu0 0
  %4204 = vmatmul.mubr.bf16.gmra.mxu0 %v4166
  %v4205 = vpop.f32.mrf.mxu0
  %v4206 = vadd.f32 0.0, %v4205
  %v4207 = vpop.f32.mrf.mxu0
  %v4208 = vpop.f32.mrf.mxu0
  %v4209 = vpop.f32.mrf.mxu0
  %4210 = vdwg.mxu0
  %4211 = vrot.lane.b32.xlu0 %v3016, 112
  %v4212 = vpop.permute.xlu0 %4211
  %4213 = vrot.lane.b32.xlu0 %v3016, 80
  %v4214 = vpop.permute.xlu0 %4213
  %v4216 = vsel %vm325, %v4212, 0
  %v4219 = vsel %vm325, %v4214, 0
  %4221 = vmatprep.subr.bf16.mxu0 0
  %4222 = vmatpush1.bf16.xpose.msra.mxu0 0
  %4223 = vmatprep.subr.bf16.mxu0 0
  %4224 = vmatpush1.bf16.xpose.msra.mxu0 0
  %4225 = vmatprep.subr.bf16.mxu0 0
  %4226 = vmatpush1.bf16.xpose.msra.mxu0 0
  %4227 = vmatprep.subr.bf16.mxu0 0
  %4228 = vmatpush1.bf16.xpose.msra.mxu0 0
  %4229 = vmatprep.subr.bf16.mxu0 0
  %4230 = vmatpush1.bf16.xpose.msra.mxu0 0
  %4231 = vmatprep.subr.bf16.mxu0 0
  %4232 = vmatpush1.bf16.xpose.msra.mxu0 0
  %4233 = vmatprep.subr.bf16.mxu0 0
  %4234 = vmatpush1.bf16.xpose.msra.mxu0 0
  %4235 = vmatprep.subr.bf16.mxu0 0
  %4236 = vmatpush1.bf16.xpose.msra.mxu0 %v4219
  %4237 = vmatprep.subr.bf16.mxu0 0
  %4238 = vmatpush2.bf16.xpose.msra.mxu0 0
  %4239 = vmatprep.subr.bf16.mxu0 0
  %4240 = vmatpush2.bf16.xpose.msra.mxu0 0
  %4241 = vmatprep.subr.bf16.mxu0 0
  %4242 = vmatpush2.bf16.xpose.msra.mxu0 0
  %4243 = vmatprep.subr.bf16.mxu0 0
  %4244 = vmatpush2.bf16.xpose.msra.mxu0 0
  %4245 = vmatprep.subr.bf16.mxu0 0
  %4246 = vmatpush2.bf16.xpose.msra.mxu0 0
  %4247 = vmatprep.subr.bf16.mxu0 0
  %4248 = vmatpush2.bf16.xpose.msra.mxu0 0
  %4249 = vmatprep.subr.bf16.mxu0 0
  %4250 = vmatpush2.bf16.xpose.msra.mxu0 0
  %4251 = vmatprep.subr.bf16.mxu0 0
  %4252 = vmatpush2.bf16.xpose.msra.mxu0 0
  %4253 = vmatprep.mubr.bf16.mxu0 0
  %4254 = vmatmul.mubr.bf16.gmra.mxu0 %v4216
  %v4255 = vpop.f32.mrf.mxu0
  %v4256 = vadd.f32 0.0, %v4255
  %v4257 = vpop.f32.mrf.mxu0
  %v4258 = vpop.f32.mrf.mxu0
  %v4259 = vpop.f32.mrf.mxu0
  %4260 = vdwg.mxu0
  %4261 = vrot.lane.b32.xlu0 %v3017, 112
  %v4262 = vpop.permute.xlu0 %4261
  %4263 = vrot.lane.b32.xlu0 %v3017, 80
  %v4264 = vpop.permute.xlu0 %4263
  %v4266 = vsel %vm325, %v4262, 0
  %v4269 = vsel %vm325, %v4264, 0
  %4271 = vmatprep.subr.bf16.mxu0 0
  %4272 = vmatpush1.bf16.xpose.msra.mxu0 0
  %4273 = vmatprep.subr.bf16.mxu0 0
  %4274 = vmatpush1.bf16.xpose.msra.mxu0 0
  %4275 = vmatprep.subr.bf16.mxu0 0
  %4276 = vmatpush1.bf16.xpose.msra.mxu0 0
  %4277 = vmatprep.subr.bf16.mxu0 0
  %4278 = vmatpush1.bf16.xpose.msra.mxu0 0
  %4279 = vmatprep.subr.bf16.mxu0 0
  %4280 = vmatpush1.bf16.xpose.msra.mxu0 0
  %4281 = vmatprep.subr.bf16.mxu0 0
  %4282 = vmatpush1.bf16.xpose.msra.mxu0 0
  %4283 = vmatprep.subr.bf16.mxu0 0
  %4284 = vmatpush1.bf16.xpose.msra.mxu0 0
  %4285 = vmatprep.subr.bf16.mxu0 0
  %4286 = vmatpush1.bf16.xpose.msra.mxu0 %v4269
  %4287 = vmatprep.subr.bf16.mxu0 0
  %4288 = vmatpush2.bf16.xpose.msra.mxu0 0
  %4289 = vmatprep.subr.bf16.mxu0 0
  %4290 = vmatpush2.bf16.xpose.msra.mxu0 0
  %4291 = vmatprep.subr.bf16.mxu0 0
  %4292 = vmatpush2.bf16.xpose.msra.mxu0 0
  %4293 = vmatprep.subr.bf16.mxu0 0
  %4294 = vmatpush2.bf16.xpose.msra.mxu0 0
  %4295 = vmatprep.subr.bf16.mxu0 0
  %4296 = vmatpush2.bf16.xpose.msra.mxu0 0
  %4297 = vmatprep.subr.bf16.mxu0 0
  %4298 = vmatpush2.bf16.xpose.msra.mxu0 0
  %4299 = vmatprep.subr.bf16.mxu0 0
  %4300 = vmatpush2.bf16.xpose.msra.mxu0 0
  %4301 = vmatprep.subr.bf16.mxu0 0
  %4302 = vmatpush2.bf16.xpose.msra.mxu0 0
  %4303 = vmatprep.mubr.bf16.mxu0 0
  %4304 = vmatmul.mubr.bf16.gmra.mxu0 %v4266
  %v4305 = vpop.f32.mrf.mxu0
  %v4306 = vadd.f32 0.0, %v4305
  %v4307 = vpop.f32.mrf.mxu0
  %v4308 = vpop.f32.mrf.mxu0
  %v4309 = vpop.f32.mrf.mxu0
  %4310 = vdwg.mxu0
  %4311 = vrot.lane.b32.xlu0 %v3018, 112
  %v4312 = vpop.permute.xlu0 %4311
  %4313 = vrot.lane.b32.xlu0 %v3018, 80
  %v4314 = vpop.permute.xlu0 %4313
  %v4316 = vsel %vm325, %v4312, 0
  %v4319 = vsel %vm325, %v4314, 0
  %4321 = vmatprep.subr.bf16.mxu0 0
  %4322 = vmatpush1.bf16.xpose.msra.mxu0 0
  %4323 = vmatprep.subr.bf16.mxu0 0
  %4324 = vmatpush1.bf16.xpose.msra.mxu0 0
  %4325 = vmatprep.subr.bf16.mxu0 0
  %4326 = vmatpush1.bf16.xpose.msra.mxu0 0
  %4327 = vmatprep.subr.bf16.mxu0 0
  %4328 = vmatpush1.bf16.xpose.msra.mxu0 0
  %4329 = vmatprep.subr.bf16.mxu0 0
  %4330 = vmatpush1.bf16.xpose.msra.mxu0 0
  %4331 = vmatprep.subr.bf16.mxu0 0
  %4332 = vmatpush1.bf16.xpose.msra.mxu0 0
  %4333 = vmatprep.subr.bf16.mxu0 0
  %4334 = vmatpush1.bf16.xpose.msra.mxu0 0
  %4335 = vmatprep.subr.bf16.mxu0 0
  %4336 = vmatpush1.bf16.xpose.msra.mxu0 %v4319
  %4337 = vmatprep.subr.bf16.mxu0 0
  %4338 = vmatpush2.bf16.xpose.msra.mxu0 0
  %4339 = vmatprep.subr.bf16.mxu0 0
  %4340 = vmatpush2.bf16.xpose.msra.mxu0 0
  %4341 = vmatprep.subr.bf16.mxu0 0
  %4342 = vmatpush2.bf16.xpose.msra.mxu0 0
  %4343 = vmatprep.subr.bf16.mxu0 0
  %4344 = vmatpush2.bf16.xpose.msra.mxu0 0
  %4345 = vmatprep.subr.bf16.mxu0 0
  %4346 = vmatpush2.bf16.xpose.msra.mxu0 0
  %4347 = vmatprep.subr.bf16.mxu0 0
  %4348 = vmatpush2.bf16.xpose.msra.mxu0 0
  %4349 = vmatprep.subr.bf16.mxu0 0
  %4350 = vmatpush2.bf16.xpose.msra.mxu0 0
  %4351 = vmatprep.subr.bf16.mxu0 0
  %4352 = vmatpush2.bf16.xpose.msra.mxu0 0
  %4353 = vmatprep.mubr.bf16.mxu0 0
  %4354 = vmatmul.mubr.bf16.gmra.mxu0 %v4316
  %v4355 = vpop.f32.mrf.mxu0
  %v4356 = vadd.f32 0.0, %v4355
  %v4357 = vpop.f32.mrf.mxu0
  %v4358 = vpop.f32.mrf.mxu0
  %v4359 = vpop.f32.mrf.mxu0
  %4360 = vdwg.mxu0
  %4361 = vrot.lane.b32.xlu0 %v3019, 112
  %v4362 = vpop.permute.xlu0 %4361
  %4363 = vrot.lane.b32.xlu0 %v3019, 80
  %v4364 = vpop.permute.xlu0 %4363
  %v4366 = vsel %vm325, %v4362, 0
  %v4369 = vsel %vm325, %v4364, 0
  %4371 = vmatprep.subr.bf16.mxu0 0
  %4372 = vmatpush1.bf16.xpose.msra.mxu0 0
  %4373 = vmatprep.subr.bf16.mxu0 0
  %4374 = vmatpush1.bf16.xpose.msra.mxu0 0
  %4375 = vmatprep.subr.bf16.mxu0 0
  %4376 = vmatpush1.bf16.xpose.msra.mxu0 0
  %4377 = vmatprep.subr.bf16.mxu0 0
  %4378 = vmatpush1.bf16.xpose.msra.mxu0 0
  %4379 = vmatprep.subr.bf16.mxu0 0
  %4380 = vmatpush1.bf16.xpose.msra.mxu0 0
  %4381 = vmatprep.subr.bf16.mxu0 0
  %4382 = vmatpush1.bf16.xpose.msra.mxu0 0
  %4383 = vmatprep.subr.bf16.mxu0 0
  %4384 = vmatpush1.bf16.xpose.msra.mxu0 0
  %4385 = vmatprep.subr.bf16.mxu0 0
  %4386 = vmatpush1.bf16.xpose.msra.mxu0 %v4369
  %4387 = vmatprep.subr.bf16.mxu0 0
  %4388 = vmatpush2.bf16.xpose.msra.mxu0 0
  %4389 = vmatprep.subr.bf16.mxu0 0
  %4390 = vmatpush2.bf16.xpose.msra.mxu0 0
  %4391 = vmatprep.subr.bf16.mxu0 0
  %4392 = vmatpush2.bf16.xpose.msra.mxu0 0
  %4393 = vmatprep.subr.bf16.mxu0 0
  %4394 = vmatpush2.bf16.xpose.msra.mxu0 0
  %4395 = vmatprep.subr.bf16.mxu0 0
  %4396 = vmatpush2.bf16.xpose.msra.mxu0 0
  %4397 = vmatprep.subr.bf16.mxu0 0
  %4398 = vmatpush2.bf16.xpose.msra.mxu0 0
  %4399 = vmatprep.subr.bf16.mxu0 0
  %4400 = vmatpush2.bf16.xpose.msra.mxu0 0
  %4401 = vmatprep.subr.bf16.mxu0 0
  %4402 = vmatpush2.bf16.xpose.msra.mxu0 0
  %4403 = vmatprep.mubr.bf16.mxu0 0
  %4404 = vmatmul.mubr.bf16.gmra.mxu0 %v4366
  %v4405 = vpop.f32.mrf.mxu0
  %v4406 = vadd.f32 0.0, %v4405
  %v4407 = vpop.f32.mrf.mxu0
  %v4408 = vpop.f32.mrf.mxu0
  %v4409 = vpop.f32.mrf.mxu0
  %4410 = vdwg.mxu0
  %v4411 = vmul.f32 %v4056, 0.25
  %v4412 = vmul.f32 %v4106, 0.25
  %v4413 = vmul.f32 %v4156, 0.25
  %v4414 = vmul.f32 %v4206, 0.25
  %v4415 = vmul.f32 %v4256, 0.25
  %v4416 = vmul.f32 %v4306, 0.25
  %v4417 = vmul.f32 %v4356, 0.25
  %v4418 = vmul.f32 %v4406, 0.25
  %v4419 = vadd.f32 %v4411, %v726
  %v4420 = vadd.f32 %v4412, %v730
  %v4421 = vadd.f32 %v4413, %v734
  %v4422 = vadd.f32 %v4414, %v738
  %v4423 = vadd.f32 %v4415, %v742
  %v4424 = vadd.f32 %v4416, %v746
  %v4425 = vadd.f32 %v4417, %v750
  %v4426 = vadd.f32 %v4418, %v754
  %v4427 = vsel %vm771, %v4419, -inf
  %4428 = vmax.xlane.f32.xlu0 %v4427
  %v4429 = vpop.xlane.xlu0 %4428
  %v4430 = vsel %vm771, %v4420, -inf
  %4431 = vmax.xlane.f32.xlu0 %v4430
  %v4432 = vpop.xlane.xlu0 %4431
  %v4433 = vsel %vm771, %v4421, -inf
  %4434 = vmax.xlane.f32.xlu0 %v4433
  %v4435 = vpop.xlane.xlu0 %4434
  %v4436 = vsel %vm771, %v4422, -inf
  %4437 = vmax.xlane.f32.xlu0 %v4436
  %v4438 = vpop.xlane.xlu0 %4437
  %v4439 = vsel %vm771, %v4423, -inf
  %4440 = vmax.xlane.f32.xlu0 %v4439
  %v4441 = vpop.xlane.xlu0 %4440
  %v4442 = vsel %vm771, %v4424, -inf
  %4443 = vmax.xlane.f32.xlu0 %v4442
  %v4444 = vpop.xlane.xlu0 %4443
  %v4445 = vsel %vm771, %v4425, -inf
  %4446 = vmax.xlane.f32.xlu0 %v4445
  %v4447 = vpop.xlane.xlu0 %4446
  %v4448 = vsel %vm771, %v4426, -inf
  %4449 = vmax.xlane.f32.xlu0 %v4448
  %v4450 = vpop.xlane.xlu0 %4449
  %v4451 = vsub.f32 %v4419, %v4429
  %v4452 = vsub.f32 %v4420, %v4432
  %v4453 = vsub.f32 %v4421, %v4435
  %v4454 = vsub.f32 %v4422, %v4438
  %v4455 = vsub.f32 %v4423, %v4441
  %v4456 = vsub.f32 %v4424, %v4444
  %v4457 = vsub.f32 %v4425, %v4447
  %v4458 = vsub.f32 %v4426, %v4450
  %v4459 = vmul.f32 %v4451, 1.442695
  %v4460 = vpow.pop %v4459
  %v4461 = vmul.f32 %v4452, 1.442695
  %v4462 = vpow.pop %v4461
  %v4463 = vmul.f32 %v4453, 1.442695
  %v4464 = vpow.pop %v4463
  %v4465 = vmul.f32 %v4454, 1.442695
  %v4466 = vpow.pop %v4465
  %v4467 = vmul.f32 %v4455, 1.442695
  %v4468 = vpow.pop %v4467
  %v4469 = vmul.f32 %v4456, 1.442695
  %v4470 = vpow.pop %v4469
  %v4471 = vmul.f32 %v4457, 1.442695
  %v4472 = vpow.pop %v4471
  %v4473 = vmul.f32 %v4458, 1.442695
  %v4474 = vpow.pop %v4473
  %v4475 = vsel %vm771, %v4460, 0.0
  %4476 = vadd.xlane.f32.xlu0 %v4475
  %v4477 = vpop.xlane.xlu0 %4476
  %v4478 = vsel %vm771, %v4462, 0.0
  %4479 = vadd.xlane.f32.xlu0 %v4478
  %v4480 = vpop.xlane.xlu0 %4479
  %v4481 = vsel %vm771, %v4464, 0.0
  %4482 = vadd.xlane.f32.xlu0 %v4481
  %v4483 = vpop.xlane.xlu0 %4482
  %v4484 = vsel %vm771, %v4466, 0.0
  %4485 = vadd.xlane.f32.xlu0 %v4484
  %v4486 = vpop.xlane.xlu0 %4485
  %v4487 = vsel %vm771, %v4468, 0.0
  %4488 = vadd.xlane.f32.xlu0 %v4487
  %v4489 = vpop.xlane.xlu0 %4488
  %v4490 = vsel %vm771, %v4470, 0.0
  %4491 = vadd.xlane.f32.xlu0 %v4490
  %v4492 = vpop.xlane.xlu0 %4491
  %v4493 = vsel %vm771, %v4472, 0.0
  %4494 = vadd.xlane.f32.xlu0 %v4493
  %v4495 = vpop.xlane.xlu0 %4494
  %v4496 = vsel %vm771, %v4474, 0.0
  %4497 = vadd.xlane.f32.xlu0 %v4496
  %v4498 = vpop.xlane.xlu0 %4497
  %v4499 = vrcp.pop %v4477
  %v4500 = vrcp.pop %v4480
  %v4501 = vrcp.pop %v4483
  %v4502 = vrcp.pop %v4486
  %v4503 = vrcp.pop %v4489
  %v4504 = vrcp.pop %v4492
  %v4505 = vrcp.pop %v4495
  %v4506 = vrcp.pop %v4498
  %v4507 = vmul.f32 %v4460, %v4499
  %v4508 = vmul.f32 %v4462, %v4500
  %v4509 = vmul.f32 %v4464, %v4501
  %v4510 = vmul.f32 %v4466, %v4502
  %v4511 = vmul.f32 %v4468, %v4503
  %v4512 = vmul.f32 %v4470, %v4504
  %v4513 = vmul.f32 %v4472, %v4505
  %v4514 = vmul.f32 %v4474, %v4506
  %v4515 = vpack.c.bf16 %v4507, %v4507
  %v4516 = vpack.c.bf16 %v4508, %v4508
  %v4517 = vpack.c.bf16 %v4509, %v4509
  %v4518 = vpack.c.bf16 %v4510, %v4510
  %v4519 = vpack.c.bf16 %v4511, %v4511
  %v4520 = vpack.c.bf16 %v4512, %v4512
  %v4521 = vpack.c.bf16 %v4513, %v4513
  %v4522 = vpack.c.bf16 %v4514, %v4514
  %4523 = vrot.lane.b32.xlu0 %v3012, 48
  %v4524 = vpop.permute.xlu0 %4523
  %v4526 = vsel %vm771, %v4515, 0
  %v4529 = vsel %vm873, %v4524, 0
  %4531 = vmatprep.subr.bf16.mxu0 0
  %4532 = vmatpush1.bf16.msra.mxu0 0
  %4533 = vmatprep.subr.bf16.mxu0 0
  %4534 = vmatpush1.bf16.msra.mxu0 0
  %4535 = vmatprep.subr.bf16.mxu0 0
  %4536 = vmatpush1.bf16.msra.mxu0 0
  %4537 = vmatprep.subr.bf16.mxu0 0
  %4538 = vmatpush1.bf16.msra.mxu0 0
  %4539 = vmatprep.subr.bf16.mxu0 0
  %4540 = vmatpush1.bf16.msra.mxu0 0
  %4541 = vmatprep.subr.bf16.mxu0 0
  %4542 = vmatpush1.bf16.msra.mxu0 0
  %4543 = vmatprep.subr.bf16.mxu0 0
  %4544 = vmatpush1.bf16.msra.mxu0 0
  %4545 = vmatprep.subr.bf16.mxu0 0
  %4546 = vmatpush1.bf16.msra.mxu0 %v4529
  %4547 = vmatprep.subr.bf16.mxu0 0
  %4548 = vmatpush2.bf16.msra.mxu0 0
  %4549 = vmatprep.subr.bf16.mxu0 0
  %4550 = vmatpush2.bf16.msra.mxu0 0
  %4551 = vmatprep.subr.bf16.mxu0 0
  %4552 = vmatpush2.bf16.msra.mxu0 0
  %4553 = vmatprep.subr.bf16.mxu0 0
  %4554 = vmatpush2.bf16.msra.mxu0 0
  %4555 = vmatprep.subr.bf16.mxu0 0
  %4556 = vmatpush2.bf16.msra.mxu0 0
  %4557 = vmatprep.subr.bf16.mxu0 0
  %4558 = vmatpush2.bf16.msra.mxu0 0
  %4559 = vmatprep.subr.bf16.mxu0 0
  %4560 = vmatpush2.bf16.msra.mxu0 0
  %4561 = vmatprep.subr.bf16.mxu0 0
  %4562 = vmatpush2.bf16.msra.mxu0 0
  %4563 = vmatprep.mubr.bf16.mxu0 0
  %4564 = vmatmul.mubr.bf16.gmra.mxu0 %v4526
  %v4565 = vpop.f32.mrf.mxu0
  %v4566 = vadd.f32 0.0, %v4565
  %v4567 = vpop.f32.mrf.mxu0
  %v4568 = vpop.f32.mrf.mxu0
  %v4569 = vpop.f32.mrf.mxu0
  %4570 = vdwg.mxu0
  %4571 = vrot.lane.b32.xlu0 %v3013, 48
  %v4572 = vpop.permute.xlu0 %4571
  %v4574 = vsel %vm771, %v4516, 0
  %v4577 = vsel %vm873, %v4572, 0
  %4579 = vmatprep.subr.bf16.mxu0 0
  %4580 = vmatpush1.bf16.msra.mxu0 0
  %4581 = vmatprep.subr.bf16.mxu0 0
  %4582 = vmatpush1.bf16.msra.mxu0 0
  %4583 = vmatprep.subr.bf16.mxu0 0
  %4584 = vmatpush1.bf16.msra.mxu0 0
  %4585 = vmatprep.subr.bf16.mxu0 0
  %4586 = vmatpush1.bf16.msra.mxu0 0
  %4587 = vmatprep.subr.bf16.mxu0 0
  %4588 = vmatpush1.bf16.msra.mxu0 0
  %4589 = vmatprep.subr.bf16.mxu0 0
  %4590 = vmatpush1.bf16.msra.mxu0 0
  %4591 = vmatprep.subr.bf16.mxu0 0
  %4592 = vmatpush1.bf16.msra.mxu0 0
  %4593 = vmatprep.subr.bf16.mxu0 0
  %4594 = vmatpush1.bf16.msra.mxu0 %v4577
  %4595 = vmatprep.subr.bf16.mxu0 0
  %4596 = vmatpush2.bf16.msra.mxu0 0
  %4597 = vmatprep.subr.bf16.mxu0 0
  %4598 = vmatpush2.bf16.msra.mxu0 0
  %4599 = vmatprep.subr.bf16.mxu0 0
  %4600 = vmatpush2.bf16.msra.mxu0 0
  %4601 = vmatprep.subr.bf16.mxu0 0
  %4602 = vmatpush2.bf16.msra.mxu0 0
  %4603 = vmatprep.subr.bf16.mxu0 0
  %4604 = vmatpush2.bf16.msra.mxu0 0
  %4605 = vmatprep.subr.bf16.mxu0 0
  %4606 = vmatpush2.bf16.msra.mxu0 0
  %4607 = vmatprep.subr.bf16.mxu0 0
  %4608 = vmatpush2.bf16.msra.mxu0 0
  %4609 = vmatprep.subr.bf16.mxu0 0
  %4610 = vmatpush2.bf16.msra.mxu0 0
  %4611 = vmatprep.mubr.bf16.mxu0 0
  %4612 = vmatmul.mubr.bf16.gmra.mxu0 %v4574
  %v4613 = vpop.f32.mrf.mxu0
  %v4614 = vadd.f32 0.0, %v4613
  %v4615 = vpop.f32.mrf.mxu0
  %v4616 = vpop.f32.mrf.mxu0
  %v4617 = vpop.f32.mrf.mxu0
  %4618 = vdwg.mxu0
  %4619 = vrot.lane.b32.xlu0 %v3014, 48
  %v4620 = vpop.permute.xlu0 %4619
  %v4622 = vsel %vm771, %v4517, 0
  %v4625 = vsel %vm873, %v4620, 0
  %4627 = vmatprep.subr.bf16.mxu0 0
  %4628 = vmatpush1.bf16.msra.mxu0 0
  %4629 = vmatprep.subr.bf16.mxu0 0
  %4630 = vmatpush1.bf16.msra.mxu0 0
  %4631 = vmatprep.subr.bf16.mxu0 0
  %4632 = vmatpush1.bf16.msra.mxu0 0
  %4633 = vmatprep.subr.bf16.mxu0 0
  %4634 = vmatpush1.bf16.msra.mxu0 0
  %4635 = vmatprep.subr.bf16.mxu0 0
  %4636 = vmatpush1.bf16.msra.mxu0 0
  %4637 = vmatprep.subr.bf16.mxu0 0
  %4638 = vmatpush1.bf16.msra.mxu0 0
  %4639 = vmatprep.subr.bf16.mxu0 0
  %4640 = vmatpush1.bf16.msra.mxu0 0
  %4641 = vmatprep.subr.bf16.mxu0 0
  %4642 = vmatpush1.bf16.msra.mxu0 %v4625
  %4643 = vmatprep.subr.bf16.mxu0 0
  %4644 = vmatpush2.bf16.msra.mxu0 0
  %4645 = vmatprep.subr.bf16.mxu0 0
  %4646 = vmatpush2.bf16.msra.mxu0 0
  %4647 = vmatprep.subr.bf16.mxu0 0
  %4648 = vmatpush2.bf16.msra.mxu0 0
  %4649 = vmatprep.subr.bf16.mxu0 0
  %4650 = vmatpush2.bf16.msra.mxu0 0
  %4651 = vmatprep.subr.bf16.mxu0 0
  %4652 = vmatpush2.bf16.msra.mxu0 0
  %4653 = vmatprep.subr.bf16.mxu0 0
  %4654 = vmatpush2.bf16.msra.mxu0 0
  %4655 = vmatprep.subr.bf16.mxu0 0
  %4656 = vmatpush2.bf16.msra.mxu0 0
  %4657 = vmatprep.subr.bf16.mxu0 0
  %4658 = vmatpush2.bf16.msra.mxu0 0
  %4659 = vmatprep.mubr.bf16.mxu0 0
  %4660 = vmatmul.mubr.bf16.gmra.mxu0 %v4622
  %v4661 = vpop.f32.mrf.mxu0
  %v4662 = vadd.f32 0.0, %v4661
  %v4663 = vpop.f32.mrf.mxu0
  %v4664 = vpop.f32.mrf.mxu0
  %v4665 = vpop.f32.mrf.mxu0
  %4666 = vdwg.mxu0
  %4667 = vrot.lane.b32.xlu0 %v3015, 48
  %v4668 = vpop.permute.xlu0 %4667
  %v4670 = vsel %vm771, %v4518, 0
  %v4673 = vsel %vm873, %v4668, 0
  %4675 = vmatprep.subr.bf16.mxu0 0
  %4676 = vmatpush1.bf16.msra.mxu0 0
  %4677 = vmatprep.subr.bf16.mxu0 0
  %4678 = vmatpush1.bf16.msra.mxu0 0
  %4679 = vmatprep.subr.bf16.mxu0 0
  %4680 = vmatpush1.bf16.msra.mxu0 0
  %4681 = vmatprep.subr.bf16.mxu0 0
  %4682 = vmatpush1.bf16.msra.mxu0 0
  %4683 = vmatprep.subr.bf16.mxu0 0
  %4684 = vmatpush1.bf16.msra.mxu0 0
  %4685 = vmatprep.subr.bf16.mxu0 0
  %4686 = vmatpush1.bf16.msra.mxu0 0
  %4687 = vmatprep.subr.bf16.mxu0 0
  %4688 = vmatpush1.bf16.msra.mxu0 0
  %4689 = vmatprep.subr.bf16.mxu0 0
  %4690 = vmatpush1.bf16.msra.mxu0 %v4673
  %4691 = vmatprep.subr.bf16.mxu0 0
  %4692 = vmatpush2.bf16.msra.mxu0 0
  %4693 = vmatprep.subr.bf16.mxu0 0
  %4694 = vmatpush2.bf16.msra.mxu0 0
  %4695 = vmatprep.subr.bf16.mxu0 0
  %4696 = vmatpush2.bf16.msra.mxu0 0
  %4697 = vmatprep.subr.bf16.mxu0 0
  %4698 = vmatpush2.bf16.msra.mxu0 0
  %4699 = vmatprep.subr.bf16.mxu0 0
  %4700 = vmatpush2.bf16.msra.mxu0 0
  %4701 = vmatprep.subr.bf16.mxu0 0
  %4702 = vmatpush2.bf16.msra.mxu0 0
  %4703 = vmatprep.subr.bf16.mxu0 0
  %4704 = vmatpush2.bf16.msra.mxu0 0
  %4705 = vmatprep.subr.bf16.mxu0 0
  %4706 = vmatpush2.bf16.msra.mxu0 0
  %4707 = vmatprep.mubr.bf16.mxu0 0
  %4708 = vmatmul.mubr.bf16.gmra.mxu0 %v4670
  %v4709 = vpop.f32.mrf.mxu0
  %v4710 = vadd.f32 0.0, %v4709
  %v4711 = vpop.f32.mrf.mxu0
  %v4712 = vpop.f32.mrf.mxu0
  %v4713 = vpop.f32.mrf.mxu0
  %4714 = vdwg.mxu0
  %4715 = vrot.lane.b32.xlu0 %v3016, 48
  %v4716 = vpop.permute.xlu0 %4715
  %v4718 = vsel %vm771, %v4519, 0
  %v4721 = vsel %vm873, %v4716, 0
  %4723 = vmatprep.subr.bf16.mxu0 0
  %4724 = vmatpush1.bf16.msra.mxu0 0
  %4725 = vmatprep.subr.bf16.mxu0 0
  %4726 = vmatpush1.bf16.msra.mxu0 0
  %4727 = vmatprep.subr.bf16.mxu0 0
  %4728 = vmatpush1.bf16.msra.mxu0 0
  %4729 = vmatprep.subr.bf16.mxu0 0
  %4730 = vmatpush1.bf16.msra.mxu0 0
  %4731 = vmatprep.subr.bf16.mxu0 0
  %4732 = vmatpush1.bf16.msra.mxu0 0
  %4733 = vmatprep.subr.bf16.mxu0 0
  %4734 = vmatpush1.bf16.msra.mxu0 0
  %4735 = vmatprep.subr.bf16.mxu0 0
  %4736 = vmatpush1.bf16.msra.mxu0 0
  %4737 = vmatprep.subr.bf16.mxu0 0
  %4738 = vmatpush1.bf16.msra.mxu0 %v4721
  %4739 = vmatprep.subr.bf16.mxu0 0
  %4740 = vmatpush2.bf16.msra.mxu0 0
  %4741 = vmatprep.subr.bf16.mxu0 0
  %4742 = vmatpush2.bf16.msra.mxu0 0
  %4743 = vmatprep.subr.bf16.mxu0 0
  %4744 = vmatpush2.bf16.msra.mxu0 0
  %4745 = vmatprep.subr.bf16.mxu0 0
  %4746 = vmatpush2.bf16.msra.mxu0 0
  %4747 = vmatprep.subr.bf16.mxu0 0
  %4748 = vmatpush2.bf16.msra.mxu0 0
  %4749 = vmatprep.subr.bf16.mxu0 0
  %4750 = vmatpush2.bf16.msra.mxu0 0
  %4751 = vmatprep.subr.bf16.mxu0 0
  %4752 = vmatpush2.bf16.msra.mxu0 0
  %4753 = vmatprep.subr.bf16.mxu0 0
  %4754 = vmatpush2.bf16.msra.mxu0 0
  %4755 = vmatprep.mubr.bf16.mxu0 0
  %4756 = vmatmul.mubr.bf16.gmra.mxu0 %v4718
  %v4757 = vpop.f32.mrf.mxu0
  %v4758 = vadd.f32 0.0, %v4757
  %v4759 = vpop.f32.mrf.mxu0
  %v4760 = vpop.f32.mrf.mxu0
  %v4761 = vpop.f32.mrf.mxu0
  %4762 = vdwg.mxu0
  %4763 = vrot.lane.b32.xlu0 %v3017, 48
  %v4764 = vpop.permute.xlu0 %4763
  %v4766 = vsel %vm771, %v4520, 0
  %v4769 = vsel %vm873, %v4764, 0
  %4771 = vmatprep.subr.bf16.mxu0 0
  %4772 = vmatpush1.bf16.msra.mxu0 0
  %4773 = vmatprep.subr.bf16.mxu0 0
  %4774 = vmatpush1.bf16.msra.mxu0 0
  %4775 = vmatprep.subr.bf16.mxu0 0
  %4776 = vmatpush1.bf16.msra.mxu0 0
  %4777 = vmatprep.subr.bf16.mxu0 0
  %4778 = vmatpush1.bf16.msra.mxu0 0
  %4779 = vmatprep.subr.bf16.mxu0 0
  %4780 = vmatpush1.bf16.msra.mxu0 0
  %4781 = vmatprep.subr.bf16.mxu0 0
  %4782 = vmatpush1.bf16.msra.mxu0 0
  %4783 = vmatprep.subr.bf16.mxu0 0
  %4784 = vmatpush1.bf16.msra.mxu0 0
  %4785 = vmatprep.subr.bf16.mxu0 0
  %4786 = vmatpush1.bf16.msra.mxu0 %v4769
  %4787 = vmatprep.subr.bf16.mxu0 0
  %4788 = vmatpush2.bf16.msra.mxu0 0
  %4789 = vmatprep.subr.bf16.mxu0 0
  %4790 = vmatpush2.bf16.msra.mxu0 0
  %4791 = vmatprep.subr.bf16.mxu0 0
  %4792 = vmatpush2.bf16.msra.mxu0 0
  %4793 = vmatprep.subr.bf16.mxu0 0
  %4794 = vmatpush2.bf16.msra.mxu0 0
  %4795 = vmatprep.subr.bf16.mxu0 0
  %4796 = vmatpush2.bf16.msra.mxu0 0
  %4797 = vmatprep.subr.bf16.mxu0 0
  %4798 = vmatpush2.bf16.msra.mxu0 0
  %4799 = vmatprep.subr.bf16.mxu0 0
  %4800 = vmatpush2.bf16.msra.mxu0 0
  %4801 = vmatprep.subr.bf16.mxu0 0
  %4802 = vmatpush2.bf16.msra.mxu0 0
  %4803 = vmatprep.mubr.bf16.mxu0 0
  %4804 = vmatmul.mubr.bf16.gmra.mxu0 %v4766
  %v4805 = vpop.f32.mrf.mxu0
  %v4806 = vadd.f32 0.0, %v4805
  %v4807 = vpop.f32.mrf.mxu0
  %v4808 = vpop.f32.mrf.mxu0
  %v4809 = vpop.f32.mrf.mxu0
  %4810 = vdwg.mxu0
  %4811 = vrot.lane.b32.xlu0 %v3018, 48
  %v4812 = vpop.permute.xlu0 %4811
  %v4814 = vsel %vm771, %v4521, 0
  %v4817 = vsel %vm873, %v4812, 0
  %4819 = vmatprep.subr.bf16.mxu0 0
  %4820 = vmatpush1.bf16.msra.mxu0 0
  %4821 = vmatprep.subr.bf16.mxu0 0
  %4822 = vmatpush1.bf16.msra.mxu0 0
  %4823 = vmatprep.subr.bf16.mxu0 0
  %4824 = vmatpush1.bf16.msra.mxu0 0
  %4825 = vmatprep.subr.bf16.mxu0 0
  %4826 = vmatpush1.bf16.msra.mxu0 0
  %4827 = vmatprep.subr.bf16.mxu0 0
  %4828 = vmatpush1.bf16.msra.mxu0 0
  %4829 = vmatprep.subr.bf16.mxu0 0
  %4830 = vmatpush1.bf16.msra.mxu0 0
  %4831 = vmatprep.subr.bf16.mxu0 0
  %4832 = vmatpush1.bf16.msra.mxu0 0
  %4833 = vmatprep.subr.bf16.mxu0 0
  %4834 = vmatpush1.bf16.msra.mxu0 %v4817
  %4835 = vmatprep.subr.bf16.mxu0 0
  %4836 = vmatpush2.bf16.msra.mxu0 0
  %4837 = vmatprep.subr.bf16.mxu0 0
  %4838 = vmatpush2.bf16.msra.mxu0 0
  %4839 = vmatprep.subr.bf16.mxu0 0
  %4840 = vmatpush2.bf16.msra.mxu0 0
  %4841 = vmatprep.subr.bf16.mxu0 0
  %4842 = vmatpush2.bf16.msra.mxu0 0
  %4843 = vmatprep.subr.bf16.mxu0 0
  %4844 = vmatpush2.bf16.msra.mxu0 0
  %4845 = vmatprep.subr.bf16.mxu0 0
  %4846 = vmatpush2.bf16.msra.mxu0 0
  %4847 = vmatprep.subr.bf16.mxu0 0
  %4848 = vmatpush2.bf16.msra.mxu0 0
  %4849 = vmatprep.subr.bf16.mxu0 0
  %4850 = vmatpush2.bf16.msra.mxu0 0
  %4851 = vmatprep.mubr.bf16.mxu0 0
  %4852 = vmatmul.mubr.bf16.gmra.mxu0 %v4814
  %v4853 = vpop.f32.mrf.mxu0
  %v4854 = vadd.f32 0.0, %v4853
  %v4855 = vpop.f32.mrf.mxu0
  %v4856 = vpop.f32.mrf.mxu0
  %v4857 = vpop.f32.mrf.mxu0
  %4858 = vdwg.mxu0
  %4859 = vrot.lane.b32.xlu0 %v3019, 48
  %v4860 = vpop.permute.xlu0 %4859
  %v4862 = vsel %vm771, %v4522, 0
  %v4865 = vsel %vm873, %v4860, 0
  %4867 = vmatprep.subr.bf16.mxu0 0
  %4868 = vmatpush1.bf16.msra.mxu0 0
  %4869 = vmatprep.subr.bf16.mxu0 0
  %4870 = vmatpush1.bf16.msra.mxu0 0
  %4871 = vmatprep.subr.bf16.mxu0 0
  %4872 = vmatpush1.bf16.msra.mxu0 0
  %4873 = vmatprep.subr.bf16.mxu0 0
  %4874 = vmatpush1.bf16.msra.mxu0 0
  %4875 = vmatprep.subr.bf16.mxu0 0
  %4876 = vmatpush1.bf16.msra.mxu0 0
  %4877 = vmatprep.subr.bf16.mxu0 0
  %4878 = vmatpush1.bf16.msra.mxu0 0
  %4879 = vmatprep.subr.bf16.mxu0 0
  %4880 = vmatpush1.bf16.msra.mxu0 0
  %4881 = vmatprep.subr.bf16.mxu0 0
  %4882 = vmatpush1.bf16.msra.mxu0 %v4865
  %4883 = vmatprep.subr.bf16.mxu0 0
  %4884 = vmatpush2.bf16.msra.mxu0 0
  %4885 = vmatprep.subr.bf16.mxu0 0
  %4886 = vmatpush2.bf16.msra.mxu0 0
  %4887 = vmatprep.subr.bf16.mxu0 0
  %4888 = vmatpush2.bf16.msra.mxu0 0
  %4889 = vmatprep.subr.bf16.mxu0 0
  %4890 = vmatpush2.bf16.msra.mxu0 0
  %4891 = vmatprep.subr.bf16.mxu0 0
  %4892 = vmatpush2.bf16.msra.mxu0 0
  %4893 = vmatprep.subr.bf16.mxu0 0
  %4894 = vmatpush2.bf16.msra.mxu0 0
  %4895 = vmatprep.subr.bf16.mxu0 0
  %4896 = vmatpush2.bf16.msra.mxu0 0
  %4897 = vmatprep.subr.bf16.mxu0 0
  %4898 = vmatpush2.bf16.msra.mxu0 0
  %4899 = vmatprep.mubr.bf16.mxu0 0
  %4900 = vmatmul.mubr.bf16.gmra.mxu0 %v4862
  %v4901 = vpop.f32.mrf.mxu0
  %v4902 = vadd.f32 0.0, %v4901
  %v4903 = vpop.f32.mrf.mxu0
  %v4904 = vpop.f32.mrf.mxu0
  %v4905 = vpop.f32.mrf.mxu0
  %4906 = vdwg.mxu0
  %v4907 = vld [vmem:[%s2910 + $0x10] sm:$0xf]
  %v4908 = vld [vmem:[%s2910 + $0x18] sm:$0xf]
  %v4909 = vpack.c.bf16 %v4614, %v4566
  %v4910 = vpack.c.bf16 %v4710, %v4662
  %v4911 = vpack.c.bf16 %v4806, %v4758
  %v4912 = vpack.c.bf16 %v4902, %v4854
  %v4915 = vunpack.c.l.b16 %v4907
  %v4916 = vunpack.c.l.b16 %v4908
  %v4917 = vpack.c.b16 %v4916, %v4915
  %4918 = vrot.lane.b32.xlu0 %v4917, 32
  %v4919 = vpop.permute.xlu0 %4918
  %v4922 = vsel %vm325, %v4909, 0
  %v4925 = vsel %vm325, %v4910, 0
  %v4928 = vsel %vm325, %v4911, 0
  %v4931 = vsel %vm325, %v4912, 0
  %4933 = vmatprep.subr.bf16.mxu0 0
  %4934 = vmatpush1.bf16.msra.mxu0 0
  %4935 = vmatprep.subr.bf16.mxu0 0
  %4936 = vmatpush1.bf16.msra.mxu0 0
  %4937 = vmatprep.subr.bf16.mxu0 0
  %4938 = vmatpush1.bf16.msra.mxu0 0
  %4939 = vmatprep.subr.bf16.mxu0 0
  %4940 = vmatpush1.bf16.msra.mxu0 0
  %4941 = vmatprep.subr.bf16.mxu0 0
  %4942 = vmatpush1.bf16.msra.mxu0 0
  %4943 = vmatprep.subr.bf16.mxu0 0
  %4944 = vmatpush1.bf16.msra.mxu0 0
  %4945 = vmatprep.subr.bf16.mxu0 0
  %4946 = vmatpush1.bf16.msra.mxu0 0
  %4947 = vmatprep.subr.bf16.mxu0 0
  %4948 = vmatpush1.bf16.msra.mxu0 %v4919
  %4949 = vmatprep.subr.bf16.mxu0 0
  %4950 = vmatpush2.bf16.msra.mxu0 0
  %4951 = vmatprep.subr.bf16.mxu0 0
  %4952 = vmatpush2.bf16.msra.mxu0 0
  %4953 = vmatprep.subr.bf16.mxu0 0
  %4954 = vmatpush2.bf16.msra.mxu0 0
  %4955 = vmatprep.subr.bf16.mxu0 0
  %4956 = vmatpush2.bf16.msra.mxu0 0
  %4957 = vmatprep.subr.bf16.mxu0 0
  %4958 = vmatpush2.bf16.msra.mxu0 0
  %4959 = vmatprep.subr.bf16.mxu0 0
  %4960 = vmatpush2.bf16.msra.mxu0 0
  %4961 = vmatprep.subr.bf16.mxu0 0
  %4962 = vmatpush2.bf16.msra.mxu0 0
  %4963 = vmatprep.subr.bf16.mxu0 0
  %4964 = vmatpush2.bf16.msra.mxu0 0
  %4965 = vmatprep.mubr.bf16.mxu0 0
  %4966 = vmatmul.mubr.bf16.gmra.mxu0 %v4922
  %v4967 = vpop.f32.mrf.mxu0
  %v4968 = vadd.f32 0.0, %v4967
  %v4969 = vpop.f32.mrf.mxu0
  %v4970 = vpop.f32.mrf.mxu0
  %v4971 = vadd.f32 0.0, %v4970
  %v4972 = vpop.f32.mrf.mxu0
  %4973 = vmatprep.mubr.bf16.mxu0 0
  %4974 = vmatmul.mubr.bf16.gmra.mxu0 %v4925
  %v4975 = vpop.f32.mrf.mxu0
  %v4976 = vadd.f32 0.0, %v4975
  %v4977 = vpop.f32.mrf.mxu0
  %v4978 = vpop.f32.mrf.mxu0
  %v4979 = vadd.f32 0.0, %v4978
  %v4980 = vpop.f32.mrf.mxu0
  %4981 = vmatprep.mubr.bf16.mxu0 0
  %4982 = vmatmul.mubr.bf16.gmra.mxu0 %v4928
  %v4983 = vpop.f32.mrf.mxu0
  %v4984 = vadd.f32 0.0, %v4983
  %v4985 = vpop.f32.mrf.mxu0
  %v4986 = vpop.f32.mrf.mxu0
  %v4987 = vadd.f32 0.0, %v4986
  %v4988 = vpop.f32.mrf.mxu0
  %4989 = vmatprep.mubr.bf16.mxu0 0
  %4990 = vmatmul.mubr.bf16.gmra.mxu0 %v4931
  %v4991 = vpop.f32.mrf.mxu0
  %v4992 = vadd.f32 0.0, %v4991
  %v4993 = vpop.f32.mrf.mxu0
  %v4994 = vpop.f32.mrf.mxu0
  %v4995 = vadd.f32 0.0, %v4994
  %v4996 = vpop.f32.mrf.mxu0
  %4997 = vdwg.mxu0
  %v4998 = vadd.f32 %v4003, %v4968
  %v4999 = vadd.f32 %v4004, %v4971
  %v5000 = vadd.f32 %v4005, %v4976
  %v5001 = vadd.f32 %v4006, %v4979
  %v5002 = vadd.f32 %v4007, %v4984
  %v5003 = vadd.f32 %v4008, %v4987
  %v5004 = vadd.f32 %v4009, %v4992
  %v5005 = vadd.f32 %v4010, %v4995
  %v5006 = vadd.f32 %v2900, %v4998
  %v5007 = vadd.f32 %v2901, %v4999
  %v5008 = vadd.f32 %v2902, %v5000
  %v5009 = vadd.f32 %v2903, %v5001
  %v5010 = vadd.f32 %v2904, %v5002
  %v5011 = vadd.f32 %v2905, %v5003
  %v5012 = vadd.f32 %v2906, %v5004
  %v5013 = vadd.f32 %v2907, %v5005
  %v5014 = vsel %vm31, %v5006, 0.0
  %5015 = vadd.xlane.f32.xlu0 %v5014
  %v5016 = vpop.xlane.xlu0 %5015
  %v5017 = vsel %vm31, %v5007, 0.0
  %5018 = vadd.xlane.f32.xlu0 %v5017
  %v5019 = vpop.xlane.xlu0 %5018
  %v5020 = vsel %vm31, %v5008, 0.0
  %5021 = vadd.xlane.f32.xlu0 %v5020
  %v5022 = vpop.xlane.xlu0 %5021
  %v5023 = vsel %vm31, %v5009, 0.0
  %5024 = vadd.xlane.f32.xlu0 %v5023
  %v5025 = vpop.xlane.xlu0 %5024
  %v5026 = vsel %vm31, %v5010, 0.0
  %5027 = vadd.xlane.f32.xlu0 %v5026
  %v5028 = vpop.xlane.xlu0 %5027
  %v5029 = vsel %vm31, %v5011, 0.0
  %5030 = vadd.xlane.f32.xlu0 %v5029
  %v5031 = vpop.xlane.xlu0 %5030
  %v5032 = vsel %vm31, %v5012, 0.0
  %5033 = vadd.xlane.f32.xlu0 %v5032
  %v5034 = vpop.xlane.xlu0 %5033
  %v5035 = vsel %vm31, %v5013, 0.0
  %5036 = vadd.xlane.f32.xlu0 %v5035
  %v5037 = vpop.xlane.xlu0 %5036
  %v5038 = vmul.f32 %v5016, %v56
  %v5039 = vmul.f32 %v5019, %v56
  %v5040 = vmul.f32 %v5022, %v56
  %v5041 = vmul.f32 %v5025, %v56
  %v5042 = vmul.f32 %v5028, %v56
  %v5043 = vmul.f32 %v5031, %v56
  %v5044 = vmul.f32 %v5034, %v56
  %v5045 = vmul.f32 %v5037, %v56
  %v5046 = vsub.f32 %v5006, %v5038
  %v5047 = vsub.f32 %v5007, %v5039
  %v5048 = vsub.f32 %v5008, %v5040
  %v5049 = vsub.f32 %v5009, %v5041
  %v5050 = vsub.f32 %v5010, %v5042
  %v5051 = vsub.f32 %v5011, %v5043
  %v5052 = vsub.f32 %v5012, %v5044
  %v5053 = vsub.f32 %v5013, %v5045
  %v5054 = vmul.f32 %v5046, %v5046
  %v5055 = vmul.f32 %v5047, %v5047
  %v5056 = vmul.f32 %v5048, %v5048
  %v5057 = vmul.f32 %v5049, %v5049
  %v5058 = vmul.f32 %v5050, %v5050
  %v5059 = vmul.f32 %v5051, %v5051
  %v5060 = vmul.f32 %v5052, %v5052
  %v5061 = vmul.f32 %v5053, %v5053
  %v5062 = vsel %vm31, %v5054, 0.0
  %5063 = vadd.xlane.f32.xlu0 %v5062
  %v5064 = vpop.xlane.xlu0 %5063
  %v5065 = vsel %vm31, %v5055, 0.0
  %5066 = vadd.xlane.f32.xlu0 %v5065
  %v5067 = vpop.xlane.xlu0 %5066
  %v5068 = vsel %vm31, %v5056, 0.0
  %5069 = vadd.xlane.f32.xlu0 %v5068
  %v5070 = vpop.xlane.xlu0 %5069
  %v5071 = vsel %vm31, %v5057, 0.0
  %5072 = vadd.xlane.f32.xlu0 %v5071
  %v5073 = vpop.xlane.xlu0 %5072
  %v5074 = vsel %vm31, %v5058, 0.0
  %5075 = vadd.xlane.f32.xlu0 %v5074
  %v5076 = vpop.xlane.xlu0 %5075
  %v5077 = vsel %vm31, %v5059, 0.0
  %5078 = vadd.xlane.f32.xlu0 %v5077
  %v5079 = vpop.xlane.xlu0 %5078
  %v5080 = vsel %vm31, %v5060, 0.0
  %5081 = vadd.xlane.f32.xlu0 %v5080
  %v5082 = vpop.xlane.xlu0 %5081
  %v5083 = vsel %vm31, %v5061, 0.0
  %5084 = vadd.xlane.f32.xlu0 %v5083
  %v5085 = vpop.xlane.xlu0 %5084
  %v5086 = vmul.f32 %v5064, %v56
  %v5087 = vmul.f32 %v5067, %v56
  %v5088 = vmul.f32 %v5070, %v56
  %v5089 = vmul.f32 %v5073, %v56
  %v5090 = vmul.f32 %v5076, %v56
  %v5091 = vmul.f32 %v5079, %v56
  %v5092 = vmul.f32 %v5082, %v56
  %v5093 = vmul.f32 %v5085, %v56
  %v5094 = vadd.f32 %v5086, 1e-05
  %v5095 = vadd.f32 %v5087, 1e-05
  %v5096 = vadd.f32 %v5088, 1e-05
  %v5097 = vadd.f32 %v5089, 1e-05
  %v5098 = vadd.f32 %v5090, 1e-05
  %v5099 = vadd.f32 %v5091, 1e-05
  %v5100 = vadd.f32 %v5092, 1e-05
  %v5101 = vadd.f32 %v5093, 1e-05
  %v5102 = vrsqrt.pop %v5094
  %v5103 = vrsqrt.pop %v5095
  %v5104 = vrsqrt.pop %v5096
  %v5105 = vrsqrt.pop %v5097
  %v5106 = vrsqrt.pop %v5098
  %v5107 = vrsqrt.pop %v5099
  %v5108 = vrsqrt.pop %v5100
  %v5109 = vrsqrt.pop %v5101
  %v5110 = vmul.f32 %v5046, %v5102
  %v5111 = vmul.f32 %v5047, %v5103
  %v5112 = vmul.f32 %v5048, %v5104
  %v5113 = vmul.f32 %v5049, %v5105
  %v5114 = vmul.f32 %v5050, %v5106
  %v5115 = vmul.f32 %v5051, %v5107
  %v5116 = vmul.f32 %v5052, %v5108
  %v5117 = vmul.f32 %v5053, %v5109
  %v5118 = vlaneseq
  %v5119 = vshrl.u32 %v5118, 7
  %v5120 = vsub.s32 4, %v5119
  %v5121 = vrot.slane %v2909, %v5120
  %v5122 = vmul.f32 %v5110, %v5121
  %v5123 = vmul.f32 %v5111, %v5121
  %v5124 = vmul.f32 %v5112, %v5121
  %v5125 = vmul.f32 %v5113, %v5121
  %v5126 = vmul.f32 %v5114, %v5121
  %v5127 = vmul.f32 %v5115, %v5121
  %v5128 = vmul.f32 %v5116, %v5121
  %v5129 = vmul.f32 %v5117, %v5121
  %v5130 = vlaneseq
  %v5131 = vshrl.u32 %v5130, 7
  %v5132 = vsub.s32 5, %v5131
  %v5133 = vrot.slane %v2909, %v5132
  %v5134 = vadd.f32 %v5122, %v5133
  %v5135 = vadd.f32 %v5123, %v5133
  %v5136 = vadd.f32 %v5124, %v5133
  %v5137 = vadd.f32 %v5125, %v5133
  %v5138 = vadd.f32 %v5126, %v5133
  %v5139 = vadd.f32 %v5127, %v5133
  %v5140 = vadd.f32 %v5128, %v5133
  %v5141 = vadd.f32 %v5129, %v5133
  %v5142 = vld [vmem:[%s2910 + $0x4] sm:$0xf]
  %v5143 = vld [vmem:[%s2910 + $0xc] sm:$0xf]
  %v5144 = vld [vmem:[%s2910 + $0x14] sm:$0xf]
  %v5145 = vld [vmem:[%s2910 + $0x1c] sm:$0xf]
  %v5146 = vld [vmem:[%s2910 + $0x24] sm:$0xf]
  %v5147 = vld [vmem:[%s2910 + $0x2c] sm:$0xf]
  %v5148 = vld [vmem:[%s2910 + $0x34] sm:$0xf]
  %v5149 = vld [vmem:[%s2910 + $0x3c] sm:$0xf]
  %v5150 = vpack.c.bf16 %v5135, %v5134
  %v5151 = vpack.c.bf16 %v5137, %v5136
  %v5152 = vpack.c.bf16 %v5139, %v5138
  %v5153 = vpack.c.bf16 %v5141, %v5140
  %v5154 = vlaneseq
  %v5155 = vshrl.u32 %v5154, 7
  %v5156 = vsub.s32 2, %v5155
  %v5157 = vrot.slane %v2909, %v5156
  %v5162 = vunpack.c.l.b16 %v5142
  %v5163 = vunpack.c.l.b16 %v5143
  %v5164 = vunpack.c.l.b16 %v5144
  %v5165 = vunpack.c.l.b16 %v5145
  %v5166 = vpack.c.b16 %v5163, %v5162
  %v5167 = vpack.c.b16 %v5165, %v5164
  %v5171 = vsel %vm31, %v5150, 0
  %v5174 = vsel %vm31, %v5151, 0
  %v5177 = vsel %vm31, %v5152, 0
  %v5180 = vsel %vm31, %v5153, 0
  %5182 = vmatprep.subr.bf16.mxu0 0
  %5183 = vmatpush1.bf16.msra.mxu0 0
  %5184 = vmatprep.subr.bf16.mxu0 0
  %5185 = vmatpush1.bf16.msra.mxu0 0
  %5186 = vmatprep.subr.bf16.mxu0 0
  %5187 = vmatpush1.bf16.msra.mxu0 0
  %5188 = vmatprep.subr.bf16.mxu0 0
  %5189 = vmatpush1.bf16.msra.mxu0 0
  %5190 = vmatprep.subr.bf16.mxu0 0
  %5191 = vmatpush1.bf16.msra.mxu0 0
  %5192 = vmatprep.subr.bf16.mxu0 0
  %5193 = vmatpush1.bf16.msra.mxu0 0
  %5194 = vmatprep.subr.bf16.mxu0 0
  %5195 = vmatpush1.bf16.msra.mxu0 %v5167
  %5196 = vmatprep.subr.bf16.mxu0 0
  %5197 = vmatpush1.bf16.msra.mxu0 %v5166
  %5198 = vmatprep.subr.bf16.mxu0 0
  %5199 = vmatpush2.bf16.msra.mxu0 0
  %5200 = vmatprep.subr.bf16.mxu0 0
  %5201 = vmatpush2.bf16.msra.mxu0 0
  %5202 = vmatprep.subr.bf16.mxu0 0
  %5203 = vmatpush2.bf16.msra.mxu0 0
  %5204 = vmatprep.subr.bf16.mxu0 0
  %5205 = vmatpush2.bf16.msra.mxu0 0
  %5206 = vmatprep.subr.bf16.mxu0 0
  %5207 = vmatpush2.bf16.msra.mxu0 0
  %5208 = vmatprep.subr.bf16.mxu0 0
  %5209 = vmatpush2.bf16.msra.mxu0 0
  %5210 = vmatprep.subr.bf16.mxu0 0
  %5211 = vmatpush2.bf16.msra.mxu0 0
  %5212 = vmatprep.subr.bf16.mxu0 0
  %5213 = vmatpush2.bf16.msra.mxu0 0
  %5214 = vmatprep.mubr.bf16.mxu0 0
  %5215 = vmatmul.mubr.bf16.gmra.mxu0 %v5171
  %v5216 = vpop.f32.mrf.mxu0
  %v5217 = vadd.f32 %v5157, %v5216
  %v5218 = vpop.f32.mrf.mxu0
  %v5219 = vpop.f32.mrf.mxu0
  %v5220 = vadd.f32 %v5157, %v5219
  %v5221 = vpop.f32.mrf.mxu0
  %5222 = vmatprep.mubr.bf16.mxu0 0
  %5223 = vmatmul.mubr.bf16.gmra.mxu0 %v5174
  %v5224 = vpop.f32.mrf.mxu0
  %v5225 = vadd.f32 %v5157, %v5224
  %v5226 = vpop.f32.mrf.mxu0
  %v5227 = vpop.f32.mrf.mxu0
  %v5228 = vadd.f32 %v5157, %v5227
  %v5229 = vpop.f32.mrf.mxu0
  %5230 = vmatprep.mubr.bf16.mxu0 0
  %5231 = vmatmul.mubr.bf16.gmra.mxu0 %v5177
  %v5232 = vpop.f32.mrf.mxu0
  %v5233 = vadd.f32 %v5157, %v5232
  %v5234 = vpop.f32.mrf.mxu0
  %v5235 = vpop.f32.mrf.mxu0
  %v5236 = vadd.f32 %v5157, %v5235
  %v5237 = vpop.f32.mrf.mxu0
  %5238 = vmatprep.mubr.bf16.mxu0 0
  %5239 = vmatmul.mubr.bf16.gmra.mxu0 %v5180
  %v5240 = vpop.f32.mrf.mxu0
  %v5241 = vadd.f32 %v5157, %v5240
  %v5242 = vpop.f32.mrf.mxu0
  %v5243 = vpop.f32.mrf.mxu0
  %v5244 = vadd.f32 %v5157, %v5243
  %v5245 = vpop.f32.mrf.mxu0
  %5246 = vdwg.mxu0
  %v5247 = vmul.f32 %v5217, %v5217
  %v5248 = vmul.f32 %v5220, %v5220
  %v5249 = vmul.f32 %v5225, %v5225
  %v5250 = vmul.f32 %v5228, %v5228
  %v5251 = vmul.f32 %v5233, %v5233
  %v5252 = vmul.f32 %v5236, %v5236
  %v5253 = vmul.f32 %v5241, %v5241
  %v5254 = vmul.f32 %v5244, %v5244
  %v5255 = vmul.f32 %v5217, %v5247
  %v5256 = vmul.f32 %v5220, %v5248
  %v5257 = vmul.f32 %v5225, %v5249
  %v5258 = vmul.f32 %v5228, %v5250
  %v5259 = vmul.f32 %v5233, %v5251
  %v5260 = vmul.f32 %v5236, %v5252
  %v5261 = vmul.f32 %v5241, %v5253
  %v5262 = vmul.f32 %v5244, %v5254
  %v5263 = vmul.f32 %v5255, 0.044715
  %v5264 = vmul.f32 %v5256, 0.044715
  %v5265 = vmul.f32 %v5257, 0.044715
  %v5266 = vmul.f32 %v5258, 0.044715
  %v5267 = vmul.f32 %v5259, 0.044715
  %v5268 = vmul.f32 %v5260, 0.044715
  %v5269 = vmul.f32 %v5261, 0.044715
  %v5270 = vmul.f32 %v5262, 0.044715
  %v5271 = vadd.f32 %v5217, %v5263
  %v5272 = vadd.f32 %v5220, %v5264
  %v5273 = vadd.f32 %v5225, %v5265
  %v5274 = vadd.f32 %v5228, %v5266
  %v5275 = vadd.f32 %v5233, %v5267
  %v5276 = vadd.f32 %v5236, %v5268
  %v5277 = vadd.f32 %v5241, %v5269
  %v5278 = vadd.f32 %v5244, %v5270
  %v5279 = vmul.f32 %v5271, 0.7978846
  %v5280 = vmul.f32 %v5272, 0.7978846
  %v5281 = vmul.f32 %v5273, 0.7978846
  %v5282 = vmul.f32 %v5274, 0.7978846
  %v5283 = vmul.f32 %v5275, 0.7978846
  %v5284 = vmul.f32 %v5276, 0.7978846
  %v5285 = vmul.f32 %v5277, 0.7978846
  %v5286 = vmul.f32 %v5278, 0.7978846
  %v5287 = vtanh.pop %v5279
  %v5288 = vtanh.pop %v5280
  %v5289 = vtanh.pop %v5281
  %v5290 = vtanh.pop %v5282
  %v5291 = vtanh.pop %v5283
  %v5292 = vtanh.pop %v5284
  %v5293 = vtanh.pop %v5285
  %v5294 = vtanh.pop %v5286
  %v5295 = vadd.f32 %v5287, 1.0
  %v5296 = vadd.f32 %v5288, 1.0
  %v5297 = vadd.f32 %v5289, 1.0
  %v5298 = vadd.f32 %v5290, 1.0
  %v5299 = vadd.f32 %v5291, 1.0
  %v5300 = vadd.f32 %v5292, 1.0
  %v5301 = vadd.f32 %v5293, 1.0
  %v5302 = vadd.f32 %v5294, 1.0
  %v5303 = vmul.f32 %v5295, 0.5
  %v5304 = vmul.f32 %v5296, 0.5
  %v5305 = vmul.f32 %v5297, 0.5
  %v5306 = vmul.f32 %v5298, 0.5
  %v5307 = vmul.f32 %v5299, 0.5
  %v5308 = vmul.f32 %v5300, 0.5
  %v5309 = vmul.f32 %v5301, 0.5
  %v5310 = vmul.f32 %v5302, 0.5
  %v5311 = vmul.f32 %v5217, %v5303
  %v5312 = vmul.f32 %v5220, %v5304
  %v5313 = vmul.f32 %v5225, %v5305
  %v5314 = vmul.f32 %v5228, %v5306
  %v5315 = vmul.f32 %v5233, %v5307
  %v5316 = vmul.f32 %v5236, %v5308
  %v5317 = vmul.f32 %v5241, %v5309
  %v5318 = vmul.f32 %v5244, %v5310
  %v5319 = vpack.c.bf16 %v5312, %v5311
  %v5320 = vpack.c.bf16 %v5314, %v5313
  %v5321 = vpack.c.bf16 %v5316, %v5315
  %v5322 = vpack.c.bf16 %v5318, %v5317
  %v5323 = vlaneseq
  %v5324 = vshrl.u32 %v5323, 7
  %v5325 = vsub.s32 3, %v5324
  %v5326 = vrot.slane %v2909, %v5325
  %v5331 = vunpack.c.l.b16 %v5146
  %v5332 = vunpack.c.l.b16 %v5147
  %v5333 = vunpack.c.l.b16 %v5148
  %v5334 = vunpack.c.l.b16 %v5149
  %v5335 = vpack.c.b16 %v5332, %v5331
  %v5336 = vpack.c.b16 %v5334, %v5333
  %5337 = vrot.lane.b32.xlu0 %v5166, 64
  %v5338 = vpop.permute.xlu0 %5337
  %5339 = vrot.lane.b32.xlu0 %v5167, 64
  %v5340 = vpop.permute.xlu0 %5339
  %5341 = vrot.lane.b32.xlu0 %v5335, 64
  %v5342 = vpop.permute.xlu0 %5341
  %5343 = vrot.lane.b32.xlu0 %v5336, 64
  %v5344 = vpop.permute.xlu0 %5343
  %v5350 = vsel %vm2694, %v5319, 0
  %v5353 = vsel %vm2694, %v5320, 0
  %v5356 = vsel %vm2694, %v5321, 0
  %v5359 = vsel %vm2694, %v5322, 0
  %5361 = vmatprep.subr.bf16.mxu0 0
  %5362 = vmatpush1.bf16.msra.mxu0 0
  %5363 = vmatprep.subr.bf16.mxu0 0
  %5364 = vmatpush1.bf16.msra.mxu0 0
  %5365 = vmatprep.subr.bf16.mxu0 0
  %5366 = vmatpush1.bf16.msra.mxu0 0
  %5367 = vmatprep.subr.bf16.mxu0 0
  %5368 = vmatpush1.bf16.msra.mxu0 0
  %5369 = vmatprep.subr.bf16.mxu0 0
  %5370 = vmatpush1.bf16.msra.mxu0 %v5344
  %5371 = vmatprep.subr.bf16.mxu0 0
  %5372 = vmatpush1.bf16.msra.mxu0 %v5342
  %5373 = vmatprep.subr.bf16.mxu0 0
  %5374 = vmatpush1.bf16.msra.mxu0 %v5340
  %5375 = vmatprep.subr.bf16.mxu0 0
  %5376 = vmatpush1.bf16.msra.mxu0 %v5338
  %5377 = vmatprep.subr.bf16.mxu0 0
  %5378 = vmatpush2.bf16.msra.mxu0 0
  %5379 = vmatprep.subr.bf16.mxu0 0
  %5380 = vmatpush2.bf16.msra.mxu0 0
  %5381 = vmatprep.subr.bf16.mxu0 0
  %5382 = vmatpush2.bf16.msra.mxu0 0
  %5383 = vmatprep.subr.bf16.mxu0 0
  %5384 = vmatpush2.bf16.msra.mxu0 0
  %5385 = vmatprep.subr.bf16.mxu0 0
  %5386 = vmatpush2.bf16.msra.mxu0 0
  %5387 = vmatprep.subr.bf16.mxu0 0
  %5388 = vmatpush2.bf16.msra.mxu0 0
  %5389 = vmatprep.subr.bf16.mxu0 0
  %5390 = vmatpush2.bf16.msra.mxu0 0
  %5391 = vmatprep.subr.bf16.mxu0 0
  %5392 = vmatpush2.bf16.msra.mxu0 0
  %5393 = vmatprep.mubr.bf16.mxu0 0
  %5394 = vmatmul.mubr.bf16.gmra.mxu0 %v5350
  %v5395 = vpop.f32.mrf.mxu0
  %v5396 = vadd.f32 %v5326, %v5395
  %v5397 = vpop.f32.mrf.mxu0
  %v5398 = vpop.f32.mrf.mxu0
  %v5399 = vadd.f32 %v5326, %v5398
  %v5400 = vpop.f32.mrf.mxu0
  %5401 = vmatprep.mubr.bf16.mxu0 0
  %5402 = vmatmul.mubr.bf16.gmra.mxu0 %v5353
  %v5403 = vpop.f32.mrf.mxu0
  %v5404 = vadd.f32 %v5326, %v5403
  %v5405 = vpop.f32.mrf.mxu0
  %v5406 = vpop.f32.mrf.mxu0
  %v5407 = vadd.f32 %v5326, %v5406
  %v5408 = vpop.f32.mrf.mxu0
  %5409 = vmatprep.mubr.bf16.mxu0 0
  %5410 = vmatmul.mubr.bf16.gmra.mxu0 %v5356
  %v5411 = vpop.f32.mrf.mxu0
  %v5412 = vadd.f32 %v5326, %v5411
  %v5413 = vpop.f32.mrf.mxu0
  %v5414 = vpop.f32.mrf.mxu0
  %v5415 = vadd.f32 %v5326, %v5414
  %v5416 = vpop.f32.mrf.mxu0
  %5417 = vmatprep.mubr.bf16.mxu0 0
  %5418 = vmatmul.mubr.bf16.gmra.mxu0 %v5359
  %v5419 = vpop.f32.mrf.mxu0
  %v5420 = vadd.f32 %v5326, %v5419
  %v5421 = vpop.f32.mrf.mxu0
  %v5422 = vpop.f32.mrf.mxu0
  %v5423 = vadd.f32 %v5326, %v5422
  %v5424 = vpop.f32.mrf.mxu0
  %5425 = vdwg.mxu0
  %v5426 = vadd.f32 %v5134, %v5396
  %v5427 = vadd.f32 %v5135, %v5399
  %v5428 = vadd.f32 %v5136, %v5404
  %v5429 = vadd.f32 %v5137, %v5407
  %v5430 = vadd.f32 %v5138, %v5412
  %v5431 = vadd.f32 %v5139, %v5415
  %v5432 = vadd.f32 %v5140, %v5420
  %v5433 = vadd.f32 %v5141, %v5423
  %v5434 = vsel %vm31, %v5426, 0.0
  %5435 = vadd.xlane.f32.xlu0 %v5434
  %v5436 = vpop.xlane.xlu0 %5435
  %v5437 = vsel %vm31, %v5427, 0.0
  %5438 = vadd.xlane.f32.xlu0 %v5437
  %v5439 = vpop.xlane.xlu0 %5438
  %v5440 = vsel %vm31, %v5428, 0.0
  %5441 = vadd.xlane.f32.xlu0 %v5440
  %v5442 = vpop.xlane.xlu0 %5441
  %v5443 = vsel %vm31, %v5429, 0.0
  %5444 = vadd.xlane.f32.xlu0 %v5443
  %v5445 = vpop.xlane.xlu0 %5444
  %v5446 = vsel %vm31, %v5430, 0.0
  %5447 = vadd.xlane.f32.xlu0 %v5446
  %v5448 = vpop.xlane.xlu0 %5447
  %v5449 = vsel %vm31, %v5431, 0.0
  %5450 = vadd.xlane.f32.xlu0 %v5449
  %v5451 = vpop.xlane.xlu0 %5450
  %v5452 = vsel %vm31, %v5432, 0.0
  %5453 = vadd.xlane.f32.xlu0 %v5452
  %v5454 = vpop.xlane.xlu0 %5453
  %v5455 = vsel %vm31, %v5433, 0.0
  %5456 = vadd.xlane.f32.xlu0 %v5455
  %v5457 = vpop.xlane.xlu0 %5456
  %v5458 = vmul.f32 %v5436, %v56
  %v5459 = vmul.f32 %v5439, %v56
  %v5460 = vmul.f32 %v5442, %v56
  %v5461 = vmul.f32 %v5445, %v56
  %v5462 = vmul.f32 %v5448, %v56
  %v5463 = vmul.f32 %v5451, %v56
  %v5464 = vmul.f32 %v5454, %v56
  %v5465 = vmul.f32 %v5457, %v56
  %v5466 = vsub.f32 %v5426, %v5458
  %v5467 = vsub.f32 %v5427, %v5459
  %v5468 = vsub.f32 %v5428, %v5460
  %v5469 = vsub.f32 %v5429, %v5461
  %v5470 = vsub.f32 %v5430, %v5462
  %v5471 = vsub.f32 %v5431, %v5463
  %v5472 = vsub.f32 %v5432, %v5464
  %v5473 = vsub.f32 %v5433, %v5465
  %v5474 = vmul.f32 %v5466, %v5466
  %v5475 = vmul.f32 %v5467, %v5467
  %v5476 = vmul.f32 %v5468, %v5468
  %v5477 = vmul.f32 %v5469, %v5469
  %v5478 = vmul.f32 %v5470, %v5470
  %v5479 = vmul.f32 %v5471, %v5471
  %v5480 = vmul.f32 %v5472, %v5472
  %v5481 = vmul.f32 %v5473, %v5473
  %v5482 = vsel %vm31, %v5474, 0.0
  %5483 = vadd.xlane.f32.xlu0 %v5482
  %v5484 = vpop.xlane.xlu0 %5483
  %v5485 = vsel %vm31, %v5475, 0.0
  %5486 = vadd.xlane.f32.xlu0 %v5485
  %v5487 = vpop.xlane.xlu0 %5486
  %v5488 = vsel %vm31, %v5476, 0.0
  %5489 = vadd.xlane.f32.xlu0 %v5488
  %v5490 = vpop.xlane.xlu0 %5489
  %v5491 = vsel %vm31, %v5477, 0.0
  %5492 = vadd.xlane.f32.xlu0 %v5491
  %v5493 = vpop.xlane.xlu0 %5492
  %v5494 = vsel %vm31, %v5478, 0.0
  %5495 = vadd.xlane.f32.xlu0 %v5494
  %v5496 = vpop.xlane.xlu0 %5495
  %v5497 = vsel %vm31, %v5479, 0.0
  %5498 = vadd.xlane.f32.xlu0 %v5497
  %v5499 = vpop.xlane.xlu0 %5498
  %v5500 = vsel %vm31, %v5480, 0.0
  %5501 = vadd.xlane.f32.xlu0 %v5500
  %v5502 = vpop.xlane.xlu0 %5501
  %v5503 = vsel %vm31, %v5481, 0.0
  %5504 = vadd.xlane.f32.xlu0 %v5503
  %v5505 = vpop.xlane.xlu0 %5504
  %v5506 = vmul.f32 %v5484, %v56
  %v5507 = vmul.f32 %v5487, %v56
  %v5508 = vmul.f32 %v5490, %v56
  %v5509 = vmul.f32 %v5493, %v56
  %v5510 = vmul.f32 %v5496, %v56
  %v5511 = vmul.f32 %v5499, %v56
  %v5512 = vmul.f32 %v5502, %v56
  %v5513 = vmul.f32 %v5505, %v56
  %v5514 = vadd.f32 %v5506, 1e-05
  %v5515 = vadd.f32 %v5507, 1e-05
  %v5516 = vadd.f32 %v5508, 1e-05
  %v5517 = vadd.f32 %v5509, 1e-05
  %v5518 = vadd.f32 %v5510, 1e-05
  %v5519 = vadd.f32 %v5511, 1e-05
  %v5520 = vadd.f32 %v5512, 1e-05
  %v5521 = vadd.f32 %v5513, 1e-05
  %v5522 = vrsqrt.pop %v5514
  %v5523 = vrsqrt.pop %v5515
  %v5524 = vrsqrt.pop %v5516
  %v5525 = vrsqrt.pop %v5517
  %v5526 = vrsqrt.pop %v5518
  %v5527 = vrsqrt.pop %v5519
  %v5528 = vrsqrt.pop %v5520
  %v5529 = vrsqrt.pop %v5521
  %v5530 = vmul.f32 %v5466, %v5522
  %v5531 = vmul.f32 %v5467, %v5523
  %v5532 = vmul.f32 %v5468, %v5524
  %v5533 = vmul.f32 %v5469, %v5525
  %v5534 = vmul.f32 %v5470, %v5526
  %v5535 = vmul.f32 %v5471, %v5527
  %v5536 = vmul.f32 %v5472, %v5528
  %v5537 = vmul.f32 %v5473, %v5529
  %v5538 = vlaneseq
  %v5539 = vshrl.u32 %v5538, 7
  %v5540 = vsub.s32 6, %v5539
  %v5541 = vrot.slane %v2909, %v5540
  %v5542 = vmul.f32 %v5530, %v5541
  %v5543 = vmul.f32 %v5531, %v5541
  %v5544 = vmul.f32 %v5532, %v5541
  %v5545 = vmul.f32 %v5533, %v5541
  %v5546 = vmul.f32 %v5534, %v5541
  %v5547 = vmul.f32 %v5535, %v5541
  %v5548 = vmul.f32 %v5536, %v5541
  %v5549 = vmul.f32 %v5537, %v5541
  %v5550 = vlaneseq
  %v5551 = vshrl.u32 %v5550, 7
  %v5552 = vsub.s32 7, %v5551
  %v5553 = vrot.slane %v2909, %v5552
  %v5554 = vadd.f32 %v5542, %v5553
  %v5555 = vadd.f32 %v5543, %v5553
  %v5556 = vadd.f32 %v5544, %v5553
  %v5557 = vadd.f32 %v5545, %v5553
  %v5558 = vadd.f32 %v5546, %v5553
  %v5559 = vadd.f32 %v5547, %v5553
  %v5560 = vadd.f32 %v5548, %v5553
  %v5561 = vadd.f32 %v5549, %v5553
  %v5562 = vld [vmem:[%s4] sm:$0xff]
  %v5563 = vld [vmem:[%s4 + $0x8] sm:$0xff]
  %v5564 = vld [vmem:[%s4 + $0x10] sm:$0xff]
  %v5565 = vld [vmem:[%s4 + $0x18] sm:$0xff]
  %v5566 = vld [vmem:[%s4 + $0x20] sm:$0x1]
  %v5567 = vlaneseq
  %v5568 = vshrl.u32 %v5567, 7
  %v5569 = vsub.s32 0, %v5568
  %v5570 = vrot.slane %v5566, %v5569
  %v5579 = vrot.slane %v5555, 7
  %vm5580 = vcmask 1041409
  %v5581 = vsel %vm5580, %v5579, %v5554
  %v5582 = vrot.slane %v5556, 6
  %vm5583 = vcmask 1042434
  %v5584 = vsel %vm5583, %v5582, %v5581
  %v5585 = vrot.slane %v5557, 5
  %vm5586 = vcmask 1043459
  %v5587 = vsel %vm5586, %v5585, %v5584
  %v5588 = vrot.slane %v5558, 4
  %vm5589 = vcmask 1044484
  %v5590 = vsel %vm5589, %v5588, %v5587
  %v5591 = vrot.slane %v5559, 3
  %vm5592 = vcmask 1045509
  %v5593 = vsel %vm5592, %v5591, %v5590
  %v5594 = vrot.slane %v5560, 2
  %vm5595 = vcmask 1046534
  %v5596 = vsel %vm5595, %v5594, %v5593
  %v5597 = vrot.slane %v5561, 1
  %vm5598 = vcmask 1047559
  %v5599 = vsel %vm5598, %v5597, %v5596
  %v5600 = vsel %vm31, %v5599, 0
  %5602 = vmatprep.subr.mxu0 0.0
  %5603 = vmatpush1.msra.mxu0 0.0
  %5604 = vmatprep.subr.mxu0 0.0
  %5605 = vmatpush1.msra.mxu0 0.0
  %5606 = vmatprep.subr.mxu0 0.0
  %5607 = vmatpush1.msra.mxu0 0.0
  %5608 = vmatprep.subr.mxu0 0.0
  %5609 = vmatpush1.msra.mxu0 0.0
  %5610 = vmatprep.subr.mxu0 0.0
  %5611 = vmatpush1.msra.mxu0 0.0
  %5612 = vmatprep.subr.mxu0 0.0
  %5613 = vmatpush1.msra.mxu0 0.0
  %5614 = vmatprep.subr.mxu0 0.0
  %5615 = vmatpush1.msra.mxu0 0.0
  %5616 = vmatprep.subr.mxu0 0.0
  %5617 = vmatpush1.msra.mxu0 0.0
  %5618 = vmatprep.subr.mxu0 0.0
  %5619 = vmatpush1.msra.mxu0 0.0
  %5620 = vmatprep.subr.mxu0 0.0
  %5621 = vmatpush1.msra.mxu0 0.0
  %5622 = vmatprep.subr.mxu0 0.0
  %5623 = vmatpush1.msra.mxu0 0.0
  %5624 = vmatprep.subr.mxu0 0.0
  %5625 = vmatpush1.msra.mxu0 0.0
  %5626 = vmatprep.subr.mxu0 0.0
  %5627 = vmatpush1.msra.mxu0 %v5565
  %5628 = vmatprep.subr.mxu0 0.0
  %5629 = vmatpush1.msra.mxu0 %v5564
  %5630 = vmatprep.subr.mxu0 0.0
  %5631 = vmatpush1.msra.mxu0 %v5563
  %5632 = vmatprep.subr.mxu0 0.0
  %5633 = vmatpush1.msra.mxu0 %v5562
  %5634 = vmatprep.subr.mxu0 0.0
  %5635 = vmatpush2.msra.mxu0 0.0
  %5636 = vmatprep.subr.mxu0 0.0
  %5637 = vmatpush2.msra.mxu0 0.0
  %5638 = vmatprep.subr.mxu0 0.0
  %5639 = vmatpush2.msra.mxu0 0.0
  %5640 = vmatprep.subr.mxu0 0.0
  %5641 = vmatpush2.msra.mxu0 0.0
  %5642 = vmatprep.subr.mxu0 0.0
  %5643 = vmatpush2.msra.mxu0 0.0
  %5644 = vmatprep.subr.mxu0 0.0
  %5645 = vmatpush2.msra.mxu0 0.0
  %5646 = vmatprep.subr.mxu0 0.0
  %5647 = vmatpush2.msra.mxu0 0.0
  %5648 = vmatprep.subr.mxu0 0.0
  %5649 = vmatpush2.msra.mxu0 0.0
  %5650 = vmatprep.subr.mxu0 0.0
  %5651 = vmatpush2.msra.mxu0 0.0
  %5652 = vmatprep.subr.mxu0 0.0
  %5653 = vmatpush2.msra.mxu0 0.0
  %5654 = vmatprep.subr.mxu0 0.0
  %5655 = vmatpush2.msra.mxu0 0.0
  %5656 = vmatprep.subr.mxu0 0.0
  %5657 = vmatpush2.msra.mxu0 0.0
  %5658 = vmatprep.subr.mxu0 0.0
  %5659 = vmatpush2.msra.mxu0 0.0
  %5660 = vmatprep.subr.mxu0 0.0
  %5661 = vmatpush2.msra.mxu0 0.0
  %5662 = vmatprep.subr.mxu0 0.0
  %5663 = vmatpush2.msra.mxu0 0.0
  %5664 = vmatprep.subr.mxu0 0.0
  %5665 = vmatpush2.msra.mxu0 0.0
  %5666 = vmatprep.mubr.f32.mxu0 0.0
  %5667 = vmatmul.mubr.f32.gmra.mxu0 %v5600
  %v5668 = vpop.f32.mrf.mxu0
  %v5669 = vadd.f32 %v5570, %v5668
  %v5670 = vpop.f32.mrf.mxu0
  %5671 = vdwg.mxu0
  %5672 = vst [vmem:[%s5] sm:$0xff] %v5669
  // Predicated region
  $region22: #{encoder_forward.1} parent=0 // pred_check
    _
  $region23: #{encoder_forward.1} parent=0 // pred_check_branch
    %5674 = sbr.rel (0) target = $region25
  $region24: #{encoder_forward.1} parent=0 // pred_region
    _
  $region25: #{encoder_forward.1} parent=0 // pred_fallthru
    _
  // Predicated region
  $region26: #{encoder_forward.1} parent=0 // pred_check
    _
  $region27: #{encoder_forward.1} parent=0 // pred_check_branch
    %5676 = sbr.rel (0) target = $region29
  $region28: #{encoder_forward.1} parent=0 // pred_region
    _
  $region29: #{encoder_forward.1} parent=0 // pred_fallthru
    _

</llo_original>
